<compile_context>
chip_gen: v5e
topology: v5e:2x2
jax: 0.10.0
libtpu: 0.0.40
codegen_flags: <defaults>
</compile_context>

<pallas_src>
import functools
import math

import jax
import jax.numpy as jnp
from jax.experimental import pallas as pl
from jax.experimental.pallas import tpu as pltpu


def _round_up(x, m):
    return (x + m - 1) // m * m


def _pad2d(a, rows, cols):
    return jnp.pad(a, ((0, rows - a.shape[0]), (0, cols - a.shape[1])))


def _vmem_limit_bytes():
    """Half of physical VMEM when queryable, else a 32 MiB all-gen-safe cap."""
    try:
        cap = int(pltpu.get_tpu_info().vmem_capacity_bytes)
        return max(cap // 2, 32 * 1024 * 1024)
    except Exception:
        return 32 * 1024 * 1024


def _fused_gcn_kernel(x_ref, adj_ref, w1_ref, w2_ref, w3_ref, w4_ref, out_ref,
                      *, layer_dims):
    """4 fused GCN layers: h <- relu(adj @ h @ W_l).  Operands already in the
    compute dtype and VMEM-resident; accumulation is always f32 on the MXU."""
    adj = adj_ref[...]
    h = x_ref[...]
    out_f32 = None

    for w_ref, (f_in, f_out) in zip((w1_ref, w2_ref, w3_ref, w4_ref), layer_dims):
        w = w_ref[...]
        if f_out > f_in:
            # (adj @ h) @ W : adj-matmul contracts at width f_in (cheaper).
            ah = jnp.dot(adj, h, preferred_element_type=jnp.float32)
            out_f32 = jnp.dot(ah.astype(w.dtype), w,
                              preferred_element_type=jnp.float32)
        else:
            # adj @ (h @ W) : adj-matmul contracts at width f_out (cheaper).
            hw = jnp.dot(h, w, preferred_element_type=jnp.float32)
            out_f32 = jnp.dot(adj, hw.astype(adj.dtype),
                              preferred_element_type=jnp.float32)
        # active=True for every layer in GCNEncoder.forward -> ReLU.
        out_f32 = jnp.maximum(out_f32, 0.0)
        h = out_f32.astype(w.dtype)          # compute dtype for next layer

    out_ref[...] = out_f32.astype(out_ref.dtype)


def gcn_encoder_forward(x, adj, weights, *, compute_dtype=jnp.bfloat16):
    """Fused 4-layer GCN forward.  x: [N, F_in], adj: [N, N], weights: list of
    [F_in_l, F_out_l] f32 matrices.  Returns f32 [N, F_out_last]."""
    n, f_in = x.shape
    assert adj.shape == (n, n)
    assert weights[0].shape[0] == f_in

    # Original (unpadded) layer dims drive the association decision.
    layer_dims = tuple((w.shape[0], w.shape[1]) for w in weights)
    dims = [f_in] + [d[1] for d in layer_dims]

    sublane = 16 if compute_dtype == jnp.bfloat16 else 8
    n_pad = _round_up(n, 128) if n >= 128 else _round_up(n, sublane)
    dims_pad = [_round_up(d, 128) for d in dims]      # lane-dense feature dims

    # Pad with exact zeros, then cast to the compute dtype in the wrapper so
    # HBM traffic and VMEM residency are already halved for bf16.
    x_p = _pad2d(x, n_pad, dims_pad[0]).astype(compute_dtype)
    adj_p = _pad2d(adj, n_pad, n_pad).astype(compute_dtype)
    w_p = [_pad2d(w, dims_pad[i], dims_pad[i + 1]).astype(compute_dtype)
           for i, w in enumerate(weights)]
    operands = (x_p, adj_p, *w_p)

    # VMEM working set: single-buffered operands + f32 output + f32
    # inter-layer activation slabs; 25% headroom for Mosaic internal scratch.
    elt = jnp.dtype(compute_dtype).itemsize
    operand_bytes = elt * sum(a.size for a in operands)
    act_bytes = 4 * n_pad * sum(dims_pad)
    out_bytes = 4 * n_pad * dims_pad[-1]
    wset = operand_bytes + act_bytes + out_bytes
    limit = _vmem_limit_bytes()
    assert wset + wset // 4 < limit, (
        f"fused GCN working set {wset} B too large for VMEM limit {limit} B; "
        "use a row-tiled kernel (resident weights, streamed adj rows) instead")

    vmem = pltpu.MemorySpace.VMEM
    out_p = pl.pallas_call(
        functools.partial(_fused_gcn_kernel, layer_dims=layer_dims),
        out_shape=jax.ShapeDtypeStruct((n_pad, dims_pad[-1]), jnp.float32),
        in_specs=[pl.BlockSpec(memory_space=vmem) for _ in operands],
        out_specs=pl.BlockSpec(memory_space=vmem),
        compiler_params=pltpu.CompilerParams(vmem_limit_bytes=limit),
    )(*operands)

    # Strip the zero padding (exact: zero rows/cols stay zero through all layers).
    return out_p[:n, :dims[-1]]


def xavier_uniform(key, fan_in, fan_out):
    # Matches torch.nn.init.xavier_uniform_ (gain=1).
    bound = math.sqrt(6.0 / (fan_in + fan_out))
    return jax.random.uniform(key, (fan_in, fan_out),
                              dtype=jnp.float32, minval=-bound, maxval=bound)


def gcn_encoder_init(key, input_dim, feature_dim):
    dims = [input_dim, 500, 500, 2000, feature_dim]
    keys = jax.random.split(key, 4)
    return [xavier_uniform(k, dims[i], dims[i + 1]) for i, k in enumerate(keys)]


if __name__ == "__main__":
    key = jax.random.PRNGKey(0)
    k_x, k_adj, k_w = jax.random.split(key, 3)

    # Small graph: N nodes, input_dim features, feature_dim output embedding.
    N = 8
    input_dim = 16
    feature_dim = 32

    x = jax.random.normal(k_x, (N, input_dim), dtype=jnp.float32)

    # Synthetic symmetric row-normalized adjacency (dense stand-in for spmm).
    a = jax.random.uniform(k_adj, (N, N), dtype=jnp.float32)
    a = (a + a.T) * 0.5 + jnp.eye(N, dtype=jnp.float32)
    adj = a / jnp.sum(a, axis=1, keepdims=True)

    weights = gcn_encoder_init(k_w, input_dim, feature_dim)

    # Pure-JAX f32 reference (same association as the PyTorch module).
    ref = x
    for w in weights:
        ref = jnp.maximum(adj @ (ref @ w), 0.0)

    # Default fast path: bf16 MXU operands, f32 accumulation.
    out_bf16 = gcn_encoder_forward(x, adj, weights, compute_dtype=jnp.bfloat16)
    out_bf16 = jax.block_until_ready(out_bf16)
    assert out_bf16.shape == (N, feature_dim)
    assert out_bf16.dtype == jnp.float32
    assert jnp.allclose(out_bf16, ref, atol=5e-2, rtol=5e-2)

    # Debug/reference f32 path: matches the f32 reference tightly.
    out_f32 = gcn_encoder_forward(x, adj, weights, compute_dtype=jnp.float32)
    out_f32 = jax.block_until_ready(out_f32)
    assert jnp.allclose(out_f32, ref, atol=1e-4, rtol=1e-4)

    print("KERNEL_OK")
</pallas_src>

<mosaic_0001>
module attributes {stable_mosaic.version = 11 : i64} {
  func.func @_fused_gcn_kernel(%arg0: memref<16x128xbf16, #tpu.memory_space<vmem>>, %arg1: memref<16x16xbf16, #tpu.memory_space<vmem>>, %arg2: memref<128x512xbf16, #tpu.memory_space<vmem>>, %arg3: memref<512x512xbf16, #tpu.memory_space<vmem>>, %arg4: memref<512x2048xbf16, #tpu.memory_space<vmem>>, %arg5: memref<2048x128xbf16, #tpu.memory_space<vmem>>, %arg6: memref<16x128xf32, #tpu.memory_space<vmem>>) attributes {dimension_semantics = [], scalar_prefetch = 0 : i64, scratch_operands = 0 : i64, tpu.core_type = #tpu.core_type<tc>} {
    %c0 = arith.constant 0 : index
    %c0_0 = arith.constant 0 : index
    %0 = vector.load %arg1[%c0, %c0_0] : memref<16x16xbf16, #tpu.memory_space<vmem>>, vector<16x16xbf16>
    %c0_1 = arith.constant 0 : index
    %c0_2 = arith.constant 0 : index
    %1 = vector.load %arg0[%c0_1, %c0_2] : memref<16x128xbf16, #tpu.memory_space<vmem>>, vector<16x128xbf16>
    %c0_3 = arith.constant 0 : index
    %c0_4 = arith.constant 0 : index
    %2 = vector.load %arg2[%c0_3, %c0_4] : memref<128x512xbf16, #tpu.memory_space<vmem>>, vector<128x512xbf16>
    %cst = arith.constant dense<0.000000e+00> : vector<16x128xf32>
    %3 = tpu.matmul %0, %1, %cst {dimension_numbers = #tpu.dot_dimension_numbers<[1], [0], [0], [1], [0, 0, 1, 1], [], []>} : vector<16x16xbf16>, vector<16x128xbf16>, vector<16x128xf32> -> vector<16x128xf32>
    %4 = arith.truncf %3 : vector<16x128xf32> to vector<16x128xbf16>
    %cst_5 = arith.constant dense<0.000000e+00> : vector<16x512xf32>
    %5 = tpu.matmul %4, %2, %cst_5 {dimension_numbers = #tpu.dot_dimension_numbers<[1], [0], [0], [1], [0, 0, 1, 1], [], []>} : vector<16x128xbf16>, vector<128x512xbf16>, vector<16x512xf32> -> vector<16x512xf32>
    %cst_6 = arith.constant 0.000000e+00 : f32
    %6 = vector.broadcast %cst_6 : f32 to vector<16x512xf32>
    %7 = arith.maximumf %5, %6 : vector<16x512xf32>
    %8 = arith.truncf %7 : vector<16x512xf32> to vector<16x512xbf16>
    %c0_7 = arith.constant 0 : index
    %c0_8 = arith.constant 0 : index
    %9 = vector.load %arg3[%c0_7, %c0_8] : memref<512x512xbf16, #tpu.memory_space<vmem>>, vector<512x512xbf16>
    %cst_9 = arith.constant dense<0.000000e+00> : vector<16x512xf32>
    %10 = tpu.matmul %8, %9, %cst_9 {dimension_numbers = #tpu.dot_dimension_numbers<[1], [0], [0], [1], [0, 0, 1, 1], [], []>} : vector<16x512xbf16>, vector<512x512xbf16>, vector<16x512xf32> -> vector<16x512xf32>
    %11 = arith.truncf %10 : vector<16x512xf32> to vector<16x512xbf16>
    %cst_10 = arith.constant dense<0.000000e+00> : vector<16x512xf32>
    %12 = tpu.matmul %0, %11, %cst_10 {dimension_numbers = #tpu.dot_dimension_numbers<[1], [0], [0], [1], [0, 0, 1, 1], [], []>} : vector<16x16xbf16>, vector<16x512xbf16>, vector<16x512xf32> -> vector<16x512xf32>
    %cst_11 = arith.constant 0.000000e+00 : f32
    %13 = vector.broadcast %cst_11 : f32 to vector<16x512xf32>
    %14 = arith.maximumf %12, %13 : vector<16x512xf32>
    %15 = arith.truncf %14 : vector<16x512xf32> to vector<16x512xbf16>
    %c0_12 = arith.constant 0 : index
    %c0_13 = arith.constant 0 : index
    %16 = vector.load %arg4[%c0_12, %c0_13] : memref<512x2048xbf16, #tpu.memory_space<vmem>>, vector<512x2048xbf16>
    %cst_14 = arith.constant dense<0.000000e+00> : vector<16x512xf32>
    %17 = tpu.matmul %0, %15, %cst_14 {dimension_numbers = #tpu.dot_dimension_numbers<[1], [0], [0], [1], [0, 0, 1, 1], [], []>} : vector<16x16xbf16>, vector<16x512xbf16>, vector<16x512xf32> -> vector<16x512xf32>
    %18 = arith.truncf %17 : vector<16x512xf32> to vector<16x512xbf16>
    %cst_15 = arith.constant dense<0.000000e+00> : vector<16x2048xf32>
    %19 = tpu.matmul %18, %16, %cst_15 {dimension_numbers = #tpu.dot_dimension_numbers<[1], [0], [0], [1], [0, 0, 1, 1], [], []>} : vector<16x512xbf16>, vector<512x2048xbf16>, vector<16x2048xf32> -> vector<16x2048xf32>
    %cst_16 = arith.constant 0.000000e+00 : f32
    %20 = vector.broadcast %cst_16 : f32 to vector<16x2048xf32>
    %21 = arith.maximumf %19, %20 : vector<16x2048xf32>
    %22 = arith.truncf %21 : vector<16x2048xf32> to vector<16x2048xbf16>
    %c0_17 = arith.constant 0 : index
    %c0_18 = arith.constant 0 : index
    %23 = vector.load %arg5[%c0_17, %c0_18] : memref<2048x128xbf16, #tpu.memory_space<vmem>>, vector<2048x128xbf16>
    %cst_19 = arith.constant dense<0.000000e+00> : vector<16x128xf32>
    %24 = tpu.matmul %22, %23, %cst_19 {dimension_numbers = #tpu.dot_dimension_numbers<[1], [0], [0], [1], [0, 0, 1, 1], [], []>} : vector<16x2048xbf16>, vector<2048x128xbf16>, vector<16x128xf32> -> vector<16x128xf32>
    %25 = arith.truncf %24 : vector<16x128xf32> to vector<16x128xbf16>
    %cst_20 = arith.constant dense<0.000000e+00> : vector<16x128xf32>
    %26 = tpu.matmul %0, %25, %cst_20 {dimension_numbers = #tpu.dot_dimension_numbers<[1], [0], [0], [1], [0, 0, 1, 1], [], []>} : vector<16x16xbf16>, vector<16x128xbf16>, vector<16x128xf32> -> vector<16x128xf32>
    %cst_21 = arith.constant 0.000000e+00 : f32
    %27 = vector.broadcast %cst_21 : f32 to vector<16x128xf32>
    %28 = arith.maximumf %26, %27 : vector<16x128xf32>
    %c0_22 = arith.constant 0 : index
    %c0_23 = arith.constant 0 : index
    %29 = vector.load %arg6[%c0_22, %c0_23] : memref<16x128xf32, #tpu.memory_space<vmem>>, vector<16x128xf32>
    tpu.vector_store %arg6[%c0_22, %c0_23], %28 {strides = array<i32>} : memref<16x128xf32, #tpu.memory_space<vmem>>, vector<16x128xf32>,
    return
  }
}

</mosaic_0001>

<llo_original>
// kernel: tpu_custom_call.1
$region0: #{tpu_custom_call.1}
  #allocation0 [shape = 'u32[]', space=smem, size = 0x4, offset = 0x4, fixed_abs, tag = 'smem constant byte address 0x4 - core index']
  #allocation1 [shape = 'u32[72,128]{1,0:T(1,128)}', space=vmem, size = 0x9000, scoped, tag = 'internal scratch']
  %s0 = inlined_call_operand.hbm [shape: bf16[16,128], index: 0, kind: input, shape index: {}]
  %s1 = inlined_call_operand.hbm [shape: bf16[16,16], index: 1, kind: input, shape index: {}]
  %s2 = inlined_call_operand.hbm [shape: bf16[128,512], index: 2, kind: input, shape index: {}]
  %s3 = inlined_call_operand.hbm [shape: bf16[512,512], index: 3, kind: input, shape index: {}]
  %s4 = inlined_call_operand.hbm [shape: bf16[512,2048], index: 4, kind: input, shape index: {}]
  %s5 = inlined_call_operand.hbm [shape: bf16[2048,128], index: 5, kind: input, shape index: {}]
  %s6 = inlined_call_operand.hbm [shape: f32[16,128], index: 6, kind: output, shape index: {}]
  %s7 = sld [smem:[#allocation0]]
  $region58: #{tpu_custom_call.1} parent=0
    _
  %s9 = ssub.s32 1, %s7
  %s10 = scalar_select 0, %s9, %s7
  $region1: #{tpu_custom_call.1} parent=0
    #allocation2 [shape = 'u8[4096]{0}', space=vmem, size = 0x1000, scoped, tag = 'input window, operand 0, single buffered']
    #allocation3 [shape = 's32[1]{0}', space=sflag, size = 0x4, scoped, tag = 'scoped memory for tpu_custom_call.1']
    #allocation4 [shape = 's32[1]{0}', space=sflag, size = 0x4, scoped, tag = 'scoped memory for tpu_custom_call.1']
    #allocation5 [shape = 'u8[4096]{0}', space=vmem, size = 0x1000, scoped, tag = 'input window, operand 1, single buffered']
    #allocation6 [shape = 's32[1]{0}', space=sflag, size = 0x4, scoped, tag = 'scoped memory for tpu_custom_call.1']
    #allocation7 [shape = 'u8[131072]{0}', space=vmem, size = 0x20000, scoped, tag = 'input window, operand 2, single buffered']
    #allocation8 [shape = 'u8[524288]{0}', space=vmem, size = 0x80000, scoped, tag = 'input window, operand 3, single buffered']
    #allocation9 [shape = 's32[1]{0}', space=sflag, size = 0x4, scoped, tag = 'scoped memory for tpu_custom_call.1']
    #allocation10 [shape = 'u8[2097152]{0}', space=vmem, size = 0x200000, scoped, tag = 'input window, operand 4, single buffered']
    #allocation11 [shape = 'u8[524288]{0}', space=vmem, size = 0x80000, scoped, tag = 'input window, operand 5, single buffered']
    #allocation12 [shape = 's32[1]{0}', space=sflag, size = 0x4, scoped, tag = 'scoped memory for tpu_custom_call.1']
    #allocation13 [shape = 'u8[8192]{0}', space=vmem, size = 0x2000, scoped, tag = 'output window, operand 0, single buffered']
    %11 = vsyncpa [#allocation3], 0
    %12 = vsyncpa [#allocation6], 0
    %13 = vsyncpa [#allocation9], 0
    %14 = vsyncpa [#allocation12], 0
    %15 = vsyncpa [#allocation4], 0
    // Predicated region
    $region2: #{tpu_custom_call.1} parent=1 // pred_check
      _
    $region3: #{tpu_custom_call.1} parent=1 // pred_check_branch
      %17 = sbr.rel (0) target = $region5
    $region4: #{tpu_custom_call.1} parent=1 // pred_region
      %19 = vsyncadd [#allocation3], 0
      %s20 = sshll.u32 %s0, 4
      %s21 = int_to_ptr.hbm [resolvable:$true] %s20
      %s22 = sshll.u32 [#allocation2], 4
      %s23 = int_to_ptr.vmem [resolvable:$true] %s22
      %28 = dma.hbm_to_vmem [thread:$0]  %s21, 128, %s23, [#allocation3], 64, 64, 4
    $region5: #{tpu_custom_call.1} parent=1 // pred_fallthru
      _
    // Predicated region
    $region6: #{tpu_custom_call.1} parent=1 // pred_check
      _
    $region7: #{tpu_custom_call.1} parent=1 // pred_check_branch
      %30 = sbr.rel (0) target = $region9
    $region8: #{tpu_custom_call.1} parent=1 // pred_region
      %32 = vsyncadd [#allocation6], 0
      %s33 = sshll.u32 %s1, 4
      %s34 = int_to_ptr.hbm [resolvable:$true] %s33
      %s35 = sshll.u32 [#allocation5], 4
      %s36 = int_to_ptr.vmem [resolvable:$true] %s35
      %41 = dma.hbm_to_vmem [thread:$0]  %s34, 128, %s36, [#allocation6], 64, 64, 4
    $region9: #{tpu_custom_call.1} parent=1 // pred_fallthru
      _
    // Predicated region
    $region10: #{tpu_custom_call.1} parent=1 // pred_check
      _
    $region11: #{tpu_custom_call.1} parent=1 // pred_check_branch
      %43 = sbr.rel (0) target = $region13
    $region12: #{tpu_custom_call.1} parent=1 // pred_region
      %45 = vsyncadd [#allocation6], 0
      %s46 = sshll.u32 %s2, 4
      %s47 = int_to_ptr.hbm [resolvable:$true] %s46
      %s48 = sshll.u32 [#allocation7], 4
      %s49 = int_to_ptr.vmem [resolvable:$true] %s48
      %54 = dma.hbm_to_vmem [thread:$0]  %s47, 4096, %s49, [#allocation6], 256, 256, 16
    $region13: #{tpu_custom_call.1} parent=1 // pred_fallthru
      _
    // Predicated region
    $region14: #{tpu_custom_call.1} parent=1 // pred_check
      _
    $region15: #{tpu_custom_call.1} parent=1 // pred_check_branch
      %56 = sbr.rel (0) target = $region17
    $region16: #{tpu_custom_call.1} parent=1 // pred_region
      %58 = vsyncadd [#allocation9], 0
      %s59 = sshll.u32 %s3, 4
      %s60 = int_to_ptr.hbm [resolvable:$true] %s59
      %s61 = sshll.u32 [#allocation8], 4
      %s62 = int_to_ptr.vmem [resolvable:$true] %s61
      %67 = dma.hbm_to_vmem [thread:$0]  %s60, 16384, %s62, [#allocation9], 256, 256, 16
    $region17: #{tpu_custom_call.1} parent=1 // pred_fallthru
      _
    // Predicated region
    $region18: #{tpu_custom_call.1} parent=1 // pred_check
      _
    $region19: #{tpu_custom_call.1} parent=1 // pred_check_branch
      %69 = sbr.rel (0) target = $region21
    $region20: #{tpu_custom_call.1} parent=1 // pred_region
      %71 = vsyncadd [#allocation9], 0
      %s72 = sshll.u32 %s4, 4
      %s73 = int_to_ptr.hbm [resolvable:$true] %s72
      %s74 = sshll.u32 [#allocation10], 4
      %s75 = int_to_ptr.vmem [resolvable:$true] %s74
      %80 = dma.hbm_to_vmem [thread:$0]  %s73, 65536, %s75, [#allocation9], 1024, 1024, 64
    $region21: #{tpu_custom_call.1} parent=1 // pred_fallthru
      _
    // Predicated region
    $region22: #{tpu_custom_call.1} parent=1 // pred_check
      _
    $region23: #{tpu_custom_call.1} parent=1 // pred_check_branch
      %82 = sbr.rel (0) target = $region25
    $region24: #{tpu_custom_call.1} parent=1 // pred_region
      %84 = vsyncadd [#allocation12], 0
      %s85 = sshll.u32 %s5, 4
      %s86 = int_to_ptr.hbm [resolvable:$true] %s85
      %s87 = sshll.u32 [#allocation11], 4
      %s88 = int_to_ptr.vmem [resolvable:$true] %s87
      %93 = dma.hbm_to_vmem [thread:$0]  %s86, 16384, %s88, [#allocation12], 64, 64, 4
    $region25: #{tpu_custom_call.1} parent=1 // pred_fallthru
      _
    // Predicated region
    $region26: #{tpu_custom_call.1} parent=1 // pred_check
      _
    $region27: #{tpu_custom_call.1} parent=1 // pred_check_branch
      %95 = sbr.rel (0) target = $region29
    $region28: #{tpu_custom_call.1} parent=1 // pred_region
      %97 = dma.done [#allocation3], 128
    $region29: #{tpu_custom_call.1} parent=1 // pred_fallthru
      _
    // Predicated region
    $region30: #{tpu_custom_call.1} parent=1 // pred_check
      _
    $region31: #{tpu_custom_call.1} parent=1 // pred_check_branch
      %99 = sbr.rel (0) target = $region33
    $region32: #{tpu_custom_call.1} parent=1 // pred_region
      %101 = dma.done [#allocation6], 128
    $region33: #{tpu_custom_call.1} parent=1 // pred_fallthru
      _
    // Predicated region
    $region34: #{tpu_custom_call.1} parent=1 // pred_check
      _
    $region35: #{tpu_custom_call.1} parent=1 // pred_check_branch
      %103 = sbr.rel (0) target = $region37
    $region36: #{tpu_custom_call.1} parent=1 // pred_region
      %105 = dma.done [#allocation6], 4096
    $region37: #{tpu_custom_call.1} parent=1 // pred_fallthru
      _
    // Predicated region
    $region38: #{tpu_custom_call.1} parent=1 // pred_check
      _
    $region39: #{tpu_custom_call.1} parent=1 // pred_check_branch
      %107 = sbr.rel (0) target = $region41
    $region40: #{tpu_custom_call.1} parent=1 // pred_region
      %109 = dma.done [#allocation9], 16384
    $region41: #{tpu_custom_call.1} parent=1 // pred_fallthru
      _
    // Predicated region
    $region42: #{tpu_custom_call.1} parent=1 // pred_check
      _
    $region43: #{tpu_custom_call.1} parent=1 // pred_check_branch
      %111 = sbr.rel (0) target = $region45
    $region44: #{tpu_custom_call.1} parent=1 // pred_region
      %113 = dma.done [#allocation9], 65536
    $region45: #{tpu_custom_call.1} parent=1 // pred_fallthru
      _
    // Predicated region
    $region46: #{tpu_custom_call.1} parent=1 // pred_check
      _
    $region47: #{tpu_custom_call.1} parent=1 // pred_check_branch
      %115 = sbr.rel (0) target = $region49
    $region48: #{tpu_custom_call.1} parent=1 // pred_region
      %117 = dma.done [#allocation12], 16384
    $region49: #{tpu_custom_call.1} parent=1 // pred_fallthru
      _
    %v119 = vld [vmem:[#allocation5] sm:$0xf]
    %v120 = vld [vmem:[#allocation5 + $0x4] sm:$0xf]
    %v121 = vld [vmem:[#allocation2] sm:$0xf]
    %v122 = vld [vmem:[#allocation2 + $0x4] sm:$0xf]
    %v123 = vld [vmem:[#allocation7] sm:$0xff]
    %v124 = vld [vmem:[#allocation7 + $0x8] sm:$0xff]
    %v125 = vld [vmem:[#allocation7 + $0x10] sm:$0xff]
    %v126 = vld [vmem:[#allocation7 + $0x18] sm:$0xff]
    %v127 = vld [vmem:[#allocation7 + $0x20] sm:$0xff]
    %v128 = vld [vmem:[#allocation7 + $0x28] sm:$0xff]
    %v129 = vld [vmem:[#allocation7 + $0x30] sm:$0xff]
    %v130 = vld [vmem:[#allocation7 + $0x38] sm:$0xff]
    %v131 = vld [vmem:[#allocation7 + $0x40] sm:$0xff]
    %v132 = vld [vmem:[#allocation7 + $0x48] sm:$0xff]
    %v133 = vld [vmem:[#allocation7 + $0x50] sm:$0xff]
    %v134 = vld [vmem:[#allocation7 + $0x58] sm:$0xff]
    %v135 = vld [vmem:[#allocation7 + $0x60] sm:$0xff]
    %v136 = vld [vmem:[#allocation7 + $0x68] sm:$0xff]
    %v137 = vld [vmem:[#allocation7 + $0x70] sm:$0xff]
    %v138 = vld [vmem:[#allocation7 + $0x78] sm:$0xff]
    %v139 = vld [vmem:[#allocation7 + $0x80] sm:$0xff]
    %v140 = vld [vmem:[#allocation7 + $0x88] sm:$0xff]
    %v141 = vld [vmem:[#allocation7 + $0x90] sm:$0xff]
    %v142 = vld [vmem:[#allocation7 + $0x98] sm:$0xff]
    %v143 = vld [vmem:[#allocation7 + $0xa0] sm:$0xff]
    %v144 = vld [vmem:[#allocation7 + $0xa8] sm:$0xff]
    %v145 = vld [vmem:[#allocation7 + $0xb0] sm:$0xff]
    %v146 = vld [vmem:[#allocation7 + $0xb8] sm:$0xff]
    %v147 = vld [vmem:[#allocation7 + $0xc0] sm:$0xff]
    %v148 = vld [vmem:[#allocation7 + $0xc8] sm:$0xff]
    %v149 = vld [vmem:[#allocation7 + $0xd0] sm:$0xff]
    %v150 = vld [vmem:[#allocation7 + $0xd8] sm:$0xff]
    %v151 = vld [vmem:[#allocation7 + $0xe0] sm:$0xff]
    %v152 = vld [vmem:[#allocation7 + $0xe8] sm:$0xff]
    %v153 = vld [vmem:[#allocation7 + $0xf0] sm:$0xff]
    %v154 = vld [vmem:[#allocation7 + $0xf8] sm:$0xff]
    %v157 = vunpack.c.l.b16 %v119
    %v158 = vunpack.c.l.b16 %v120
    %v159 = vpack.c.b16 %v158, %v157
    %v162 = vunpack.c.l.b16 %v121
    %v163 = vunpack.c.l.b16 %v122
    %v164 = vpack.c.b16 %v163, %v162
    %vm166 = vcmask 130048
    %v168 = vsel %vm166, %v159, 0
    %170 = vmatpush.bf16.msra.mxu0 0
    %171 = vmatpush.bf16.msra.mxu0 0
    %172 = vmatpush.bf16.msra.mxu0 0
    %173 = vmatpush.bf16.msra.mxu0 0
    %174 = vmatpush.bf16.msra.mxu0 0
    %175 = vmatpush.bf16.msra.mxu0 0
    %176 = vmatpush.bf16.msra.mxu0 0
    %177 = vmatpush.bf16.msra.mxu0 %v164
    %178 = vmatmul.bf16.gmra.mxu0 %v168
    %v179 = vpop.f32.mrf.mxu0
    %v180 = vadd.f32 0.0, %v179
    %v181 = vpop.f32.mrf.mxu0
    %v182 = vadd.f32 0.0, %v181
    %183 = vdwg.mxu0
    %v184 = vpack.c.bf16 %v182, %v180
    %v217 = vunpack.c.l.b16 %v123
    %v218 = vunpack.c.h.b16 %v123
    %v219 = vunpack.c.l.b16 %v124
    %v220 = vunpack.c.h.b16 %v124
    %v221 = vunpack.c.l.b16 %v125
    %v222 = vunpack.c.h.b16 %v125
    %v223 = vunpack.c.l.b16 %v126
    %v224 = vunpack.c.h.b16 %v126
    %v225 = vunpack.c.l.b16 %v127
    %v226 = vunpack.c.h.b16 %v127
    %v227 = vunpack.c.l.b16 %v128
    %v228 = vunpack.c.h.b16 %v128
    %v229 = vunpack.c.l.b16 %v129
    %v230 = vunpack.c.h.b16 %v129
    %v231 = vunpack.c.l.b16 %v130
    %v232 = vunpack.c.h.b16 %v130
    %v233 = vunpack.c.l.b16 %v131
    %v234 = vunpack.c.h.b16 %v131
    %v235 = vunpack.c.l.b16 %v132
    %v236 = vunpack.c.h.b16 %v132
    %v237 = vunpack.c.l.b16 %v133
    %v238 = vunpack.c.h.b16 %v133
    %v239 = vunpack.c.l.b16 %v134
    %v240 = vunpack.c.h.b16 %v134
    %v241 = vunpack.c.l.b16 %v135
    %v242 = vunpack.c.h.b16 %v135
    %v243 = vunpack.c.l.b16 %v136
    %v244 = vunpack.c.h.b16 %v136
    %v245 = vunpack.c.l.b16 %v137
    %v246 = vunpack.c.h.b16 %v137
    %v247 = vunpack.c.l.b16 %v138
    %v248 = vunpack.c.h.b16 %v138
    %v249 = vunpack.c.l.b16 %v139
    %v250 = vunpack.c.h.b16 %v139
    %v251 = vunpack.c.l.b16 %v140
    %v252 = vunpack.c.h.b16 %v140
    %v253 = vunpack.c.l.b16 %v141
    %v254 = vunpack.c.h.b16 %v141
    %v255 = vunpack.c.l.b16 %v142
    %v256 = vunpack.c.h.b16 %v142
    %v257 = vunpack.c.l.b16 %v143
    %v258 = vunpack.c.h.b16 %v143
    %v259 = vunpack.c.l.b16 %v144
    %v260 = vunpack.c.h.b16 %v144
    %v261 = vunpack.c.l.b16 %v145
    %v262 = vunpack.c.h.b16 %v145
    %v263 = vunpack.c.l.b16 %v146
    %v264 = vunpack.c.h.b16 %v146
    %v265 = vunpack.c.l.b16 %v147
    %v266 = vunpack.c.h.b16 %v147
    %v267 = vunpack.c.l.b16 %v148
    %v268 = vunpack.c.h.b16 %v148
    %v269 = vunpack.c.l.b16 %v149
    %v270 = vunpack.c.h.b16 %v149
    %v271 = vunpack.c.l.b16 %v150
    %v272 = vunpack.c.h.b16 %v150
    %v273 = vunpack.c.l.b16 %v151
    %v274 = vunpack.c.h.b16 %v151
    %v275 = vunpack.c.l.b16 %v152
    %v276 = vunpack.c.h.b16 %v152
    %v277 = vunpack.c.l.b16 %v153
    %v278 = vunpack.c.h.b16 %v153
    %v279 = vunpack.c.l.b16 %v154
    %v280 = vunpack.c.h.b16 %v154
    %v281 = vpack.c.b16 %v221, %v217
    %v282 = vpack.c.b16 %v222, %v218
    %v283 = vpack.c.b16 %v223, %v219
    %v284 = vpack.c.b16 %v224, %v220
    %v285 = vpack.c.b16 %v229, %v225
    %v286 = vpack.c.b16 %v230, %v226
    %v287 = vpack.c.b16 %v231, %v227
    %v288 = vpack.c.b16 %v232, %v228
    %v289 = vpack.c.b16 %v237, %v233
    %v290 = vpack.c.b16 %v238, %v234
    %v291 = vpack.c.b16 %v239, %v235
    %v292 = vpack.c.b16 %v240, %v236
    %v293 = vpack.c.b16 %v245, %v241
    %v294 = vpack.c.b16 %v246, %v242
    %v295 = vpack.c.b16 %v247, %v243
    %v296 = vpack.c.b16 %v248, %v244
    %v297 = vpack.c.b16 %v253, %v249
    %v298 = vpack.c.b16 %v254, %v250
    %v299 = vpack.c.b16 %v255, %v251
    %v300 = vpack.c.b16 %v256, %v252
    %v301 = vpack.c.b16 %v261, %v257
    %v302 = vpack.c.b16 %v262, %v258
    %v303 = vpack.c.b16 %v263, %v259
    %v304 = vpack.c.b16 %v264, %v260
    %v305 = vpack.c.b16 %v269, %v265
    %v306 = vpack.c.b16 %v270, %v266
    %v307 = vpack.c.b16 %v271, %v267
    %v308 = vpack.c.b16 %v272, %v268
    %v309 = vpack.c.b16 %v277, %v273
    %v310 = vpack.c.b16 %v278, %v274
    %v311 = vpack.c.b16 %v279, %v275
    %v312 = vpack.c.b16 %v280, %v276
    %345 = vmatpush.bf16.msra.mxu0 %v309
    %346 = vmatpush.bf16.msra.mxu0 %v305
    %347 = vmatpush.bf16.msra.mxu0 %v301
    %348 = vmatpush.bf16.msra.mxu0 %v297
    %349 = vmatpush.bf16.msra.mxu0 %v293
    %350 = vmatpush.bf16.msra.mxu0 %v289
    %351 = vmatpush.bf16.msra.mxu0 %v285
    %352 = vmatpush.bf16.msra.mxu0 %v281
    %353 = vmatmul.bf16.gmra.mxu0 %v184
    %v354 = vpop.f32.mrf.mxu0
    %v355 = vadd.f32 0.0, %v354
    %v356 = vpop.f32.mrf.mxu0
    %v357 = vadd.f32 0.0, %v356
    %358 = vdwg.mxu0
    %359 = vmatpush.bf16.msra.mxu0 %v310
    %360 = vmatpush.bf16.msra.mxu0 %v306
    %361 = vmatpush.bf16.msra.mxu0 %v302
    %362 = vmatpush.bf16.msra.mxu0 %v298
    %363 = vmatpush.bf16.msra.mxu0 %v294
    %364 = vmatpush.bf16.msra.mxu0 %v290
    %365 = vmatpush.bf16.msra.mxu0 %v286
    %366 = vmatpush.bf16.msra.mxu0 %v282
    %367 = vmatmul.bf16.gmra.mxu0 %v184
    %v368 = vpop.f32.mrf.mxu0
    %v369 = vadd.f32 0.0, %v368
    %v370 = vpop.f32.mrf.mxu0
    %v371 = vadd.f32 0.0, %v370
    %372 = vdwg.mxu0
    %373 = vmatpush.bf16.msra.mxu0 %v311
    %374 = vmatpush.bf16.msra.mxu0 %v307
    %375 = vmatpush.bf16.msra.mxu0 %v303
    %376 = vmatpush.bf16.msra.mxu0 %v299
    %377 = vmatpush.bf16.msra.mxu0 %v295
    %378 = vmatpush.bf16.msra.mxu0 %v291
    %379 = vmatpush.bf16.msra.mxu0 %v287
    %380 = vmatpush.bf16.msra.mxu0 %v283
    %381 = vmatmul.bf16.gmra.mxu0 %v184
    %v382 = vpop.f32.mrf.mxu0
    %v383 = vadd.f32 0.0, %v382
    %v384 = vpop.f32.mrf.mxu0
    %v385 = vadd.f32 0.0, %v384
    %386 = vdwg.mxu0
    %387 = vmatpush.bf16.msra.mxu0 %v312
    %388 = vmatpush.bf16.msra.mxu0 %v308
    %389 = vmatpush.bf16.msra.mxu0 %v304
    %390 = vmatpush.bf16.msra.mxu0 %v300
    %391 = vmatpush.bf16.msra.mxu0 %v296
    %392 = vmatpush.bf16.msra.mxu0 %v292
    %393 = vmatpush.bf16.msra.mxu0 %v288
    %394 = vmatpush.bf16.msra.mxu0 %v284
    %395 = vmatmul.bf16.gmra.mxu0 %v184
    %v396 = vpop.f32.mrf.mxu0
    %v397 = vadd.f32 0.0, %v396
    %v398 = vpop.f32.mrf.mxu0
    %v399 = vadd.f32 0.0, %v398
    %400 = vdwg.mxu0
    %v401 = vmax.f32 %v355, 0.0
    %v402 = vmax.f32 %v369, 0.0
    %v403 = vmax.f32 %v383, 0.0
    %v404 = vmax.f32 %v397, 0.0
    %v405 = vmax.f32 %v357, 0.0
    %v406 = vmax.f32 %v371, 0.0
    %v407 = vmax.f32 %v385, 0.0
    %v408 = vmax.f32 %v399, 0.0
    %v409 = vpack.c.bf16 %v405, %v401
    %v410 = vpack.c.bf16 %v406, %v402
    %v411 = vpack.c.bf16 %v407, %v403
    %v412 = vpack.c.bf16 %v408, %v404
    %v413 = vld [vmem:[#allocation8] sm:$0xff]
    %v414 = vld [vmem:[#allocation8 + $0x8] sm:$0xff]
    %v415 = vld [vmem:[#allocation8 + $0x10] sm:$0xff]
    %v416 = vld [vmem:[#allocation8 + $0x18] sm:$0xff]
    %v417 = vld [vmem:[#allocation8 + $0x20] sm:$0xff]
    %v418 = vld [vmem:[#allocation8 + $0x28] sm:$0xff]
    %v419 = vld [vmem:[#allocation8 + $0x30] sm:$0xff]
    %v420 = vld [vmem:[#allocation8 + $0x38] sm:$0xff]
    %v421 = vld [vmem:[#allocation8 + $0x40] sm:$0xff]
    %v422 = vld [vmem:[#allocation8 + $0x48] sm:$0xff]
    %v423 = vld [vmem:[#allocation8 + $0x50] sm:$0xff]
    %v424 = vld [vmem:[#allocation8 + $0x58] sm:$0xff]
    %v425 = vld [vmem:[#allocation8 + $0x60] sm:$0xff]
    %v426 = vld [vmem:[#allocation8 + $0x68] sm:$0xff]
    %v427 = vld [vmem:[#allocation8 + $0x70] sm:$0xff]
    %v428 = vld [vmem:[#allocation8 + $0x78] sm:$0xff]
    %v429 = vld [vmem:[#allocation8 + $0x80] sm:$0xff]
    %v430 = vld [vmem:[#allocation8 + $0x88] sm:$0xff]
    %v431 = vld [vmem:[#allocation8 + $0x90] sm:$0xff]
    %v432 = vld [vmem:[#allocation8 + $0x98] sm:$0xff]
    %v433 = vld [vmem:[#allocation8 + $0xa0] sm:$0xff]
    %v434 = vld [vmem:[#allocation8 + $0xa8] sm:$0xff]
    %v435 = vld [vmem:[#allocation8 + $0xb0] sm:$0xff]
    %v436 = vld [vmem:[#allocation8 + $0xb8] sm:$0xff]
    %v437 = vld [vmem:[#allocation8 + $0xc0] sm:$0xff]
    %v438 = vld [vmem:[#allocation8 + $0xc8] sm:$0xff]
    %v439 = vld [vmem:[#allocation8 + $0xd0] sm:$0xff]
    %v440 = vld [vmem:[#allocation8 + $0xd8] sm:$0xff]
    %v441 = vld [vmem:[#allocation8 + $0xe0] sm:$0xff]
    %v442 = vld [vmem:[#allocation8 + $0xe8] sm:$0xff]
    %v443 = vld [vmem:[#allocation8 + $0xf0] sm:$0xff]
    %v444 = vld [vmem:[#allocation8 + $0xf8] sm:$0xff]
    %v445 = vld [vmem:[#allocation8 + $0x100] sm:$0xff]
    %v446 = vld [vmem:[#allocation8 + $0x108] sm:$0xff]
    %v447 = vld [vmem:[#allocation8 + $0x110] sm:$0xff]
    %v448 = vld [vmem:[#allocation8 + $0x118] sm:$0xff]
    %v449 = vld [vmem:[#allocation8 + $0x120] sm:$0xff]
    %v450 = vld [vmem:[#allocation8 + $0x128] sm:$0xff]
    %v451 = vld [vmem:[#allocation8 + $0x130] sm:$0xff]
    %v452 = vld [vmem:[#allocation8 + $0x138] sm:$0xff]
    %v453 = vld [vmem:[#allocation8 + $0x140] sm:$0xff]
    %v454 = vld [vmem:[#allocation8 + $0x148] sm:$0xff]
    %v455 = vld [vmem:[#allocation8 + $0x150] sm:$0xff]
    %v456 = vld [vmem:[#allocation8 + $0x158] sm:$0xff]
    %v457 = vld [vmem:[#allocation8 + $0x160] sm:$0xff]
    %v458 = vld [vmem:[#allocation8 + $0x168] sm:$0xff]
    %v459 = vld [vmem:[#allocation8 + $0x170] sm:$0xff]
    %v460 = vld [vmem:[#allocation8 + $0x178] sm:$0xff]
    %v461 = vld [vmem:[#allocation8 + $0x180] sm:$0xff]
    %v462 = vld [vmem:[#allocation8 + $0x188] sm:$0xff]
    %v463 = vld [vmem:[#allocation8 + $0x190] sm:$0xff]
    %v464 = vld [vmem:[#allocation8 + $0x198] sm:$0xff]
    %v465 = vld [vmem:[#allocation8 + $0x1a0] sm:$0xff]
    %v466 = vld [vmem:[#allocation8 + $0x1a8] sm:$0xff]
    %v467 = vld [vmem:[#allocation8 + $0x1b0] sm:$0xff]
    %v468 = vld [vmem:[#allocation8 + $0x1b8] sm:$0xff]
    %v469 = vld [vmem:[#allocation8 + $0x1c0] sm:$0xff]
    %v470 = vld [vmem:[#allocation8 + $0x1c8] sm:$0xff]
    %v471 = vld [vmem:[#allocation8 + $0x1d0] sm:$0xff]
    %v472 = vld [vmem:[#allocation8 + $0x1d8] sm:$0xff]
    %v473 = vld [vmem:[#allocation8 + $0x1e0] sm:$0xff]
    %v474 = vld [vmem:[#allocation8 + $0x1e8] sm:$0xff]
    %v475 = vld [vmem:[#allocation8 + $0x1f0] sm:$0xff]
    %v476 = vld [vmem:[#allocation8 + $0x1f8] sm:$0xff]
    %v477 = vld [vmem:[#allocation8 + $0x200] sm:$0xff]
    %v478 = vld [vmem:[#allocation8 + $0x208] sm:$0xff]
    %v479 = vld [vmem:[#allocation8 + $0x210] sm:$0xff]
    %v480 = vld [vmem:[#allocation8 + $0x218] sm:$0xff]
    %v481 = vld [vmem:[#allocation8 + $0x220] sm:$0xff]
    %v482 = vld [vmem:[#allocation8 + $0x228] sm:$0xff]
    %v483 = vld [vmem:[#allocation8 + $0x230] sm:$0xff]
    %v484 = vld [vmem:[#allocation8 + $0x238] sm:$0xff]
    %v485 = vld [vmem:[#allocation8 + $0x240] sm:$0xff]
    %v486 = vld [vmem:[#allocation8 + $0x248] sm:$0xff]
    %v487 = vld [vmem:[#allocation8 + $0x250] sm:$0xff]
    %v488 = vld [vmem:[#allocation8 + $0x258] sm:$0xff]
    %v489 = vld [vmem:[#allocation8 + $0x260] sm:$0xff]
    %v490 = vld [vmem:[#allocation8 + $0x268] sm:$0xff]
    %v491 = vld [vmem:[#allocation8 + $0x270] sm:$0xff]
    %v492 = vld [vmem:[#allocation8 + $0x278] sm:$0xff]
    %v493 = vld [vmem:[#allocation8 + $0x280] sm:$0xff]
    %v494 = vld [vmem:[#allocation8 + $0x288] sm:$0xff]
    %v495 = vld [vmem:[#allocation8 + $0x290] sm:$0xff]
    %v496 = vld [vmem:[#allocation8 + $0x298] sm:$0xff]
    %v497 = vld [vmem:[#allocation8 + $0x2a0] sm:$0xff]
    %v498 = vld [vmem:[#allocation8 + $0x2a8] sm:$0xff]
    %v499 = vld [vmem:[#allocation8 + $0x2b0] sm:$0xff]
    %v500 = vld [vmem:[#allocation8 + $0x2b8] sm:$0xff]
    %v501 = vld [vmem:[#allocation8 + $0x2c0] sm:$0xff]
    %v502 = vld [vmem:[#allocation8 + $0x2c8] sm:$0xff]
    %v503 = vld [vmem:[#allocation8 + $0x2d0] sm:$0xff]
    %v504 = vld [vmem:[#allocation8 + $0x2d8] sm:$0xff]
    %v505 = vld [vmem:[#allocation8 + $0x2e0] sm:$0xff]
    %v506 = vld [vmem:[#allocation8 + $0x2e8] sm:$0xff]
    %v507 = vld [vmem:[#allocation8 + $0x2f0] sm:$0xff]
    %v508 = vld [vmem:[#allocation8 + $0x2f8] sm:$0xff]
    %v509 = vld [vmem:[#allocation8 + $0x300] sm:$0xff]
    %v510 = vld [vmem:[#allocation8 + $0x308] sm:$0xff]
    %v511 = vld [vmem:[#allocation8 + $0x310] sm:$0xff]
    %v512 = vld [vmem:[#allocation8 + $0x318] sm:$0xff]
    %v513 = vld [vmem:[#allocation8 + $0x320] sm:$0xff]
    %v514 = vld [vmem:[#allocation8 + $0x328] sm:$0xff]
    %v515 = vld [vmem:[#allocation8 + $0x330] sm:$0xff]
    %v516 = vld [vmem:[#allocation8 + $0x338] sm:$0xff]
    %v517 = vld [vmem:[#allocation8 + $0x340] sm:$0xff]
    %v518 = vld [vmem:[#allocation8 + $0x348] sm:$0xff]
    %v519 = vld [vmem:[#allocation8 + $0x350] sm:$0xff]
    %v520 = vld [vmem:[#allocation8 + $0x358] sm:$0xff]
    %v521 = vld [vmem:[#allocation8 + $0x360] sm:$0xff]
    %v522 = vld [vmem:[#allocation8 + $0x368] sm:$0xff]
    %v523 = vld [vmem:[#allocation8 + $0x370] sm:$0xff]
    %v524 = vld [vmem:[#allocation8 + $0x378] sm:$0xff]
    %v525 = vld [vmem:[#allocation8 + $0x380] sm:$0xff]
    %v526 = vld [vmem:[#allocation8 + $0x388] sm:$0xff]
    %v527 = vld [vmem:[#allocation8 + $0x390] sm:$0xff]
    %v528 = vld [vmem:[#allocation8 + $0x398] sm:$0xff]
    %v529 = vld [vmem:[#allocation8 + $0x3a0] sm:$0xff]
    %v530 = vld [vmem:[#allocation8 + $0x3a8] sm:$0xff]
    %v531 = vld [vmem:[#allocation8 + $0x3b0] sm:$0xff]
    %v532 = vld [vmem:[#allocation8 + $0x3b8] sm:$0xff]
    %v533 = vld [vmem:[#allocation8 + $0x3c0] sm:$0xff]
    %v534 = vld [vmem:[#allocation8 + $0x3c8] sm:$0xff]
    %v535 = vld [vmem:[#allocation8 + $0x3d0] sm:$0xff]
    %v536 = vld [vmem:[#allocation8 + $0x3d8] sm:$0xff]
    %v537 = vld [vmem:[#allocation8 + $0x3e0] sm:$0xff]
    %v538 = vld [vmem:[#allocation8 + $0x3e8] sm:$0xff]
    %v539 = vld [vmem:[#allocation8 + $0x3f0] sm:$0xff]
    %v540 = vld [vmem:[#allocation8 + $0x3f8] sm:$0xff]
    %v669 = vunpack.c.l.b16 %v413
    %v670 = vunpack.c.h.b16 %v413
    %v671 = vunpack.c.l.b16 %v414
    %v672 = vunpack.c.h.b16 %v414
    %v673 = vunpack.c.l.b16 %v415
    %v674 = vunpack.c.h.b16 %v415
    %v675 = vunpack.c.l.b16 %v416
    %v676 = vunpack.c.h.b16 %v416
    %v677 = vunpack.c.l.b16 %v417
    %v678 = vunpack.c.h.b16 %v417
    %v679 = vunpack.c.l.b16 %v418
    %v680 = vunpack.c.h.b16 %v418
    %v681 = vunpack.c.l.b16 %v419
    %v682 = vunpack.c.h.b16 %v419
    %v683 = vunpack.c.l.b16 %v420
    %v684 = vunpack.c.h.b16 %v420
    %v685 = vunpack.c.l.b16 %v421
    %v686 = vunpack.c.h.b16 %v421
    %v687 = vunpack.c.l.b16 %v422
    %v688 = vunpack.c.h.b16 %v422
    %v689 = vunpack.c.l.b16 %v423
    %v690 = vunpack.c.h.b16 %v423
    %v691 = vunpack.c.l.b16 %v424
    %v692 = vunpack.c.h.b16 %v424
    %v693 = vunpack.c.l.b16 %v425
    %v694 = vunpack.c.h.b16 %v425
    %v695 = vunpack.c.l.b16 %v426
    %v696 = vunpack.c.h.b16 %v426
    %v697 = vunpack.c.l.b16 %v427
    %v698 = vunpack.c.h.b16 %v427
    %v699 = vunpack.c.l.b16 %v428
    %v700 = vunpack.c.h.b16 %v428
    %v701 = vunpack.c.l.b16 %v429
    %v702 = vunpack.c.h.b16 %v429
    %v703 = vunpack.c.l.b16 %v430
    %v704 = vunpack.c.h.b16 %v430
    %v705 = vunpack.c.l.b16 %v431
    %v706 = vunpack.c.h.b16 %v431
    %v707 = vunpack.c.l.b16 %v432
    %v708 = vunpack.c.h.b16 %v432
    %v709 = vunpack.c.l.b16 %v433
    %v710 = vunpack.c.h.b16 %v433
    %v711 = vunpack.c.l.b16 %v434
    %v712 = vunpack.c.h.b16 %v434
    %v713 = vunpack.c.l.b16 %v435
    %v714 = vunpack.c.h.b16 %v435
    %v715 = vunpack.c.l.b16 %v436
    %v716 = vunpack.c.h.b16 %v436
    %v717 = vunpack.c.l.b16 %v437
    %v718 = vunpack.c.h.b16 %v437
    %v719 = vunpack.c.l.b16 %v438
    %v720 = vunpack.c.h.b16 %v438
    %v721 = vunpack.c.l.b16 %v439
    %v722 = vunpack.c.h.b16 %v439
    %v723 = vunpack.c.l.b16 %v440
    %v724 = vunpack.c.h.b16 %v440
    %v725 = vunpack.c.l.b16 %v441
    %v726 = vunpack.c.h.b16 %v441
    %v727 = vunpack.c.l.b16 %v442
    %v728 = vunpack.c.h.b16 %v442
    %v729 = vunpack.c.l.b16 %v443
    %v730 = vunpack.c.h.b16 %v443
    %v731 = vunpack.c.l.b16 %v444
    %v732 = vunpack.c.h.b16 %v444
    %v733 = vunpack.c.l.b16 %v445
    %v734 = vunpack.c.h.b16 %v445
    %v735 = vunpack.c.l.b16 %v446
    %v736 = vunpack.c.h.b16 %v446
    %v737 = vunpack.c.l.b16 %v447
    %v738 = vunpack.c.h.b16 %v447
    %v739 = vunpack.c.l.b16 %v448
    %v740 = vunpack.c.h.b16 %v448
    %v741 = vunpack.c.l.b16 %v449
    %v742 = vunpack.c.h.b16 %v449
    %v743 = vunpack.c.l.b16 %v450
    %v744 = vunpack.c.h.b16 %v450
    %v745 = vunpack.c.l.b16 %v451
    %v746 = vunpack.c.h.b16 %v451
    %v747 = vunpack.c.l.b16 %v452
    %v748 = vunpack.c.h.b16 %v452
    %v749 = vunpack.c.l.b16 %v453
    %v750 = vunpack.c.h.b16 %v453
    %v751 = vunpack.c.l.b16 %v454
    %v752 = vunpack.c.h.b16 %v454
    %v753 = vunpack.c.l.b16 %v455
    %v754 = vunpack.c.h.b16 %v455
    %v755 = vunpack.c.l.b16 %v456
    %v756 = vunpack.c.h.b16 %v456
    %v757 = vunpack.c.l.b16 %v457
    %v758 = vunpack.c.h.b16 %v457
    %v759 = vunpack.c.l.b16 %v458
    %v760 = vunpack.c.h.b16 %v458
    %v761 = vunpack.c.l.b16 %v459
    %v762 = vunpack.c.h.b16 %v459
    %v763 = vunpack.c.l.b16 %v460
    %v764 = vunpack.c.h.b16 %v460
    %v765 = vunpack.c.l.b16 %v461
    %v766 = vunpack.c.h.b16 %v461
    %v767 = vunpack.c.l.b16 %v462
    %v768 = vunpack.c.h.b16 %v462
    %v769 = vunpack.c.l.b16 %v463
    %v770 = vunpack.c.h.b16 %v463
    %v771 = vunpack.c.l.b16 %v464
    %v772 = vunpack.c.h.b16 %v464
    %v773 = vunpack.c.l.b16 %v465
    %v774 = vunpack.c.h.b16 %v465
    %v775 = vunpack.c.l.b16 %v466
    %v776 = vunpack.c.h.b16 %v466
    %v777 = vunpack.c.l.b16 %v467
    %v778 = vunpack.c.h.b16 %v467
    %v779 = vunpack.c.l.b16 %v468
    %v780 = vunpack.c.h.b16 %v468
    %v781 = vunpack.c.l.b16 %v469
    %v782 = vunpack.c.h.b16 %v469
    %v783 = vunpack.c.l.b16 %v470
    %v784 = vunpack.c.h.b16 %v470
    %v785 = vunpack.c.l.b16 %v471
    %v786 = vunpack.c.h.b16 %v471
    %v787 = vunpack.c.l.b16 %v472
    %v788 = vunpack.c.h.b16 %v472
    %v789 = vunpack.c.l.b16 %v473
    %v790 = vunpack.c.h.b16 %v473
    %v791 = vunpack.c.l.b16 %v474
    %v792 = vunpack.c.h.b16 %v474
    %v793 = vunpack.c.l.b16 %v475
    %v794 = vunpack.c.h.b16 %v475
    %v795 = vunpack.c.l.b16 %v476
    %v796 = vunpack.c.h.b16 %v476
    %v797 = vunpack.c.l.b16 %v477
    %v798 = vunpack.c.h.b16 %v477
    %v799 = vunpack.c.l.b16 %v478
    %v800 = vunpack.c.h.b16 %v478
    %v801 = vunpack.c.l.b16 %v479
    %v802 = vunpack.c.h.b16 %v479
    %v803 = vunpack.c.l.b16 %v480
    %v804 = vunpack.c.h.b16 %v480
    %v805 = vunpack.c.l.b16 %v481
    %v806 = vunpack.c.h.b16 %v481
    %v807 = vunpack.c.l.b16 %v482
    %v808 = vunpack.c.h.b16 %v482
    %v809 = vunpack.c.l.b16 %v483
    %v810 = vunpack.c.h.b16 %v483
    %v811 = vunpack.c.l.b16 %v484
    %v812 = vunpack.c.h.b16 %v484
    %v813 = vunpack.c.l.b16 %v485
    %v814 = vunpack.c.h.b16 %v485
    %v815 = vunpack.c.l.b16 %v486
    %v816 = vunpack.c.h.b16 %v486
    %v817 = vunpack.c.l.b16 %v487
    %v818 = vunpack.c.h.b16 %v487
    %v819 = vunpack.c.l.b16 %v488
    %v820 = vunpack.c.h.b16 %v488
    %v821 = vunpack.c.l.b16 %v489
    %v822 = vunpack.c.h.b16 %v489
    %v823 = vunpack.c.l.b16 %v490
    %v824 = vunpack.c.h.b16 %v490
    %v825 = vunpack.c.l.b16 %v491
    %v826 = vunpack.c.h.b16 %v491
    %v827 = vunpack.c.l.b16 %v492
    %v828 = vunpack.c.h.b16 %v492
    %v829 = vunpack.c.l.b16 %v493
    %v830 = vunpack.c.h.b16 %v493
    %v831 = vunpack.c.l.b16 %v494
    %v832 = vunpack.c.h.b16 %v494
    %v833 = vunpack.c.l.b16 %v495
    %v834 = vunpack.c.h.b16 %v495
    %v835 = vunpack.c.l.b16 %v496
    %v836 = vunpack.c.h.b16 %v496
    %v837 = vunpack.c.l.b16 %v497
    %v838 = vunpack.c.h.b16 %v497
    %v839 = vunpack.c.l.b16 %v498
    %v840 = vunpack.c.h.b16 %v498
    %v841 = vunpack.c.l.b16 %v499
    %v842 = vunpack.c.h.b16 %v499
    %v843 = vunpack.c.l.b16 %v500
    %v844 = vunpack.c.h.b16 %v500
    %v845 = vunpack.c.l.b16 %v501
    %v846 = vunpack.c.h.b16 %v501
    %v847 = vunpack.c.l.b16 %v502
    %v848 = vunpack.c.h.b16 %v502
    %v849 = vunpack.c.l.b16 %v503
    %v850 = vunpack.c.h.b16 %v503
    %v851 = vunpack.c.l.b16 %v504
    %v852 = vunpack.c.h.b16 %v504
    %v853 = vunpack.c.l.b16 %v505
    %v854 = vunpack.c.h.b16 %v505
    %v855 = vunpack.c.l.b16 %v506
    %v856 = vunpack.c.h.b16 %v506
    %v857 = vunpack.c.l.b16 %v507
    %v858 = vunpack.c.h.b16 %v507
    %v859 = vunpack.c.l.b16 %v508
    %v860 = vunpack.c.h.b16 %v508
    %v861 = vunpack.c.l.b16 %v509
    %v862 = vunpack.c.h.b16 %v509
    %v863 = vunpack.c.l.b16 %v510
    %v864 = vunpack.c.h.b16 %v510
    %v865 = vunpack.c.l.b16 %v511
    %v866 = vunpack.c.h.b16 %v511
    %v867 = vunpack.c.l.b16 %v512
    %v868 = vunpack.c.h.b16 %v512
    %v869 = vunpack.c.l.b16 %v513
    %v870 = vunpack.c.h.b16 %v513
    %v871 = vunpack.c.l.b16 %v514
    %v872 = vunpack.c.h.b16 %v514
    %v873 = vunpack.c.l.b16 %v515
    %v874 = vunpack.c.h.b16 %v515
    %v875 = vunpack.c.l.b16 %v516
    %v876 = vunpack.c.h.b16 %v516
    %v877 = vunpack.c.l.b16 %v517
    %v878 = vunpack.c.h.b16 %v517
    %v879 = vunpack.c.l.b16 %v518
    %v880 = vunpack.c.h.b16 %v518
    %v881 = vunpack.c.l.b16 %v519
    %v882 = vunpack.c.h.b16 %v519
    %v883 = vunpack.c.l.b16 %v520
    %v884 = vunpack.c.h.b16 %v520
    %v885 = vunpack.c.l.b16 %v521
    %v886 = vunpack.c.h.b16 %v521
    %v887 = vunpack.c.l.b16 %v522
    %v888 = vunpack.c.h.b16 %v522
    %v889 = vunpack.c.l.b16 %v523
    %v890 = vunpack.c.h.b16 %v523
    %v891 = vunpack.c.l.b16 %v524
    %v892 = vunpack.c.h.b16 %v524
    %v893 = vunpack.c.l.b16 %v525
    %v894 = vunpack.c.h.b16 %v525
    %v895 = vunpack.c.l.b16 %v526
    %v896 = vunpack.c.h.b16 %v526
    %v897 = vunpack.c.l.b16 %v527
    %v898 = vunpack.c.h.b16 %v527
    %v899 = vunpack.c.l.b16 %v528
    %v900 = vunpack.c.h.b16 %v528
    %v901 = vunpack.c.l.b16 %v529
    %v902 = vunpack.c.h.b16 %v529
    %v903 = vunpack.c.l.b16 %v530
    %v904 = vunpack.c.h.b16 %v530
    %v905 = vunpack.c.l.b16 %v531
    %v906 = vunpack.c.h.b16 %v531
    %v907 = vunpack.c.l.b16 %v532
    %v908 = vunpack.c.h.b16 %v532
    %v909 = vunpack.c.l.b16 %v533
    %v910 = vunpack.c.h.b16 %v533
    %v911 = vunpack.c.l.b16 %v534
    %v912 = vunpack.c.h.b16 %v534
    %v913 = vunpack.c.l.b16 %v535
    %v914 = vunpack.c.h.b16 %v535
    %v915 = vunpack.c.l.b16 %v536
    %v916 = vunpack.c.h.b16 %v536
    %v917 = vunpack.c.l.b16 %v537
    %v918 = vunpack.c.h.b16 %v537
    %v919 = vunpack.c.l.b16 %v538
    %v920 = vunpack.c.h.b16 %v538
    %v921 = vunpack.c.l.b16 %v539
    %v922 = vunpack.c.h.b16 %v539
    %v923 = vunpack.c.l.b16 %v540
    %v924 = vunpack.c.h.b16 %v540
    %v925 = vpack.c.b16 %v673, %v669
    %v926 = vpack.c.b16 %v674, %v670
    %v927 = vpack.c.b16 %v675, %v671
    %v928 = vpack.c.b16 %v676, %v672
    %v929 = vpack.c.b16 %v681, %v677
    %v930 = vpack.c.b16 %v682, %v678
    %v931 = vpack.c.b16 %v683, %v679
    %v932 = vpack.c.b16 %v684, %v680
    %v933 = vpack.c.b16 %v689, %v685
    %v934 = vpack.c.b16 %v690, %v686
    %v935 = vpack.c.b16 %v691, %v687
    %v936 = vpack.c.b16 %v692, %v688
    %v937 = vpack.c.b16 %v697, %v693
    %v938 = vpack.c.b16 %v698, %v694
    %v939 = vpack.c.b16 %v699, %v695
    %v940 = vpack.c.b16 %v700, %v696
    %v941 = vpack.c.b16 %v705, %v701
    %v942 = vpack.c.b16 %v706, %v702
    %v943 = vpack.c.b16 %v707, %v703
    %v944 = vpack.c.b16 %v708, %v704
    %v945 = vpack.c.b16 %v713, %v709
    %v946 = vpack.c.b16 %v714, %v710
    %v947 = vpack.c.b16 %v715, %v711
    %v948 = vpack.c.b16 %v716, %v712
    %v949 = vpack.c.b16 %v721, %v717
    %v950 = vpack.c.b16 %v722, %v718
    %v951 = vpack.c.b16 %v723, %v719
    %v952 = vpack.c.b16 %v724, %v720
    %v953 = vpack.c.b16 %v729, %v725
    %v954 = vpack.c.b16 %v730, %v726
    %v955 = vpack.c.b16 %v731, %v727
    %v956 = vpack.c.b16 %v732, %v728
    %v957 = vpack.c.b16 %v737, %v733
    %v958 = vpack.c.b16 %v738, %v734
    %v959 = vpack.c.b16 %v739, %v735
    %v960 = vpack.c.b16 %v740, %v736
    %v961 = vpack.c.b16 %v745, %v741
    %v962 = vpack.c.b16 %v746, %v742
    %v963 = vpack.c.b16 %v747, %v743
    %v964 = vpack.c.b16 %v748, %v744
    %v965 = vpack.c.b16 %v753, %v749
    %v966 = vpack.c.b16 %v754, %v750
    %v967 = vpack.c.b16 %v755, %v751
    %v968 = vpack.c.b16 %v756, %v752
    %v969 = vpack.c.b16 %v761, %v757
    %v970 = vpack.c.b16 %v762, %v758
    %v971 = vpack.c.b16 %v763, %v759
    %v972 = vpack.c.b16 %v764, %v760
    %v973 = vpack.c.b16 %v769, %v765
    %v974 = vpack.c.b16 %v770, %v766
    %v975 = vpack.c.b16 %v771, %v767
    %v976 = vpack.c.b16 %v772, %v768
    %v977 = vpack.c.b16 %v777, %v773
    %v978 = vpack.c.b16 %v778, %v774
    %v979 = vpack.c.b16 %v779, %v775
    %v980 = vpack.c.b16 %v780, %v776
    %v981 = vpack.c.b16 %v785, %v781
    %v982 = vpack.c.b16 %v786, %v782
    %v983 = vpack.c.b16 %v787, %v783
    %v984 = vpack.c.b16 %v788, %v784
    %v985 = vpack.c.b16 %v793, %v789
    %v986 = vpack.c.b16 %v794, %v790
    %v987 = vpack.c.b16 %v795, %v791
    %v988 = vpack.c.b16 %v796, %v792
    %v989 = vpack.c.b16 %v801, %v797
    %v990 = vpack.c.b16 %v802, %v798
    %v991 = vpack.c.b16 %v803, %v799
    %v992 = vpack.c.b16 %v804, %v800
    %v993 = vpack.c.b16 %v809, %v805
    %v994 = vpack.c.b16 %v810, %v806
    %v995 = vpack.c.b16 %v811, %v807
    %v996 = vpack.c.b16 %v812, %v808
    %v997 = vpack.c.b16 %v817, %v813
    %v998 = vpack.c.b16 %v818, %v814
    %v999 = vpack.c.b16 %v819, %v815
    %v1000 = vpack.c.b16 %v820, %v816
    %v1001 = vpack.c.b16 %v825, %v821
    %v1002 = vpack.c.b16 %v826, %v822
    %v1003 = vpack.c.b16 %v827, %v823
    %v1004 = vpack.c.b16 %v828, %v824
    %v1005 = vpack.c.b16 %v833, %v829
    %v1006 = vpack.c.b16 %v834, %v830
    %v1007 = vpack.c.b16 %v835, %v831
    %v1008 = vpack.c.b16 %v836, %v832
    %v1009 = vpack.c.b16 %v841, %v837
    %v1010 = vpack.c.b16 %v842, %v838
    %v1011 = vpack.c.b16 %v843, %v839
    %v1012 = vpack.c.b16 %v844, %v840
    %v1013 = vpack.c.b16 %v849, %v845
    %v1014 = vpack.c.b16 %v850, %v846
    %v1015 = vpack.c.b16 %v851, %v847
    %v1016 = vpack.c.b16 %v852, %v848
    %v1017 = vpack.c.b16 %v857, %v853
    %v1018 = vpack.c.b16 %v858, %v854
    %v1019 = vpack.c.b16 %v859, %v855
    %v1020 = vpack.c.b16 %v860, %v856
    %v1021 = vpack.c.b16 %v865, %v861
    %v1022 = vpack.c.b16 %v866, %v862
    %v1023 = vpack.c.b16 %v867, %v863
    %v1024 = vpack.c.b16 %v868, %v864
    %v1025 = vpack.c.b16 %v873, %v869
    %v1026 = vpack.c.b16 %v874, %v870
    %v1027 = vpack.c.b16 %v875, %v871
    %v1028 = vpack.c.b16 %v876, %v872
    %v1029 = vpack.c.b16 %v881, %v877
    %v1030 = vpack.c.b16 %v882, %v878
    %v1031 = vpack.c.b16 %v883, %v879
    %v1032 = vpack.c.b16 %v884, %v880
    %v1033 = vpack.c.b16 %v889, %v885
    %v1034 = vpack.c.b16 %v890, %v886
    %v1035 = vpack.c.b16 %v891, %v887
    %v1036 = vpack.c.b16 %v892, %v888
    %v1037 = vpack.c.b16 %v897, %v893
    %v1038 = vpack.c.b16 %v898, %v894
    %v1039 = vpack.c.b16 %v899, %v895
    %v1040 = vpack.c.b16 %v900, %v896
    %v1041 = vpack.c.b16 %v905, %v901
    %v1042 = vpack.c.b16 %v906, %v902
    %v1043 = vpack.c.b16 %v907, %v903
    %v1044 = vpack.c.b16 %v908, %v904
    %v1045 = vpack.c.b16 %v913, %v909
    %v1046 = vpack.c.b16 %v914, %v910
    %v1047 = vpack.c.b16 %v915, %v911
    %v1048 = vpack.c.b16 %v916, %v912
    %v1049 = vpack.c.b16 %v921, %v917
    %v1050 = vpack.c.b16 %v922, %v918
    %v1051 = vpack.c.b16 %v923, %v919
    %v1052 = vpack.c.b16 %v924, %v920
    %1181 = vmatpush.bf16.msra.mxu0 %v953
    %1182 = vmatpush.bf16.msra.mxu0 %v949
    %1183 = vmatpush.bf16.msra.mxu0 %v945
    %1184 = vmatpush.bf16.msra.mxu0 %v941
    %1185 = vmatpush.bf16.msra.mxu0 %v937
    %1186 = vmatpush.bf16.msra.mxu0 %v933
    %1187 = vmatpush.bf16.msra.mxu0 %v929
    %1188 = vmatpush.bf16.msra.mxu0 %v925
    %1189 = vmatmul.bf16.gmra.mxu0 %v409
    %v1190 = vpop.f32.mrf.mxu0
    %v1191 = vadd.f32 0.0, %v1190
    %v1192 = vpop.f32.mrf.mxu0
    %v1193 = vadd.f32 0.0, %v1192
    %1194 = vdwg.mxu0
    %1195 = vmatpush.bf16.msra.mxu0 %v985
    %1196 = vmatpush.bf16.msra.mxu0 %v981
    %1197 = vmatpush.bf16.msra.mxu0 %v977
    %1198 = vmatpush.bf16.msra.mxu0 %v973
    %1199 = vmatpush.bf16.msra.mxu0 %v969
    %1200 = vmatpush.bf16.msra.mxu0 %v965
    %1201 = vmatpush.bf16.msra.mxu0 %v961
    %1202 = vmatpush.bf16.msra.mxu0 %v957
    %1203 = vmatmul.bf16.gmra.mxu0 %v410
    %v1204 = vpop.f32.mrf.mxu0
    %v1205 = vadd.f32 %v1191, %v1204
    %v1206 = vpop.f32.mrf.mxu0
    %v1207 = vadd.f32 %v1193, %v1206
    %1208 = vdwg.mxu0
    %1209 = vmatpush.bf16.msra.mxu0 %v1017
    %1210 = vmatpush.bf16.msra.mxu0 %v1013
    %1211 = vmatpush.bf16.msra.mxu0 %v1009
    %1212 = vmatpush.bf16.msra.mxu0 %v1005
    %1213 = vmatpush.bf16.msra.mxu0 %v1001
    %1214 = vmatpush.bf16.msra.mxu0 %v997
    %1215 = vmatpush.bf16.msra.mxu0 %v993
    %1216 = vmatpush.bf16.msra.mxu0 %v989
    %1217 = vmatmul.bf16.gmra.mxu0 %v411
    %v1218 = vpop.f32.mrf.mxu0
    %v1219 = vadd.f32 %v1205, %v1218
    %v1220 = vpop.f32.mrf.mxu0
    %v1221 = vadd.f32 %v1207, %v1220
    %1222 = vdwg.mxu0
    %1223 = vmatpush.bf16.msra.mxu0 %v1049
    %1224 = vmatpush.bf16.msra.mxu0 %v1045
    %1225 = vmatpush.bf16.msra.mxu0 %v1041
    %1226 = vmatpush.bf16.msra.mxu0 %v1037
    %1227 = vmatpush.bf16.msra.mxu0 %v1033
    %1228 = vmatpush.bf16.msra.mxu0 %v1029
    %1229 = vmatpush.bf16.msra.mxu0 %v1025
    %1230 = vmatpush.bf16.msra.mxu0 %v1021
    %1231 = vmatmul.bf16.gmra.mxu0 %v412
    %v1232 = vpop.f32.mrf.mxu0
    %v1233 = vadd.f32 %v1219, %v1232
    %v1234 = vpop.f32.mrf.mxu0
    %v1235 = vadd.f32 %v1221, %v1234
    %1236 = vdwg.mxu0
    %1237 = vmatpush.bf16.msra.mxu0 %v954
    %1238 = vmatpush.bf16.msra.mxu0 %v950
    %1239 = vmatpush.bf16.msra.mxu0 %v946
    %1240 = vmatpush.bf16.msra.mxu0 %v942
    %1241 = vmatpush.bf16.msra.mxu0 %v938
    %1242 = vmatpush.bf16.msra.mxu0 %v934
    %1243 = vmatpush.bf16.msra.mxu0 %v930
    %1244 = vmatpush.bf16.msra.mxu0 %v926
    %1245 = vmatmul.bf16.gmra.mxu0 %v409
    %v1246 = vpop.f32.mrf.mxu0
    %v1247 = vadd.f32 0.0, %v1246
    %v1248 = vpop.f32.mrf.mxu0
    %v1249 = vadd.f32 0.0, %v1248
    %1250 = vdwg.mxu0
    %1251 = vmatpush.bf16.msra.mxu0 %v986
    %1252 = vmatpush.bf16.msra.mxu0 %v982
    %1253 = vmatpush.bf16.msra.mxu0 %v978
    %1254 = vmatpush.bf16.msra.mxu0 %v974
    %1255 = vmatpush.bf16.msra.mxu0 %v970
    %1256 = vmatpush.bf16.msra.mxu0 %v966
    %1257 = vmatpush.bf16.msra.mxu0 %v962
    %1258 = vmatpush.bf16.msra.mxu0 %v958
    %1259 = vmatmul.bf16.gmra.mxu0 %v410
    %v1260 = vpop.f32.mrf.mxu0
    %v1261 = vadd.f32 %v1247, %v1260
    %v1262 = vpop.f32.mrf.mxu0
    %v1263 = vadd.f32 %v1249, %v1262
    %1264 = vdwg.mxu0
    %1265 = vmatpush.bf16.msra.mxu0 %v1018
    %1266 = vmatpush.bf16.msra.mxu0 %v1014
    %1267 = vmatpush.bf16.msra.mxu0 %v1010
    %1268 = vmatpush.bf16.msra.mxu0 %v1006
    %1269 = vmatpush.bf16.msra.mxu0 %v1002
    %1270 = vmatpush.bf16.msra.mxu0 %v998
    %1271 = vmatpush.bf16.msra.mxu0 %v994
    %1272 = vmatpush.bf16.msra.mxu0 %v990
    %1273 = vmatmul.bf16.gmra.mxu0 %v411
    %v1274 = vpop.f32.mrf.mxu0
    %v1275 = vadd.f32 %v1261, %v1274
    %v1276 = vpop.f32.mrf.mxu0
    %v1277 = vadd.f32 %v1263, %v1276
    %1278 = vdwg.mxu0
    %1279 = vmatpush.bf16.msra.mxu0 %v1050
    %1280 = vmatpush.bf16.msra.mxu0 %v1046
    %1281 = vmatpush.bf16.msra.mxu0 %v1042
    %1282 = vmatpush.bf16.msra.mxu0 %v1038
    %1283 = vmatpush.bf16.msra.mxu0 %v1034
    %1284 = vmatpush.bf16.msra.mxu0 %v1030
    %1285 = vmatpush.bf16.msra.mxu0 %v1026
    %1286 = vmatpush.bf16.msra.mxu0 %v1022
    %1287 = vmatmul.bf16.gmra.mxu0 %v412
    %v1288 = vpop.f32.mrf.mxu0
    %v1289 = vadd.f32 %v1275, %v1288
    %v1290 = vpop.f32.mrf.mxu0
    %v1291 = vadd.f32 %v1277, %v1290
    %1292 = vdwg.mxu0
    %1293 = vmatpush.bf16.msra.mxu0 %v955
    %1294 = vmatpush.bf16.msra.mxu0 %v951
    %1295 = vmatpush.bf16.msra.mxu0 %v947
    %1296 = vmatpush.bf16.msra.mxu0 %v943
    %1297 = vmatpush.bf16.msra.mxu0 %v939
    %1298 = vmatpush.bf16.msra.mxu0 %v935
    %1299 = vmatpush.bf16.msra.mxu0 %v931
    %1300 = vmatpush.bf16.msra.mxu0 %v927
    %1301 = vmatmul.bf16.gmra.mxu0 %v409
    %v1302 = vpop.f32.mrf.mxu0
    %v1303 = vadd.f32 0.0, %v1302
    %v1304 = vpop.f32.mrf.mxu0
    %v1305 = vadd.f32 0.0, %v1304
    %1306 = vdwg.mxu0
    %1307 = vmatpush.bf16.msra.mxu0 %v987
    %1308 = vmatpush.bf16.msra.mxu0 %v983
    %1309 = vmatpush.bf16.msra.mxu0 %v979
    %1310 = vmatpush.bf16.msra.mxu0 %v975
    %1311 = vmatpush.bf16.msra.mxu0 %v971
    %1312 = vmatpush.bf16.msra.mxu0 %v967
    %1313 = vmatpush.bf16.msra.mxu0 %v963
    %1314 = vmatpush.bf16.msra.mxu0 %v959
    %1315 = vmatmul.bf16.gmra.mxu0 %v410
    %v1316 = vpop.f32.mrf.mxu0
    %v1317 = vadd.f32 %v1303, %v1316
    %v1318 = vpop.f32.mrf.mxu0
    %v1319 = vadd.f32 %v1305, %v1318
    %1320 = vdwg.mxu0
    %1321 = vmatpush.bf16.msra.mxu0 %v1019
    %1322 = vmatpush.bf16.msra.mxu0 %v1015
    %1323 = vmatpush.bf16.msra.mxu0 %v1011
    %1324 = vmatpush.bf16.msra.mxu0 %v1007
    %1325 = vmatpush.bf16.msra.mxu0 %v1003
    %1326 = vmatpush.bf16.msra.mxu0 %v999
    %1327 = vmatpush.bf16.msra.mxu0 %v995
    %1328 = vmatpush.bf16.msra.mxu0 %v991
    %1329 = vmatmul.bf16.gmra.mxu0 %v411
    %v1330 = vpop.f32.mrf.mxu0
    %v1331 = vadd.f32 %v1317, %v1330
    %v1332 = vpop.f32.mrf.mxu0
    %v1333 = vadd.f32 %v1319, %v1332
    %1334 = vdwg.mxu0
    %1335 = vmatpush.bf16.msra.mxu0 %v1051
    %1336 = vmatpush.bf16.msra.mxu0 %v1047
    %1337 = vmatpush.bf16.msra.mxu0 %v1043
    %1338 = vmatpush.bf16.msra.mxu0 %v1039
    %1339 = vmatpush.bf16.msra.mxu0 %v1035
    %1340 = vmatpush.bf16.msra.mxu0 %v1031
    %1341 = vmatpush.bf16.msra.mxu0 %v1027
    %1342 = vmatpush.bf16.msra.mxu0 %v1023
    %1343 = vmatmul.bf16.gmra.mxu0 %v412
    %v1344 = vpop.f32.mrf.mxu0
    %v1345 = vadd.f32 %v1331, %v1344
    %v1346 = vpop.f32.mrf.mxu0
    %v1347 = vadd.f32 %v1333, %v1346
    %1348 = vdwg.mxu0
    %1349 = vmatpush.bf16.msra.mxu0 %v956
    %1350 = vmatpush.bf16.msra.mxu0 %v952
    %1351 = vmatpush.bf16.msra.mxu0 %v948
    %1352 = vmatpush.bf16.msra.mxu0 %v944
    %1353 = vmatpush.bf16.msra.mxu0 %v940
    %1354 = vmatpush.bf16.msra.mxu0 %v936
    %1355 = vmatpush.bf16.msra.mxu0 %v932
    %1356 = vmatpush.bf16.msra.mxu0 %v928
    %1357 = vmatmul.bf16.gmra.mxu0 %v409
    %v1358 = vpop.f32.mrf.mxu0
    %v1359 = vadd.f32 0.0, %v1358
    %v1360 = vpop.f32.mrf.mxu0
    %v1361 = vadd.f32 0.0, %v1360
    %1362 = vdwg.mxu0
    %1363 = vmatpush.bf16.msra.mxu0 %v988
    %1364 = vmatpush.bf16.msra.mxu0 %v984
    %1365 = vmatpush.bf16.msra.mxu0 %v980
    %1366 = vmatpush.bf16.msra.mxu0 %v976
    %1367 = vmatpush.bf16.msra.mxu0 %v972
    %1368 = vmatpush.bf16.msra.mxu0 %v968
    %1369 = vmatpush.bf16.msra.mxu0 %v964
    %1370 = vmatpush.bf16.msra.mxu0 %v960
    %1371 = vmatmul.bf16.gmra.mxu0 %v410
    %v1372 = vpop.f32.mrf.mxu0
    %v1373 = vadd.f32 %v1359, %v1372
    %v1374 = vpop.f32.mrf.mxu0
    %v1375 = vadd.f32 %v1361, %v1374
    %1376 = vdwg.mxu0
    %1377 = vmatpush.bf16.msra.mxu0 %v1020
    %1378 = vmatpush.bf16.msra.mxu0 %v1016
    %1379 = vmatpush.bf16.msra.mxu0 %v1012
    %1380 = vmatpush.bf16.msra.mxu0 %v1008
    %1381 = vmatpush.bf16.msra.mxu0 %v1004
    %1382 = vmatpush.bf16.msra.mxu0 %v1000
    %1383 = vmatpush.bf16.msra.mxu0 %v996
    %1384 = vmatpush.bf16.msra.mxu0 %v992
    %1385 = vmatmul.bf16.gmra.mxu0 %v411
    %v1386 = vpop.f32.mrf.mxu0
    %v1387 = vadd.f32 %v1373, %v1386
    %v1388 = vpop.f32.mrf.mxu0
    %v1389 = vadd.f32 %v1375, %v1388
    %1390 = vdwg.mxu0
    %1391 = vmatpush.bf16.msra.mxu0 %v1052
    %1392 = vmatpush.bf16.msra.mxu0 %v1048
    %1393 = vmatpush.bf16.msra.mxu0 %v1044
    %1394 = vmatpush.bf16.msra.mxu0 %v1040
    %1395 = vmatpush.bf16.msra.mxu0 %v1036
    %1396 = vmatpush.bf16.msra.mxu0 %v1032
    %1397 = vmatpush.bf16.msra.mxu0 %v1028
    %1398 = vmatpush.bf16.msra.mxu0 %v1024
    %1399 = vmatmul.bf16.gmra.mxu0 %v412
    %v1400 = vpop.f32.mrf.mxu0
    %v1401 = vadd.f32 %v1387, %v1400
    %v1402 = vpop.f32.mrf.mxu0
    %v1403 = vadd.f32 %v1389, %v1402
    %1404 = vdwg.mxu0
    %v1405 = vpack.c.bf16 %v1235, %v1233
    %v1406 = vpack.c.bf16 %v1291, %v1289
    %v1407 = vpack.c.bf16 %v1347, %v1345
    %v1408 = vpack.c.bf16 %v1403, %v1401
    %1409 = vmatpush.bf16.msra.mxu0 0
    %1410 = vmatpush.bf16.msra.mxu0 0
    %1411 = vmatpush.bf16.msra.mxu0 0
    %1412 = vmatpush.bf16.msra.mxu0 0
    %1413 = vmatpush.bf16.msra.mxu0 0
    %1414 = vmatpush.bf16.msra.mxu0 0
    %1415 = vmatpush.bf16.msra.mxu0 0
    %1416 = vmatpush.bf16.msra.mxu0 %v1405
    %1417 = vmatmul.bf16.gmra.mxu0 %v168
    %v1418 = vpop.f32.mrf.mxu0
    %v1419 = vadd.f32 0.0, %v1418
    %v1420 = vpop.f32.mrf.mxu0
    %v1421 = vadd.f32 0.0, %v1420
    %1422 = vdwg.mxu0
    %1423 = vmatpush.bf16.msra.mxu0 0
    %1424 = vmatpush.bf16.msra.mxu0 0
    %1425 = vmatpush.bf16.msra.mxu0 0
    %1426 = vmatpush.bf16.msra.mxu0 0
    %1427 = vmatpush.bf16.msra.mxu0 0
    %1428 = vmatpush.bf16.msra.mxu0 0
    %1429 = vmatpush.bf16.msra.mxu0 0
    %1430 = vmatpush.bf16.msra.mxu0 %v1406
    %1431 = vmatmul.bf16.gmra.mxu0 %v168
    %v1432 = vpop.f32.mrf.mxu0
    %v1433 = vadd.f32 0.0, %v1432
    %v1434 = vpop.f32.mrf.mxu0
    %v1435 = vadd.f32 0.0, %v1434
    %1436 = vdwg.mxu0
    %1437 = vmatpush.bf16.msra.mxu0 0
    %1438 = vmatpush.bf16.msra.mxu0 0
    %1439 = vmatpush.bf16.msra.mxu0 0
    %1440 = vmatpush.bf16.msra.mxu0 0
    %1441 = vmatpush.bf16.msra.mxu0 0
    %1442 = vmatpush.bf16.msra.mxu0 0
    %1443 = vmatpush.bf16.msra.mxu0 0
    %1444 = vmatpush.bf16.msra.mxu0 %v1407
    %1445 = vmatmul.bf16.gmra.mxu0 %v168
    %v1446 = vpop.f32.mrf.mxu0
    %v1447 = vadd.f32 0.0, %v1446
    %v1448 = vpop.f32.mrf.mxu0
    %v1449 = vadd.f32 0.0, %v1448
    %1450 = vdwg.mxu0
    %1451 = vmatpush.bf16.msra.mxu0 0
    %1452 = vmatpush.bf16.msra.mxu0 0
    %1453 = vmatpush.bf16.msra.mxu0 0
    %1454 = vmatpush.bf16.msra.mxu0 0
    %1455 = vmatpush.bf16.msra.mxu0 0
    %1456 = vmatpush.bf16.msra.mxu0 0
    %1457 = vmatpush.bf16.msra.mxu0 0
    %1458 = vmatpush.bf16.msra.mxu0 %v1408
    %1459 = vmatmul.bf16.gmra.mxu0 %v168
    %v1460 = vpop.f32.mrf.mxu0
    %v1461 = vadd.f32 0.0, %v1460
    %v1462 = vpop.f32.mrf.mxu0
    %v1463 = vadd.f32 0.0, %v1462
    %1464 = vdwg.mxu0
    %v1465 = vmax.f32 %v1419, 0.0
    %v1466 = vmax.f32 %v1433, 0.0
    %v1467 = vmax.f32 %v1447, 0.0
    %v1468 = vmax.f32 %v1461, 0.0
    %v1469 = vmax.f32 %v1421, 0.0
    %v1470 = vmax.f32 %v1435, 0.0
    %v1471 = vmax.f32 %v1449, 0.0
    %v1472 = vmax.f32 %v1463, 0.0
    %v1473 = vpack.c.bf16 %v1469, %v1465
    %v1474 = vpack.c.bf16 %v1470, %v1466
    %v1475 = vpack.c.bf16 %v1471, %v1467
    %v1476 = vpack.c.bf16 %v1472, %v1468
    %v1477 = vld [vmem:[#allocation10] sm:$0xff]
    %v1478 = vld [vmem:[#allocation10 + $0x8] sm:$0xff]
    %v1479 = vld [vmem:[#allocation10 + $0x10] sm:$0xff]
    %v1480 = vld [vmem:[#allocation10 + $0x18] sm:$0xff]
    %v1481 = vld [vmem:[#allocation10 + $0x20] sm:$0xff]
    %v1482 = vld [vmem:[#allocation10 + $0x28] sm:$0xff]
    %v1483 = vld [vmem:[#allocation10 + $0x30] sm:$0xff]
    %v1484 = vld [vmem:[#allocation10 + $0x38] sm:$0xff]
    %v1485 = vld [vmem:[#allocation10 + $0x40] sm:$0xff]
    %v1486 = vld [vmem:[#allocation10 + $0x48] sm:$0xff]
    %v1487 = vld [vmem:[#allocation10 + $0x50] sm:$0xff]
    %v1488 = vld [vmem:[#allocation10 + $0x58] sm:$0xff]
    %v1489 = vld [vmem:[#allocation10 + $0x60] sm:$0xff]
    %v1490 = vld [vmem:[#allocation10 + $0x68] sm:$0xff]
    %v1491 = vld [vmem:[#allocation10 + $0x70] sm:$0xff]
    %v1492 = vld [vmem:[#allocation10 + $0x78] sm:$0xff]
    %v1493 = vld [vmem:[#allocation10 + $0x80] sm:$0xff]
    %v1494 = vld [vmem:[#allocation10 + $0x88] sm:$0xff]
    %v1495 = vld [vmem:[#allocation10 + $0x90] sm:$0xff]
    %v1496 = vld [vmem:[#allocation10 + $0x98] sm:$0xff]
    %v1497 = vld [vmem:[#allocation10 + $0xa0] sm:$0xff]
    %v1498 = vld [vmem:[#allocation10 + $0xa8] sm:$0xff]
    %v1499 = vld [vmem:[#allocation10 + $0xb0] sm:$0xff]
    %v1500 = vld [vmem:[#allocation10 + $0xb8] sm:$0xff]
    %v1501 = vld [vmem:[#allocation10 + $0xc0] sm:$0xff]
    %v1502 = vld [vmem:[#allocation10 + $0xc8] sm:$0xff]
    %v1503 = vld [vmem:[#allocation10 + $0xd0] sm:$0xff]
    %v1504 = vld [vmem:[#allocation10 + $0xd8] sm:$0xff]
    %v1505 = vld [vmem:[#allocation10 + $0xe0] sm:$0xff]
    %v1506 = vld [vmem:[#allocation10 + $0xe8] sm:$0xff]
    %v1507 = vld [vmem:[#allocation10 + $0xf0] sm:$0xff]
    %v1508 = vld [vmem:[#allocation10 + $0xf8] sm:$0xff]
    %v1509 = vld [vmem:[#allocation10 + $0x100] sm:$0xff]
    %v1510 = vld [vmem:[#allocation10 + $0x108] sm:$0xff]
    %v1511 = vld [vmem:[#allocation10 + $0x110] sm:$0xff]
    %v1512 = vld [vmem:[#allocation10 + $0x118] sm:$0xff]
    %v1513 = vld [vmem:[#allocation10 + $0x120] sm:$0xff]
    %v1514 = vld [vmem:[#allocation10 + $0x128] sm:$0xff]
    %v1515 = vld [vmem:[#allocation10 + $0x130] sm:$0xff]
    %v1516 = vld [vmem:[#allocation10 + $0x138] sm:$0xff]
    %v1517 = vld [vmem:[#allocation10 + $0x140] sm:$0xff]
    %v1518 = vld [vmem:[#allocation10 + $0x148] sm:$0xff]
    %v1519 = vld [vmem:[#allocation10 + $0x150] sm:$0xff]
    %v1520 = vld [vmem:[#allocation10 + $0x158] sm:$0xff]
    %v1521 = vld [vmem:[#allocation10 + $0x160] sm:$0xff]
    %v1522 = vld [vmem:[#allocation10 + $0x168] sm:$0xff]
    %v1523 = vld [vmem:[#allocation10 + $0x170] sm:$0xff]
    %v1524 = vld [vmem:[#allocation10 + $0x178] sm:$0xff]
    %v1525 = vld [vmem:[#allocation10 + $0x180] sm:$0xff]
    %v1526 = vld [vmem:[#allocation10 + $0x188] sm:$0xff]
    %v1527 = vld [vmem:[#allocation10 + $0x190] sm:$0xff]
    %v1528 = vld [vmem:[#allocation10 + $0x198] sm:$0xff]
    %v1529 = vld [vmem:[#allocation10 + $0x1a0] sm:$0xff]
    %v1530 = vld [vmem:[#allocation10 + $0x1a8] sm:$0xff]
    %v1531 = vld [vmem:[#allocation10 + $0x1b0] sm:$0xff]
    %v1532 = vld [vmem:[#allocation10 + $0x1b8] sm:$0xff]
    %v1533 = vld [vmem:[#allocation10 + $0x1c0] sm:$0xff]
    %v1534 = vld [vmem:[#allocation10 + $0x1c8] sm:$0xff]
    %v1535 = vld [vmem:[#allocation10 + $0x1d0] sm:$0xff]
    %v1536 = vld [vmem:[#allocation10 + $0x1d8] sm:$0xff]
    %v1537 = vld [vmem:[#allocation10 + $0x1e0] sm:$0xff]
    %v1538 = vld [vmem:[#allocation10 + $0x1e8] sm:$0xff]
    %v1539 = vld [vmem:[#allocation10 + $0x1f0] sm:$0xff]
    %v1540 = vld [vmem:[#allocation10 + $0x1f8] sm:$0xff]
    %v1541 = vld [vmem:[#allocation10 + $0x200] sm:$0xff]
    %v1542 = vld [vmem:[#allocation10 + $0x208] sm:$0xff]
    %v1543 = vld [vmem:[#allocation10 + $0x210] sm:$0xff]
    %v1544 = vld [vmem:[#allocation10 + $0x218] sm:$0xff]
    %v1545 = vld [vmem:[#allocation10 + $0x220] sm:$0xff]
    %v1546 = vld [vmem:[#allocation10 + $0x228] sm:$0xff]
    %v1547 = vld [vmem:[#allocation10 + $0x230] sm:$0xff]
    %v1548 = vld [vmem:[#allocation10 + $0x238] sm:$0xff]
    %v1549 = vld [vmem:[#allocation10 + $0x240] sm:$0xff]
    %v1550 = vld [vmem:[#allocation10 + $0x248] sm:$0xff]
    %v1551 = vld [vmem:[#allocation10 + $0x250] sm:$0xff]
    %v1552 = vld [vmem:[#allocation10 + $0x258] sm:$0xff]
    %v1553 = vld [vmem:[#allocation10 + $0x260] sm:$0xff]
    %v1554 = vld [vmem:[#allocation10 + $0x268] sm:$0xff]
    %v1555 = vld [vmem:[#allocation10 + $0x270] sm:$0xff]
    %v1556 = vld [vmem:[#allocation10 + $0x278] sm:$0xff]
    %v1557 = vld [vmem:[#allocation10 + $0x280] sm:$0xff]
    %v1558 = vld [vmem:[#allocation10 + $0x288] sm:$0xff]
    %v1559 = vld [vmem:[#allocation10 + $0x290] sm:$0xff]
    %v1560 = vld [vmem:[#allocation10 + $0x298] sm:$0xff]
    %v1561 = vld [vmem:[#allocation10 + $0x2a0] sm:$0xff]
    %v1562 = vld [vmem:[#allocation10 + $0x2a8] sm:$0xff]
    %v1563 = vld [vmem:[#allocation10 + $0x2b0] sm:$0xff]
    %v1564 = vld [vmem:[#allocation10 + $0x2b8] sm:$0xff]
    %v1565 = vld [vmem:[#allocation10 + $0x2c0] sm:$0xff]
    %v1566 = vld [vmem:[#allocation10 + $0x2c8] sm:$0xff]
    %v1567 = vld [vmem:[#allocation10 + $0x2d0] sm:$0xff]
    %v1568 = vld [vmem:[#allocation10 + $0x2d8] sm:$0xff]
    %v1569 = vld [vmem:[#allocation10 + $0x2e0] sm:$0xff]
    %v1570 = vld [vmem:[#allocation10 + $0x2e8] sm:$0xff]
    %v1571 = vld [vmem:[#allocation10 + $0x2f0] sm:$0xff]
    %v1572 = vld [vmem:[#allocation10 + $0x2f8] sm:$0xff]
    %v1573 = vld [vmem:[#allocation10 + $0x300] sm:$0xff]
    %v1574 = vld [vmem:[#allocation10 + $0x308] sm:$0xff]
    %v1575 = vld [vmem:[#allocation10 + $0x310] sm:$0xff]
    %v1576 = vld [vmem:[#allocation10 + $0x318] sm:$0xff]
    %v1577 = vld [vmem:[#allocation10 + $0x320] sm:$0xff]
    %v1578 = vld [vmem:[#allocation10 + $0x328] sm:$0xff]
    %v1579 = vld [vmem:[#allocation10 + $0x330] sm:$0xff]
    %v1580 = vld [vmem:[#allocation10 + $0x338] sm:$0xff]
    %v1581 = vld [vmem:[#allocation10 + $0x340] sm:$0xff]
    %v1582 = vld [vmem:[#allocation10 + $0x348] sm:$0xff]
    %v1583 = vld [vmem:[#allocation10 + $0x350] sm:$0xff]
    %v1584 = vld [vmem:[#allocation10 + $0x358] sm:$0xff]
    %v1585 = vld [vmem:[#allocation10 + $0x360] sm:$0xff]
    %v1586 = vld [vmem:[#allocation10 + $0x368] sm:$0xff]
    %v1587 = vld [vmem:[#allocation10 + $0x370] sm:$0xff]
    %v1588 = vld [vmem:[#allocation10 + $0x378] sm:$0xff]
    %v1589 = vld [vmem:[#allocation10 + $0x380] sm:$0xff]
    %v1590 = vld [vmem:[#allocation10 + $0x388] sm:$0xff]
    %v1591 = vld [vmem:[#allocation10 + $0x390] sm:$0xff]
    %v1592 = vld [vmem:[#allocation10 + $0x398] sm:$0xff]
    %v1593 = vld [vmem:[#allocation10 + $0x3a0] sm:$0xff]
    %v1594 = vld [vmem:[#allocation10 + $0x3a8] sm:$0xff]
    %v1595 = vld [vmem:[#allocation10 + $0x3b0] sm:$0xff]
    %v1596 = vld [vmem:[#allocation10 + $0x3b8] sm:$0xff]
    %v1597 = vld [vmem:[#allocation10 + $0x3c0] sm:$0xff]
    %v1598 = vld [vmem:[#allocation10 + $0x3c8] sm:$0xff]
    %v1599 = vld [vmem:[#allocation10 + $0x3d0] sm:$0xff]
    %v1600 = vld [vmem:[#allocation10 + $0x3d8] sm:$0xff]
    %v1601 = vld [vmem:[#allocation10 + $0x3e0] sm:$0xff]
    %v1602 = vld [vmem:[#allocation10 + $0x3e8] sm:$0xff]
    %v1603 = vld [vmem:[#allocation10 + $0x3f0] sm:$0xff]
    %v1604 = vld [vmem:[#allocation10 + $0x3f8] sm:$0xff]
    %v1605 = vld [vmem:[#allocation10 + $0x400] sm:$0xff]
    %v1606 = vld [vmem:[#allocation10 + $0x408] sm:$0xff]
    %v1607 = vld [vmem:[#allocation10 + $0x410] sm:$0xff]
    %v1608 = vld [vmem:[#allocation10 + $0x418] sm:$0xff]
    %v1609 = vld [vmem:[#allocation10 + $0x420] sm:$0xff]
    %v1610 = vld [vmem:[#allocation10 + $0x428] sm:$0xff]
    %v1611 = vld [vmem:[#allocation10 + $0x430] sm:$0xff]
    %v1612 = vld [vmem:[#allocation10 + $0x438] sm:$0xff]
    %v1613 = vld [vmem:[#allocation10 + $0x440] sm:$0xff]
    %v1614 = vld [vmem:[#allocation10 + $0x448] sm:$0xff]
    %v1615 = vld [vmem:[#allocation10 + $0x450] sm:$0xff]
    %v1616 = vld [vmem:[#allocation10 + $0x458] sm:$0xff]
    %v1617 = vld [vmem:[#allocation10 + $0x460] sm:$0xff]
    %v1618 = vld [vmem:[#allocation10 + $0x468] sm:$0xff]
    %v1619 = vld [vmem:[#allocation10 + $0x470] sm:$0xff]
    %v1620 = vld [vmem:[#allocation10 + $0x478] sm:$0xff]
    %v1621 = vld [vmem:[#allocation10 + $0x480] sm:$0xff]
    %v1622 = vld [vmem:[#allocation10 + $0x488] sm:$0xff]
    %v1623 = vld [vmem:[#allocation10 + $0x490] sm:$0xff]
    %v1624 = vld [vmem:[#allocation10 + $0x498] sm:$0xff]
    %v1625 = vld [vmem:[#allocation10 + $0x4a0] sm:$0xff]
    %v1626 = vld [vmem:[#allocation10 + $0x4a8] sm:$0xff]
    %v1627 = vld [vmem:[#allocation10 + $0x4b0] sm:$0xff]
    %v1628 = vld [vmem:[#allocation10 + $0x4b8] sm:$0xff]
    %v1629 = vld [vmem:[#allocation10 + $0x4c0] sm:$0xff]
    %v1630 = vld [vmem:[#allocation10 + $0x4c8] sm:$0xff]
    %v1631 = vld [vmem:[#allocation10 + $0x4d0] sm:$0xff]
    %v1632 = vld [vmem:[#allocation10 + $0x4d8] sm:$0xff]
    %v1633 = vld [vmem:[#allocation10 + $0x4e0] sm:$0xff]
    %v1634 = vld [vmem:[#allocation10 + $0x4e8] sm:$0xff]
    %v1635 = vld [vmem:[#allocation10 + $0x4f0] sm:$0xff]
    %v1636 = vld [vmem:[#allocation10 + $0x4f8] sm:$0xff]
    %v1637 = vld [vmem:[#allocation10 + $0x500] sm:$0xff]
    %v1638 = vld [vmem:[#allocation10 + $0x508] sm:$0xff]
    %v1639 = vld [vmem:[#allocation10 + $0x510] sm:$0xff]
    %v1640 = vld [vmem:[#allocation10 + $0x518] sm:$0xff]
    %v1641 = vld [vmem:[#allocation10 + $0x520] sm:$0xff]
    %v1642 = vld [vmem:[#allocation10 + $0x528] sm:$0xff]
    %v1643 = vld [vmem:[#allocation10 + $0x530] sm:$0xff]
    %v1644 = vld [vmem:[#allocation10 + $0x538] sm:$0xff]
    %v1645 = vld [vmem:[#allocation10 + $0x540] sm:$0xff]
    %v1646 = vld [vmem:[#allocation10 + $0x548] sm:$0xff]
    %v1647 = vld [vmem:[#allocation10 + $0x550] sm:$0xff]
    %v1648 = vld [vmem:[#allocation10 + $0x558] sm:$0xff]
    %v1649 = vld [vmem:[#allocation10 + $0x560] sm:$0xff]
    %v1650 = vld [vmem:[#allocation10 + $0x568] sm:$0xff]
    %v1651 = vld [vmem:[#allocation10 + $0x570] sm:$0xff]
    %v1652 = vld [vmem:[#allocation10 + $0x578] sm:$0xff]
    %v1653 = vld [vmem:[#allocation10 + $0x580] sm:$0xff]
    %v1654 = vld [vmem:[#allocation10 + $0x588] sm:$0xff]
    %v1655 = vld [vmem:[#allocation10 + $0x590] sm:$0xff]
    %v1656 = vld [vmem:[#allocation10 + $0x598] sm:$0xff]
    %v1657 = vld [vmem:[#allocation10 + $0x5a0] sm:$0xff]
    %v1658 = vld [vmem:[#allocation10 + $0x5a8] sm:$0xff]
    %v1659 = vld [vmem:[#allocation10 + $0x5b0] sm:$0xff]
    %v1660 = vld [vmem:[#allocation10 + $0x5b8] sm:$0xff]
    %v1661 = vld [vmem:[#allocation10 + $0x5c0] sm:$0xff]
    %v1662 = vld [vmem:[#allocation10 + $0x5c8] sm:$0xff]
    %v1663 = vld [vmem:[#allocation10 + $0x5d0] sm:$0xff]
    %v1664 = vld [vmem:[#allocation10 + $0x5d8] sm:$0xff]
    %v1665 = vld [vmem:[#allocation10 + $0x5e0] sm:$0xff]
    %v1666 = vld [vmem:[#allocation10 + $0x5e8] sm:$0xff]
    %v1667 = vld [vmem:[#allocation10 + $0x5f0] sm:$0xff]
    %v1668 = vld [vmem:[#allocation10 + $0x5f8] sm:$0xff]
    %v1669 = vld [vmem:[#allocation10 + $0x600] sm:$0xff]
    %v1670 = vld [vmem:[#allocation10 + $0x608] sm:$0xff]
    %v1671 = vld [vmem:[#allocation10 + $0x610] sm:$0xff]
    %v1672 = vld [vmem:[#allocation10 + $0x618] sm:$0xff]
    %v1673 = vld [vmem:[#allocation10 + $0x620] sm:$0xff]
    %v1674 = vld [vmem:[#allocation10 + $0x628] sm:$0xff]
    %v1675 = vld [vmem:[#allocation10 + $0x630] sm:$0xff]
    %v1676 = vld [vmem:[#allocation10 + $0x638] sm:$0xff]
    %v1677 = vld [vmem:[#allocation10 + $0x640] sm:$0xff]
    %v1678 = vld [vmem:[#allocation10 + $0x648] sm:$0xff]
    %v1679 = vld [vmem:[#allocation10 + $0x650] sm:$0xff]
    %v1680 = vld [vmem:[#allocation10 + $0x658] sm:$0xff]
    %v1681 = vld [vmem:[#allocation10 + $0x660] sm:$0xff]
    %v1682 = vld [vmem:[#allocation10 + $0x668] sm:$0xff]
    %v1683 = vld [vmem:[#allocation10 + $0x670] sm:$0xff]
    %v1684 = vld [vmem:[#allocation10 + $0x678] sm:$0xff]
    %v1685 = vld [vmem:[#allocation10 + $0x680] sm:$0xff]
    %v1686 = vld [vmem:[#allocation10 + $0x688] sm:$0xff]
    %v1687 = vld [vmem:[#allocation10 + $0x690] sm:$0xff]
    %v1688 = vld [vmem:[#allocation10 + $0x698] sm:$0xff]
    %v1689 = vld [vmem:[#allocation10 + $0x6a0] sm:$0xff]
    %v1690 = vld [vmem:[#allocation10 + $0x6a8] sm:$0xff]
    %v1691 = vld [vmem:[#allocation10 + $0x6b0] sm:$0xff]
    %v1692 = vld [vmem:[#allocation10 + $0x6b8] sm:$0xff]
    %v1693 = vld [vmem:[#allocation10 + $0x6c0] sm:$0xff]
    %v1694 = vld [vmem:[#allocation10 + $0x6c8] sm:$0xff]
    %v1695 = vld [vmem:[#allocation10 + $0x6d0] sm:$0xff]
    %v1696 = vld [vmem:[#allocation10 + $0x6d8] sm:$0xff]
    %v1697 = vld [vmem:[#allocation10 + $0x6e0] sm:$0xff]
    %v1698 = vld [vmem:[#allocation10 + $0x6e8] sm:$0xff]
    %v1699 = vld [vmem:[#allocation10 + $0x6f0] sm:$0xff]
    %v1700 = vld [vmem:[#allocation10 + $0x6f8] sm:$0xff]
    %v1701 = vld [vmem:[#allocation10 + $0x700] sm:$0xff]
    %v1702 = vld [vmem:[#allocation10 + $0x708] sm:$0xff]
    %v1703 = vld [vmem:[#allocation10 + $0x710] sm:$0xff]
    %v1704 = vld [vmem:[#allocation10 + $0x718] sm:$0xff]
    %v1705 = vld [vmem:[#allocation10 + $0x720] sm:$0xff]
    %v1706 = vld [vmem:[#allocation10 + $0x728] sm:$0xff]
    %v1707 = vld [vmem:[#allocation10 + $0x730] sm:$0xff]
    %v1708 = vld [vmem:[#allocation10 + $0x738] sm:$0xff]
    %v1709 = vld [vmem:[#allocation10 + $0x740] sm:$0xff]
    %v1710 = vld [vmem:[#allocation10 + $0x748] sm:$0xff]
    %v1711 = vld [vmem:[#allocation10 + $0x750] sm:$0xff]
    %v1712 = vld [vmem:[#allocation10 + $0x758] sm:$0xff]
    %v1713 = vld [vmem:[#allocation10 + $0x760] sm:$0xff]
    %v1714 = vld [vmem:[#allocation10 + $0x768] sm:$0xff]
    %v1715 = vld [vmem:[#allocation10 + $0x770] sm:$0xff]
    %v1716 = vld [vmem:[#allocation10 + $0x778] sm:$0xff]
    %v1717 = vld [vmem:[#allocation10 + $0x780] sm:$0xff]
    %v1718 = vld [vmem:[#allocation10 + $0x788] sm:$0xff]
    %v1719 = vld [vmem:[#allocation10 + $0x790] sm:$0xff]
    %v1720 = vld [vmem:[#allocation10 + $0x798] sm:$0xff]
    %v1721 = vld [vmem:[#allocation10 + $0x7a0] sm:$0xff]
    %v1722 = vld [vmem:[#allocation10 + $0x7a8] sm:$0xff]
    %v1723 = vld [vmem:[#allocation10 + $0x7b0] sm:$0xff]
    %v1724 = vld [vmem:[#allocation10 + $0x7b8] sm:$0xff]
    %v1725 = vld [vmem:[#allocation10 + $0x7c0] sm:$0xff]
    %v1726 = vld [vmem:[#allocation10 + $0x7c8] sm:$0xff]
    %v1727 = vld [vmem:[#allocation10 + $0x7d0] sm:$0xff]
    %v1728 = vld [vmem:[#allocation10 + $0x7d8] sm:$0xff]
    %v1729 = vld [vmem:[#allocation10 + $0x7e0] sm:$0xff]
    %v1730 = vld [vmem:[#allocation10 + $0x7e8] sm:$0xff]
    %v1731 = vld [vmem:[#allocation10 + $0x7f0] sm:$0xff]
    %v1732 = vld [vmem:[#allocation10 + $0x7f8] sm:$0xff]
    %v1733 = vld [vmem:[#allocation10 + $0x800] sm:$0xff]
    %v1734 = vld [vmem:[#allocation10 + $0x808] sm:$0xff]
    %v1735 = vld [vmem:[#allocation10 + $0x810] sm:$0xff]
    %v1736 = vld [vmem:[#allocation10 + $0x818] sm:$0xff]
    %v1737 = vld [vmem:[#allocation10 + $0x820] sm:$0xff]
    %v1738 = vld [vmem:[#allocation10 + $0x828] sm:$0xff]
    %v1739 = vld [vmem:[#allocation10 + $0x830] sm:$0xff]
    %v1740 = vld [vmem:[#allocation10 + $0x838] sm:$0xff]
    %v1741 = vld [vmem:[#allocation10 + $0x840] sm:$0xff]
    %v1742 = vld [vmem:[#allocation10 + $0x848] sm:$0xff]
    %v1743 = vld [vmem:[#allocation10 + $0x850] sm:$0xff]
    %v1744 = vld [vmem:[#allocation10 + $0x858] sm:$0xff]
    %v1745 = vld [vmem:[#allocation10 + $0x860] sm:$0xff]
    %v1746 = vld [vmem:[#allocation10 + $0x868] sm:$0xff]
    %v1747 = vld [vmem:[#allocation10 + $0x870] sm:$0xff]
    %v1748 = vld [vmem:[#allocation10 + $0x878] sm:$0xff]
    %v1749 = vld [vmem:[#allocation10 + $0x880] sm:$0xff]
    %v1750 = vld [vmem:[#allocation10 + $0x888] sm:$0xff]
    %v1751 = vld [vmem:[#allocation10 + $0x890] sm:$0xff]
    %v1752 = vld [vmem:[#allocation10 + $0x898] sm:$0xff]
    %v1753 = vld [vmem:[#allocation10 + $0x8a0] sm:$0xff]
    %v1754 = vld [vmem:[#allocation10 + $0x8a8] sm:$0xff]
    %v1755 = vld [vmem:[#allocation10 + $0x8b0] sm:$0xff]
    %v1756 = vld [vmem:[#allocation10 + $0x8b8] sm:$0xff]
    %v1757 = vld [vmem:[#allocation10 + $0x8c0] sm:$0xff]
    %v1758 = vld [vmem:[#allocation10 + $0x8c8] sm:$0xff]
    %v1759 = vld [vmem:[#allocation10 + $0x8d0] sm:$0xff]
    %v1760 = vld [vmem:[#allocation10 + $0x8d8] sm:$0xff]
    %v1761 = vld [vmem:[#allocation10 + $0x8e0] sm:$0xff]
    %v1762 = vld [vmem:[#allocation10 + $0x8e8] sm:$0xff]
    %v1763 = vld [vmem:[#allocation10 + $0x8f0] sm:$0xff]
    %v1764 = vld [vmem:[#allocation10 + $0x8f8] sm:$0xff]
    %v1765 = vld [vmem:[#allocation10 + $0x900] sm:$0xff]
    %v1766 = vld [vmem:[#allocation10 + $0x908] sm:$0xff]
    %v1767 = vld [vmem:[#allocation10 + $0x910] sm:$0xff]
    %v1768 = vld [vmem:[#allocation10 + $0x918] sm:$0xff]
    %v1769 = vld [vmem:[#allocation10 + $0x920] sm:$0xff]
    %v1770 = vld [vmem:[#allocation10 + $0x928] sm:$0xff]
    %v1771 = vld [vmem:[#allocation10 + $0x930] sm:$0xff]
    %v1772 = vld [vmem:[#allocation10 + $0x938] sm:$0xff]
    %v1773 = vld [vmem:[#allocation10 + $0x940] sm:$0xff]
    %v1774 = vld [vmem:[#allocation10 + $0x948] sm:$0xff]
    %v1775 = vld [vmem:[#allocation10 + $0x950] sm:$0xff]
    %v1776 = vld [vmem:[#allocation10 + $0x958] sm:$0xff]
    %v1777 = vld [vmem:[#allocation10 + $0x960] sm:$0xff]
    %v1778 = vld [vmem:[#allocation10 + $0x968] sm:$0xff]
    %v1779 = vld [vmem:[#allocation10 + $0x970] sm:$0xff]
    %v1780 = vld [vmem:[#allocation10 + $0x978] sm:$0xff]
    %v1781 = vld [vmem:[#allocation10 + $0x980] sm:$0xff]
    %v1782 = vld [vmem:[#allocation10 + $0x988] sm:$0xff]
    %v1783 = vld [vmem:[#allocation10 + $0x990] sm:$0xff]
    %v1784 = vld [vmem:[#allocation10 + $0x998] sm:$0xff]
    %v1785 = vld [vmem:[#allocation10 + $0x9a0] sm:$0xff]
    %v1786 = vld [vmem:[#allocation10 + $0x9a8] sm:$0xff]
    %v1787 = vld [vmem:[#allocation10 + $0x9b0] sm:$0xff]
    %v1788 = vld [vmem:[#allocation10 + $0x9b8] sm:$0xff]
    %v1789 = vld [vmem:[#allocation10 + $0x9c0] sm:$0xff]
    %v1790 = vld [vmem:[#allocation10 + $0x9c8] sm:$0xff]
    %v1791 = vld [vmem:[#allocation10 + $0x9d0] sm:$0xff]
    %v1792 = vld [vmem:[#allocation10 + $0x9d8] sm:$0xff]
    %v1793 = vld [vmem:[#allocation10 + $0x9e0] sm:$0xff]
    %v1794 = vld [vmem:[#allocation10 + $0x9e8] sm:$0xff]
    %v1795 = vld [vmem:[#allocation10 + $0x9f0] sm:$0xff]
    %v1796 = vld [vmem:[#allocation10 + $0x9f8] sm:$0xff]
    %v1797 = vld [vmem:[#allocation10 + $0xa00] sm:$0xff]
    %v1798 = vld [vmem:[#allocation10 + $0xa08] sm:$0xff]
    %v1799 = vld [vmem:[#allocation10 + $0xa10] sm:$0xff]
    %v1800 = vld [vmem:[#allocation10 + $0xa18] sm:$0xff]
    %v1801 = vld [vmem:[#allocation10 + $0xa20] sm:$0xff]
    %v1802 = vld [vmem:[#allocation10 + $0xa28] sm:$0xff]
    %v1803 = vld [vmem:[#allocation10 + $0xa30] sm:$0xff]
    %v1804 = vld [vmem:[#allocation10 + $0xa38] sm:$0xff]
    %v1805 = vld [vmem:[#allocation10 + $0xa40] sm:$0xff]
    %v1806 = vld [vmem:[#allocation10 + $0xa48] sm:$0xff]
    %v1807 = vld [vmem:[#allocation10 + $0xa50] sm:$0xff]
    %v1808 = vld [vmem:[#allocation10 + $0xa58] sm:$0xff]
    %v1809 = vld [vmem:[#allocation10 + $0xa60] sm:$0xff]
    %v1810 = vld [vmem:[#allocation10 + $0xa68] sm:$0xff]
    %v1811 = vld [vmem:[#allocation10 + $0xa70] sm:$0xff]
    %v1812 = vld [vmem:[#allocation10 + $0xa78] sm:$0xff]
    %v1813 = vld [vmem:[#allocation10 + $0xa80] sm:$0xff]
    %v1814 = vld [vmem:[#allocation10 + $0xa88] sm:$0xff]
    %v1815 = vld [vmem:[#allocation10 + $0xa90] sm:$0xff]
    %v1816 = vld [vmem:[#allocation10 + $0xa98] sm:$0xff]
    %v1817 = vld [vmem:[#allocation10 + $0xaa0] sm:$0xff]
    %v1818 = vld [vmem:[#allocation10 + $0xaa8] sm:$0xff]
    %v1819 = vld [vmem:[#allocation10 + $0xab0] sm:$0xff]
    %v1820 = vld [vmem:[#allocation10 + $0xab8] sm:$0xff]
    %v1821 = vld [vmem:[#allocation10 + $0xac0] sm:$0xff]
    %v1822 = vld [vmem:[#allocation10 + $0xac8] sm:$0xff]
    %v1823 = vld [vmem:[#allocation10 + $0xad0] sm:$0xff]
    %v1824 = vld [vmem:[#allocation10 + $0xad8] sm:$0xff]
    %v1825 = vld [vmem:[#allocation10 + $0xae0] sm:$0xff]
    %v1826 = vld [vmem:[#allocation10 + $0xae8] sm:$0xff]
    %v1827 = vld [vmem:[#allocation10 + $0xaf0] sm:$0xff]
    %v1828 = vld [vmem:[#allocation10 + $0xaf8] sm:$0xff]
    %v1829 = vld [vmem:[#allocation10 + $0xb00] sm:$0xff]
    %v1830 = vld [vmem:[#allocation10 + $0xb08] sm:$0xff]
    %v1831 = vld [vmem:[#allocation10 + $0xb10] sm:$0xff]
    %v1832 = vld [vmem:[#allocation10 + $0xb18] sm:$0xff]
    %v1833 = vld [vmem:[#allocation10 + $0xb20] sm:$0xff]
    %v1834 = vld [vmem:[#allocation10 + $0xb28] sm:$0xff]
    %v1835 = vld [vmem:[#allocation10 + $0xb30] sm:$0xff]
    %v1836 = vld [vmem:[#allocation10 + $0xb38] sm:$0xff]
    %v1837 = vld [vmem:[#allocation10 + $0xb40] sm:$0xff]
    %v1838 = vld [vmem:[#allocation10 + $0xb48] sm:$0xff]
    %v1839 = vld [vmem:[#allocation10 + $0xb50] sm:$0xff]
    %v1840 = vld [vmem:[#allocation10 + $0xb58] sm:$0xff]
    %v1841 = vld [vmem:[#allocation10 + $0xb60] sm:$0xff]
    %v1842 = vld [vmem:[#allocation10 + $0xb68] sm:$0xff]
    %v1843 = vld [vmem:[#allocation10 + $0xb70] sm:$0xff]
    %v1844 = vld [vmem:[#allocation10 + $0xb78] sm:$0xff]
    %v1845 = vld [vmem:[#allocation10 + $0xb80] sm:$0xff]
    %v1846 = vld [vmem:[#allocation10 + $0xb88] sm:$0xff]
    %v1847 = vld [vmem:[#allocation10 + $0xb90] sm:$0xff]
    %v1848 = vld [vmem:[#allocation10 + $0xb98] sm:$0xff]
    %v1849 = vld [vmem:[#allocation10 + $0xba0] sm:$0xff]
    %v1850 = vld [vmem:[#allocation10 + $0xba8] sm:$0xff]
    %v1851 = vld [vmem:[#allocation10 + $0xbb0] sm:$0xff]
    %v1852 = vld [vmem:[#allocation10 + $0xbb8] sm:$0xff]
    %v1853 = vld [vmem:[#allocation10 + $0xbc0] sm:$0xff]
    %v1854 = vld [vmem:[#allocation10 + $0xbc8] sm:$0xff]
    %v1855 = vld [vmem:[#allocation10 + $0xbd0] sm:$0xff]
    %v1856 = vld [vmem:[#allocation10 + $0xbd8] sm:$0xff]
    %v1857 = vld [vmem:[#allocation10 + $0xbe0] sm:$0xff]
    %v1858 = vld [vmem:[#allocation10 + $0xbe8] sm:$0xff]
    %v1859 = vld [vmem:[#allocation10 + $0xbf0] sm:$0xff]
    %v1860 = vld [vmem:[#allocation10 + $0xbf8] sm:$0xff]
    %v1861 = vld [vmem:[#allocation10 + $0xc00] sm:$0xff]
    %v1862 = vld [vmem:[#allocation10 + $0xc08] sm:$0xff]
    %v1863 = vld [vmem:[#allocation10 + $0xc10] sm:$0xff]
    %v1864 = vld [vmem:[#allocation10 + $0xc18] sm:$0xff]
    %v1865 = vld [vmem:[#allocation10 + $0xc20] sm:$0xff]
    %v1866 = vld [vmem:[#allocation10 + $0xc28] sm:$0xff]
    %v1867 = vld [vmem:[#allocation10 + $0xc30] sm:$0xff]
    %v1868 = vld [vmem:[#allocation10 + $0xc38] sm:$0xff]
    %v1869 = vld [vmem:[#allocation10 + $0xc40] sm:$0xff]
    %v1870 = vld [vmem:[#allocation10 + $0xc48] sm:$0xff]
    %v1871 = vld [vmem:[#allocation10 + $0xc50] sm:$0xff]
    %v1872 = vld [vmem:[#allocation10 + $0xc58] sm:$0xff]
    %v1873 = vld [vmem:[#allocation10 + $0xc60] sm:$0xff]
    %v1874 = vld [vmem:[#allocation10 + $0xc68] sm:$0xff]
    %v1875 = vld [vmem:[#allocation10 + $0xc70] sm:$0xff]
    %v1876 = vld [vmem:[#allocation10 + $0xc78] sm:$0xff]
    %v1877 = vld [vmem:[#allocation10 + $0xc80] sm:$0xff]
    %v1878 = vld [vmem:[#allocation10 + $0xc88] sm:$0xff]
    %v1879 = vld [vmem:[#allocation10 + $0xc90] sm:$0xff]
    %v1880 = vld [vmem:[#allocation10 + $0xc98] sm:$0xff]
    %v1881 = vld [vmem:[#allocation10 + $0xca0] sm:$0xff]
    %v1882 = vld [vmem:[#allocation10 + $0xca8] sm:$0xff]
    %v1883 = vld [vmem:[#allocation10 + $0xcb0] sm:$0xff]
    %v1884 = vld [vmem:[#allocation10 + $0xcb8] sm:$0xff]
    %v1885 = vld [vmem:[#allocation10 + $0xcc0] sm:$0xff]
    %v1886 = vld [vmem:[#allocation10 + $0xcc8] sm:$0xff]
    %v1887 = vld [vmem:[#allocation10 + $0xcd0] sm:$0xff]
    %v1888 = vld [vmem:[#allocation10 + $0xcd8] sm:$0xff]
    %v1889 = vld [vmem:[#allocation10 + $0xce0] sm:$0xff]
    %v1890 = vld [vmem:[#allocation10 + $0xce8] sm:$0xff]
    %v1891 = vld [vmem:[#allocation10 + $0xcf0] sm:$0xff]
    %v1892 = vld [vmem:[#allocation10 + $0xcf8] sm:$0xff]
    %v1893 = vld [vmem:[#allocation10 + $0xd00] sm:$0xff]
    %v1894 = vld [vmem:[#allocation10 + $0xd08] sm:$0xff]
    %v1895 = vld [vmem:[#allocation10 + $0xd10] sm:$0xff]
    %v1896 = vld [vmem:[#allocation10 + $0xd18] sm:$0xff]
    %v1897 = vld [vmem:[#allocation10 + $0xd20] sm:$0xff]
    %v1898 = vld [vmem:[#allocation10 + $0xd28] sm:$0xff]
    %v1899 = vld [vmem:[#allocation10 + $0xd30] sm:$0xff]
    %v1900 = vld [vmem:[#allocation10 + $0xd38] sm:$0xff]
    %v1901 = vld [vmem:[#allocation10 + $0xd40] sm:$0xff]
    %v1902 = vld [vmem:[#allocation10 + $0xd48] sm:$0xff]
    %v1903 = vld [vmem:[#allocation10 + $0xd50] sm:$0xff]
    %v1904 = vld [vmem:[#allocation10 + $0xd58] sm:$0xff]
    %v1905 = vld [vmem:[#allocation10 + $0xd60] sm:$0xff]
    %v1906 = vld [vmem:[#allocation10 + $0xd68] sm:$0xff]
    %v1907 = vld [vmem:[#allocation10 + $0xd70] sm:$0xff]
    %v1908 = vld [vmem:[#allocation10 + $0xd78] sm:$0xff]
    %v1909 = vld [vmem:[#allocation10 + $0xd80] sm:$0xff]
    %v1910 = vld [vmem:[#allocation10 + $0xd88] sm:$0xff]
    %v1911 = vld [vmem:[#allocation10 + $0xd90] sm:$0xff]
    %v1912 = vld [vmem:[#allocation10 + $0xd98] sm:$0xff]
    %v1913 = vld [vmem:[#allocation10 + $0xda0] sm:$0xff]
    %v1914 = vld [vmem:[#allocation10 + $0xda8] sm:$0xff]
    %v1915 = vld [vmem:[#allocation10 + $0xdb0] sm:$0xff]
    %v1916 = vld [vmem:[#allocation10 + $0xdb8] sm:$0xff]
    %v1917 = vld [vmem:[#allocation10 + $0xdc0] sm:$0xff]
    %v1918 = vld [vmem:[#allocation10 + $0xdc8] sm:$0xff]
    %v1919 = vld [vmem:[#allocation10 + $0xdd0] sm:$0xff]
    %v1920 = vld [vmem:[#allocation10 + $0xdd8] sm:$0xff]
    %v1921 = vld [vmem:[#allocation10 + $0xde0] sm:$0xff]
    %v1922 = vld [vmem:[#allocation10 + $0xde8] sm:$0xff]
    %v1923 = vld [vmem:[#allocation10 + $0xdf0] sm:$0xff]
    %v1924 = vld [vmem:[#allocation10 + $0xdf8] sm:$0xff]
    %v1925 = vld [vmem:[#allocation10 + $0xe00] sm:$0xff]
    %v1926 = vld [vmem:[#allocation10 + $0xe08] sm:$0xff]
    %v1927 = vld [vmem:[#allocation10 + $0xe10] sm:$0xff]
    %v1928 = vld [vmem:[#allocation10 + $0xe18] sm:$0xff]
    %v1929 = vld [vmem:[#allocation10 + $0xe20] sm:$0xff]
    %v1930 = vld [vmem:[#allocation10 + $0xe28] sm:$0xff]
    %v1931 = vld [vmem:[#allocation10 + $0xe30] sm:$0xff]
    %v1932 = vld [vmem:[#allocation10 + $0xe38] sm:$0xff]
    %v1933 = vld [vmem:[#allocation10 + $0xe40] sm:$0xff]
    %v1934 = vld [vmem:[#allocation10 + $0xe48] sm:$0xff]
    %v1935 = vld [vmem:[#allocation10 + $0xe50] sm:$0xff]
    %v1936 = vld [vmem:[#allocation10 + $0xe58] sm:$0xff]
    %v1937 = vld [vmem:[#allocation10 + $0xe60] sm:$0xff]
    %v1938 = vld [vmem:[#allocation10 + $0xe68] sm:$0xff]
    %v1939 = vld [vmem:[#allocation10 + $0xe70] sm:$0xff]
    %v1940 = vld [vmem:[#allocation10 + $0xe78] sm:$0xff]
    %v1941 = vld [vmem:[#allocation10 + $0xe80] sm:$0xff]
    %v1942 = vld [vmem:[#allocation10 + $0xe88] sm:$0xff]
    %v1943 = vld [vmem:[#allocation10 + $0xe90] sm:$0xff]
    %v1944 = vld [vmem:[#allocation10 + $0xe98] sm:$0xff]
    %v1945 = vld [vmem:[#allocation10 + $0xea0] sm:$0xff]
    %v1946 = vld [vmem:[#allocation10 + $0xea8] sm:$0xff]
    %v1947 = vld [vmem:[#allocation10 + $0xeb0] sm:$0xff]
    %v1948 = vld [vmem:[#allocation10 + $0xeb8] sm:$0xff]
    %v1949 = vld [vmem:[#allocation10 + $0xec0] sm:$0xff]
    %v1950 = vld [vmem:[#allocation10 + $0xec8] sm:$0xff]
    %v1951 = vld [vmem:[#allocation10 + $0xed0] sm:$0xff]
    %v1952 = vld [vmem:[#allocation10 + $0xed8] sm:$0xff]
    %v1953 = vld [vmem:[#allocation10 + $0xee0] sm:$0xff]
    %v1954 = vld [vmem:[#allocation10 + $0xee8] sm:$0xff]
    %v1955 = vld [vmem:[#allocation10 + $0xef0] sm:$0xff]
    %v1956 = vld [vmem:[#allocation10 + $0xef8] sm:$0xff]
    %v1957 = vld [vmem:[#allocation10 + $0xf00] sm:$0xff]
    %v1958 = vld [vmem:[#allocation10 + $0xf08] sm:$0xff]
    %v1959 = vld [vmem:[#allocation10 + $0xf10] sm:$0xff]
    %v1960 = vld [vmem:[#allocation10 + $0xf18] sm:$0xff]
    %v1961 = vld [vmem:[#allocation10 + $0xf20] sm:$0xff]
    %v1962 = vld [vmem:[#allocation10 + $0xf28] sm:$0xff]
    %v1963 = vld [vmem:[#allocation10 + $0xf30] sm:$0xff]
    %v1964 = vld [vmem:[#allocation10 + $0xf38] sm:$0xff]
    %v1965 = vld [vmem:[#allocation10 + $0xf40] sm:$0xff]
    %v1966 = vld [vmem:[#allocation10 + $0xf48] sm:$0xff]
    %v1967 = vld [vmem:[#allocation10 + $0xf50] sm:$0xff]
    %v1968 = vld [vmem:[#allocation10 + $0xf58] sm:$0xff]
    %v1969 = vld [vmem:[#allocation10 + $0xf60] sm:$0xff]
    %v1970 = vld [vmem:[#allocation10 + $0xf68] sm:$0xff]
    %v1971 = vld [vmem:[#allocation10 + $0xf70] sm:$0xff]
    %v1972 = vld [vmem:[#allocation10 + $0xf78] sm:$0xff]
    %v1973 = vld [vmem:[#allocation10 + $0xf80] sm:$0xff]
    %v1974 = vld [vmem:[#allocation10 + $0xf88] sm:$0xff]
    %v1975 = vld [vmem:[#allocation10 + $0xf90] sm:$0xff]
    %v1976 = vld [vmem:[#allocation10 + $0xf98] sm:$0xff]
    %v1977 = vld [vmem:[#allocation10 + $0xfa0] sm:$0xff]
    %v1978 = vld [vmem:[#allocation10 + $0xfa8] sm:$0xff]
    %v1979 = vld [vmem:[#allocation10 + $0xfb0] sm:$0xff]
    %v1980 = vld [vmem:[#allocation10 + $0xfb8] sm:$0xff]
    %v1981 = vld [vmem:[#allocation10 + $0xfc0] sm:$0xff]
    %v1982 = vld [vmem:[#allocation10 + $0xfc8] sm:$0xff]
    %v1983 = vld [vmem:[#allocation10 + $0xfd0] sm:$0xff]
    %v1984 = vld [vmem:[#allocation10 + $0xfd8] sm:$0xff]
    %v1985 = vld [vmem:[#allocation10 + $0xfe0] sm:$0xff]
    %v1986 = vld [vmem:[#allocation10 + $0xfe8] sm:$0xff]
    %v1987 = vld [vmem:[#allocation10 + $0xff0] sm:$0xff]
    %v1988 = vld [vmem:[#allocation10 + $0xff8] sm:$0xff]
    %1989 = vmatpush.bf16.msra.mxu0 0
    %1990 = vmatpush.bf16.msra.mxu0 0
    %1991 = vmatpush.bf16.msra.mxu0 0
    %1992 = vmatpush.bf16.msra.mxu0 0
    %1993 = vmatpush.bf16.msra.mxu0 0
    %1994 = vmatpush.bf16.msra.mxu0 0
    %1995 = vmatpush.bf16.msra.mxu0 0
    %1996 = vmatpush.bf16.msra.mxu0 %v1473
    %1997 = vmatmul.bf16.gmra.mxu0 %v168
    %v1998 = vpop.f32.mrf.mxu0
    %v1999 = vadd.f32 0.0, %v1998
    %v2000 = vpop.f32.mrf.mxu0
    %v2001 = vadd.f32 0.0, %v2000
    %2002 = vdwg.mxu0
    %2003 = vmatpush.bf16.msra.mxu0 0
    %2004 = vmatpush.bf16.msra.mxu0 0
    %2005 = vmatpush.bf16.msra.mxu0 0
    %2006 = vmatpush.bf16.msra.mxu0 0
    %2007 = vmatpush.bf16.msra.mxu0 0
    %2008 = vmatpush.bf16.msra.mxu0 0
    %2009 = vmatpush.bf16.msra.mxu0 0
    %2010 = vmatpush.bf16.msra.mxu0 %v1474
    %2011 = vmatmul.bf16.gmra.mxu0 %v168
    %v2012 = vpop.f32.mrf.mxu0
    %v2013 = vadd.f32 0.0, %v2012
    %v2014 = vpop.f32.mrf.mxu0
    %v2015 = vadd.f32 0.0, %v2014
    %2016 = vdwg.mxu0
    %2017 = vmatpush.bf16.msra.mxu0 0
    %2018 = vmatpush.bf16.msra.mxu0 0
    %2019 = vmatpush.bf16.msra.mxu0 0
    %2020 = vmatpush.bf16.msra.mxu0 0
    %2021 = vmatpush.bf16.msra.mxu0 0
    %2022 = vmatpush.bf16.msra.mxu0 0
    %2023 = vmatpush.bf16.msra.mxu0 0
    %2024 = vmatpush.bf16.msra.mxu0 %v1475
    %2025 = vmatmul.bf16.gmra.mxu0 %v168
    %v2026 = vpop.f32.mrf.mxu0
    %v2027 = vadd.f32 0.0, %v2026
    %v2028 = vpop.f32.mrf.mxu0
    %v2029 = vadd.f32 0.0, %v2028
    %2030 = vdwg.mxu0
    %2031 = vmatpush.bf16.msra.mxu0 0
    %2032 = vmatpush.bf16.msra.mxu0 0
    %2033 = vmatpush.bf16.msra.mxu0 0
    %2034 = vmatpush.bf16.msra.mxu0 0
    %2035 = vmatpush.bf16.msra.mxu0 0
    %2036 = vmatpush.bf16.msra.mxu0 0
    %2037 = vmatpush.bf16.msra.mxu0 0
    %2038 = vmatpush.bf16.msra.mxu0 %v1476
    %2039 = vmatmul.bf16.gmra.mxu0 %v168
    %v2040 = vpop.f32.mrf.mxu0
    %v2041 = vadd.f32 0.0, %v2040
    %v2042 = vpop.f32.mrf.mxu0
    %v2043 = vadd.f32 0.0, %v2042
    %2044 = vdwg.mxu0
    %v2045 = vpack.c.bf16 %v2001, %v1999
    %v2046 = vpack.c.bf16 %v2015, %v2013
    %v2047 = vpack.c.bf16 %v2029, %v2027
    %v2048 = vpack.c.bf16 %v2043, %v2041
    %v2561 = vunpack.c.l.b16 %v1477
    %v2562 = vunpack.c.h.b16 %v1477
    %v2563 = vunpack.c.l.b16 %v1478
    %v2564 = vunpack.c.h.b16 %v1478
    %v2565 = vunpack.c.l.b16 %v1479
    %v2566 = vunpack.c.h.b16 %v1479
    %v2567 = vunpack.c.l.b16 %v1480
    %v2568 = vunpack.c.h.b16 %v1480
    %v2569 = vunpack.c.l.b16 %v1481
    %v2570 = vunpack.c.h.b16 %v1481
    %v2571 = vunpack.c.l.b16 %v1482
    %v2572 = vunpack.c.h.b16 %v1482
    %v2573 = vunpack.c.l.b16 %v1483
    %v2574 = vunpack.c.h.b16 %v1483
    %v2575 = vunpack.c.l.b16 %v1484
    %v2576 = vunpack.c.h.b16 %v1484
    %v2577 = vunpack.c.l.b16 %v1485
    %v2578 = vunpack.c.h.b16 %v1485
    %v2579 = vunpack.c.l.b16 %v1486
    %v2580 = vunpack.c.h.b16 %v1486
    %v2581 = vunpack.c.l.b16 %v1487
    %v2582 = vunpack.c.h.b16 %v1487
    %v2583 = vunpack.c.l.b16 %v1488
    %v2584 = vunpack.c.h.b16 %v1488
    %v2585 = vunpack.c.l.b16 %v1489
    %v2586 = vunpack.c.h.b16 %v1489
    %v2587 = vunpack.c.l.b16 %v1490
    %v2588 = vunpack.c.h.b16 %v1490
    %v2589 = vunpack.c.l.b16 %v1491
    %v2590 = vunpack.c.h.b16 %v1491
    %v2591 = vunpack.c.l.b16 %v1492
    %v2592 = vunpack.c.h.b16 %v1492
    %v2593 = vunpack.c.l.b16 %v1493
    %v2594 = vunpack.c.h.b16 %v1493
    %v2595 = vunpack.c.l.b16 %v1494
    %v2596 = vunpack.c.h.b16 %v1494
    %v2597 = vunpack.c.l.b16 %v1495
    %v2598 = vunpack.c.h.b16 %v1495
    %v2599 = vunpack.c.l.b16 %v1496
    %v2600 = vunpack.c.h.b16 %v1496
    %v2601 = vunpack.c.l.b16 %v1497
    %v2602 = vunpack.c.h.b16 %v1497
    %v2603 = vunpack.c.l.b16 %v1498
    %v2604 = vunpack.c.h.b16 %v1498
    %v2605 = vunpack.c.l.b16 %v1499
    %v2606 = vunpack.c.h.b16 %v1499
    %v2607 = vunpack.c.l.b16 %v1500
    %v2608 = vunpack.c.h.b16 %v1500
    %v2609 = vunpack.c.l.b16 %v1501
    %v2610 = vunpack.c.h.b16 %v1501
    %v2611 = vunpack.c.l.b16 %v1502
    %v2612 = vunpack.c.h.b16 %v1502
    %v2613 = vunpack.c.l.b16 %v1503
    %v2614 = vunpack.c.h.b16 %v1503
    %v2615 = vunpack.c.l.b16 %v1504
    %v2616 = vunpack.c.h.b16 %v1504
    %v2617 = vunpack.c.l.b16 %v1505
    %v2618 = vunpack.c.h.b16 %v1505
    %v2619 = vunpack.c.l.b16 %v1506
    %v2620 = vunpack.c.h.b16 %v1506
    %v2621 = vunpack.c.l.b16 %v1507
    %v2622 = vunpack.c.h.b16 %v1507
    %v2623 = vunpack.c.l.b16 %v1508
    %v2624 = vunpack.c.h.b16 %v1508
    %v2625 = vunpack.c.l.b16 %v1509
    %v2626 = vunpack.c.h.b16 %v1509
    %v2627 = vunpack.c.l.b16 %v1510
    %v2628 = vunpack.c.h.b16 %v1510
    %v2629 = vunpack.c.l.b16 %v1511
    %v2630 = vunpack.c.h.b16 %v1511
    %v2631 = vunpack.c.l.b16 %v1512
    %v2632 = vunpack.c.h.b16 %v1512
    %v2633 = vunpack.c.l.b16 %v1513
    %v2634 = vunpack.c.h.b16 %v1513
    %v2635 = vunpack.c.l.b16 %v1514
    %v2636 = vunpack.c.h.b16 %v1514
    %v2637 = vunpack.c.l.b16 %v1515
    %v2638 = vunpack.c.h.b16 %v1515
    %v2639 = vunpack.c.l.b16 %v1516
    %v2640 = vunpack.c.h.b16 %v1516
    %v2641 = vunpack.c.l.b16 %v1517
    %v2642 = vunpack.c.h.b16 %v1517
    %v2643 = vunpack.c.l.b16 %v1518
    %v2644 = vunpack.c.h.b16 %v1518
    %v2645 = vunpack.c.l.b16 %v1519
    %v2646 = vunpack.c.h.b16 %v1519
    %v2647 = vunpack.c.l.b16 %v1520
    %v2648 = vunpack.c.h.b16 %v1520
    %v2649 = vunpack.c.l.b16 %v1521
    %v2650 = vunpack.c.h.b16 %v1521
    %v2651 = vunpack.c.l.b16 %v1522
    %v2652 = vunpack.c.h.b16 %v1522
    %v2653 = vunpack.c.l.b16 %v1523
    %v2654 = vunpack.c.h.b16 %v1523
    %v2655 = vunpack.c.l.b16 %v1524
    %v2656 = vunpack.c.h.b16 %v1524
    %v2657 = vunpack.c.l.b16 %v1525
    %v2658 = vunpack.c.h.b16 %v1525
    %v2659 = vunpack.c.l.b16 %v1526
    %v2660 = vunpack.c.h.b16 %v1526
    %v2661 = vunpack.c.l.b16 %v1527
    %v2662 = vunpack.c.h.b16 %v1527
    %v2663 = vunpack.c.l.b16 %v1528
    %v2664 = vunpack.c.h.b16 %v1528
    %v2665 = vunpack.c.l.b16 %v1529
    %v2666 = vunpack.c.h.b16 %v1529
    %v2667 = vunpack.c.l.b16 %v1530
    %v2668 = vunpack.c.h.b16 %v1530
    %v2669 = vunpack.c.l.b16 %v1531
    %v2670 = vunpack.c.h.b16 %v1531
    %v2671 = vunpack.c.l.b16 %v1532
    %v2672 = vunpack.c.h.b16 %v1532
    %v2673 = vunpack.c.l.b16 %v1533
    %v2674 = vunpack.c.h.b16 %v1533
    %v2675 = vunpack.c.l.b16 %v1534
    %v2676 = vunpack.c.h.b16 %v1534
    %v2677 = vunpack.c.l.b16 %v1535
    %v2678 = vunpack.c.h.b16 %v1535
    %v2679 = vunpack.c.l.b16 %v1536
    %v2680 = vunpack.c.h.b16 %v1536
    %v2681 = vunpack.c.l.b16 %v1537
    %v2682 = vunpack.c.h.b16 %v1537
    %v2683 = vunpack.c.l.b16 %v1538
    %v2684 = vunpack.c.h.b16 %v1538
    %v2685 = vunpack.c.l.b16 %v1539
    %v2686 = vunpack.c.h.b16 %v1539
    %v2687 = vunpack.c.l.b16 %v1540
    %v2688 = vunpack.c.h.b16 %v1540
    %v2689 = vunpack.c.l.b16 %v1541
    %v2690 = vunpack.c.h.b16 %v1541
    %v2691 = vunpack.c.l.b16 %v1542
    %v2692 = vunpack.c.h.b16 %v1542
    %v2693 = vunpack.c.l.b16 %v1543
    %v2694 = vunpack.c.h.b16 %v1543
    %v2695 = vunpack.c.l.b16 %v1544
    %v2696 = vunpack.c.h.b16 %v1544
    %v2697 = vunpack.c.l.b16 %v1545
    %v2698 = vunpack.c.h.b16 %v1545
    %v2699 = vunpack.c.l.b16 %v1546
    %v2700 = vunpack.c.h.b16 %v1546
    %v2701 = vunpack.c.l.b16 %v1547
    %v2702 = vunpack.c.h.b16 %v1547
    %v2703 = vunpack.c.l.b16 %v1548
    %v2704 = vunpack.c.h.b16 %v1548
    %v2705 = vunpack.c.l.b16 %v1549
    %v2706 = vunpack.c.h.b16 %v1549
    %v2707 = vunpack.c.l.b16 %v1550
    %v2708 = vunpack.c.h.b16 %v1550
    %v2709 = vunpack.c.l.b16 %v1551
    %v2710 = vunpack.c.h.b16 %v1551
    %v2711 = vunpack.c.l.b16 %v1552
    %v2712 = vunpack.c.h.b16 %v1552
    %v2713 = vunpack.c.l.b16 %v1553
    %v2714 = vunpack.c.h.b16 %v1553
    %v2715 = vunpack.c.l.b16 %v1554
    %v2716 = vunpack.c.h.b16 %v1554
    %v2717 = vunpack.c.l.b16 %v1555
    %v2718 = vunpack.c.h.b16 %v1555
    %v2719 = vunpack.c.l.b16 %v1556
    %v2720 = vunpack.c.h.b16 %v1556
    %v2721 = vunpack.c.l.b16 %v1557
    %v2722 = vunpack.c.h.b16 %v1557
    %v2723 = vunpack.c.l.b16 %v1558
    %v2724 = vunpack.c.h.b16 %v1558
    %v2725 = vunpack.c.l.b16 %v1559
    %v2726 = vunpack.c.h.b16 %v1559
    %v2727 = vunpack.c.l.b16 %v1560
    %v2728 = vunpack.c.h.b16 %v1560
    %v2729 = vunpack.c.l.b16 %v1561
    %v2730 = vunpack.c.h.b16 %v1561
    %v2731 = vunpack.c.l.b16 %v1562
    %v2732 = vunpack.c.h.b16 %v1562
    %v2733 = vunpack.c.l.b16 %v1563
    %v2734 = vunpack.c.h.b16 %v1563
    %v2735 = vunpack.c.l.b16 %v1564
    %v2736 = vunpack.c.h.b16 %v1564
    %v2737 = vunpack.c.l.b16 %v1565
    %v2738 = vunpack.c.h.b16 %v1565
    %v2739 = vunpack.c.l.b16 %v1566
    %v2740 = vunpack.c.h.b16 %v1566
    %v2741 = vunpack.c.l.b16 %v1567
    %v2742 = vunpack.c.h.b16 %v1567
    %v2743 = vunpack.c.l.b16 %v1568
    %v2744 = vunpack.c.h.b16 %v1568
    %v2745 = vunpack.c.l.b16 %v1569
    %v2746 = vunpack.c.h.b16 %v1569
    %v2747 = vunpack.c.l.b16 %v1570
    %v2748 = vunpack.c.h.b16 %v1570
    %v2749 = vunpack.c.l.b16 %v1571
    %v2750 = vunpack.c.h.b16 %v1571
    %v2751 = vunpack.c.l.b16 %v1572
    %v2752 = vunpack.c.h.b16 %v1572
    %v2753 = vunpack.c.l.b16 %v1573
    %v2754 = vunpack.c.h.b16 %v1573
    %v2755 = vunpack.c.l.b16 %v1574
    %v2756 = vunpack.c.h.b16 %v1574
    %v2757 = vunpack.c.l.b16 %v1575
    %v2758 = vunpack.c.h.b16 %v1575
    %v2759 = vunpack.c.l.b16 %v1576
    %v2760 = vunpack.c.h.b16 %v1576
    %v2761 = vunpack.c.l.b16 %v1577
    %v2762 = vunpack.c.h.b16 %v1577
    %v2763 = vunpack.c.l.b16 %v1578
    %v2764 = vunpack.c.h.b16 %v1578
    %v2765 = vunpack.c.l.b16 %v1579
    %v2766 = vunpack.c.h.b16 %v1579
    %v2767 = vunpack.c.l.b16 %v1580
    %v2768 = vunpack.c.h.b16 %v1580
    %v2769 = vunpack.c.l.b16 %v1581
    %v2770 = vunpack.c.h.b16 %v1581
    %v2771 = vunpack.c.l.b16 %v1582
    %v2772 = vunpack.c.h.b16 %v1582
    %v2773 = vunpack.c.l.b16 %v1583
    %v2774 = vunpack.c.h.b16 %v1583
    %v2775 = vunpack.c.l.b16 %v1584
    %v2776 = vunpack.c.h.b16 %v1584
    %v2777 = vunpack.c.l.b16 %v1585
    %v2778 = vunpack.c.h.b16 %v1585
    %v2779 = vunpack.c.l.b16 %v1586
    %v2780 = vunpack.c.h.b16 %v1586
    %v2781 = vunpack.c.l.b16 %v1587
    %v2782 = vunpack.c.h.b16 %v1587
    %v2783 = vunpack.c.l.b16 %v1588
    %v2784 = vunpack.c.h.b16 %v1588
    %v2785 = vunpack.c.l.b16 %v1589
    %v2786 = vunpack.c.h.b16 %v1589
    %v2787 = vunpack.c.l.b16 %v1590
    %v2788 = vunpack.c.h.b16 %v1590
    %v2789 = vunpack.c.l.b16 %v1591
    %v2790 = vunpack.c.h.b16 %v1591
    %v2791 = vunpack.c.l.b16 %v1592
    %v2792 = vunpack.c.h.b16 %v1592
    %v2793 = vunpack.c.l.b16 %v1593
    %v2794 = vunpack.c.h.b16 %v1593
    %v2795 = vunpack.c.l.b16 %v1594
    %v2796 = vunpack.c.h.b16 %v1594
    %v2797 = vunpack.c.l.b16 %v1595
    %v2798 = vunpack.c.h.b16 %v1595
    %v2799 = vunpack.c.l.b16 %v1596
    %v2800 = vunpack.c.h.b16 %v1596
    %v2801 = vunpack.c.l.b16 %v1597
    %v2802 = vunpack.c.h.b16 %v1597
    %v2803 = vunpack.c.l.b16 %v1598
    %v2804 = vunpack.c.h.b16 %v1598
    %v2805 = vunpack.c.l.b16 %v1599
    %v2806 = vunpack.c.h.b16 %v1599
    %v2807 = vunpack.c.l.b16 %v1600
    %v2808 = vunpack.c.h.b16 %v1600
    %v2809 = vunpack.c.l.b16 %v1601
    %v2810 = vunpack.c.h.b16 %v1601
    %v2811 = vunpack.c.l.b16 %v1602
    %v2812 = vunpack.c.h.b16 %v1602
    %v2813 = vunpack.c.l.b16 %v1603
    %v2814 = vunpack.c.h.b16 %v1603
    %v2815 = vunpack.c.l.b16 %v1604
    %v2816 = vunpack.c.h.b16 %v1604
    %v2817 = vunpack.c.l.b16 %v1605
    %v2818 = vunpack.c.h.b16 %v1605
    %v2819 = vunpack.c.l.b16 %v1606
    %v2820 = vunpack.c.h.b16 %v1606
    %v2821 = vunpack.c.l.b16 %v1607
    %v2822 = vunpack.c.h.b16 %v1607
    %v2823 = vunpack.c.l.b16 %v1608
    %v2824 = vunpack.c.h.b16 %v1608
    %v2825 = vunpack.c.l.b16 %v1609
    %v2826 = vunpack.c.h.b16 %v1609
    %v2827 = vunpack.c.l.b16 %v1610
    %v2828 = vunpack.c.h.b16 %v1610
    %v2829 = vunpack.c.l.b16 %v1611
    %v2830 = vunpack.c.h.b16 %v1611
    %v2831 = vunpack.c.l.b16 %v1612
    %v2832 = vunpack.c.h.b16 %v1612
    %v2833 = vunpack.c.l.b16 %v1613
    %v2834 = vunpack.c.h.b16 %v1613
    %v2835 = vunpack.c.l.b16 %v1614
    %v2836 = vunpack.c.h.b16 %v1614
    %v2837 = vunpack.c.l.b16 %v1615
    %v2838 = vunpack.c.h.b16 %v1615
    %v2839 = vunpack.c.l.b16 %v1616
    %v2840 = vunpack.c.h.b16 %v1616
    %v2841 = vunpack.c.l.b16 %v1617
    %v2842 = vunpack.c.h.b16 %v1617
    %v2843 = vunpack.c.l.b16 %v1618
    %v2844 = vunpack.c.h.b16 %v1618
    %v2845 = vunpack.c.l.b16 %v1619
    %v2846 = vunpack.c.h.b16 %v1619
    %v2847 = vunpack.c.l.b16 %v1620
    %v2848 = vunpack.c.h.b16 %v1620
    %v2849 = vunpack.c.l.b16 %v1621
    %v2850 = vunpack.c.h.b16 %v1621
    %v2851 = vunpack.c.l.b16 %v1622
    %v2852 = vunpack.c.h.b16 %v1622
    %v2853 = vunpack.c.l.b16 %v1623
    %v2854 = vunpack.c.h.b16 %v1623
    %v2855 = vunpack.c.l.b16 %v1624
    %v2856 = vunpack.c.h.b16 %v1624
    %v2857 = vunpack.c.l.b16 %v1625
    %v2858 = vunpack.c.h.b16 %v1625
    %v2859 = vunpack.c.l.b16 %v1626
    %v2860 = vunpack.c.h.b16 %v1626
    %v2861 = vunpack.c.l.b16 %v1627
    %v2862 = vunpack.c.h.b16 %v1627
    %v2863 = vunpack.c.l.b16 %v1628
    %v2864 = vunpack.c.h.b16 %v1628
    %v2865 = vunpack.c.l.b16 %v1629
    %v2866 = vunpack.c.h.b16 %v1629
    %v2867 = vunpack.c.l.b16 %v1630
    %v2868 = vunpack.c.h.b16 %v1630
    %v2869 = vunpack.c.l.b16 %v1631
    %v2870 = vunpack.c.h.b16 %v1631
    %v2871 = vunpack.c.l.b16 %v1632
    %v2872 = vunpack.c.h.b16 %v1632
    %v2873 = vunpack.c.l.b16 %v1633
    %v2874 = vunpack.c.h.b16 %v1633
    %v2875 = vunpack.c.l.b16 %v1634
    %v2876 = vunpack.c.h.b16 %v1634
    %v2877 = vunpack.c.l.b16 %v1635
    %v2878 = vunpack.c.h.b16 %v1635
    %v2879 = vunpack.c.l.b16 %v1636
    %v2880 = vunpack.c.h.b16 %v1636
    %v2881 = vunpack.c.l.b16 %v1637
    %v2882 = vunpack.c.h.b16 %v1637
    %v2883 = vunpack.c.l.b16 %v1638
    %v2884 = vunpack.c.h.b16 %v1638
    %v2885 = vunpack.c.l.b16 %v1639
    %v2886 = vunpack.c.h.b16 %v1639
    %v2887 = vunpack.c.l.b16 %v1640
    %v2888 = vunpack.c.h.b16 %v1640
    %v2889 = vunpack.c.l.b16 %v1641
    %v2890 = vunpack.c.h.b16 %v1641
    %v2891 = vunpack.c.l.b16 %v1642
    %v2892 = vunpack.c.h.b16 %v1642
    %v2893 = vunpack.c.l.b16 %v1643
    %v2894 = vunpack.c.h.b16 %v1643
    %v2895 = vunpack.c.l.b16 %v1644
    %v2896 = vunpack.c.h.b16 %v1644
    %v2897 = vunpack.c.l.b16 %v1645
    %v2898 = vunpack.c.h.b16 %v1645
    %v2899 = vunpack.c.l.b16 %v1646
    %v2900 = vunpack.c.h.b16 %v1646
    %v2901 = vunpack.c.l.b16 %v1647
    %v2902 = vunpack.c.h.b16 %v1647
    %v2903 = vunpack.c.l.b16 %v1648
    %v2904 = vunpack.c.h.b16 %v1648
    %v2905 = vunpack.c.l.b16 %v1649
    %v2906 = vunpack.c.h.b16 %v1649
    %v2907 = vunpack.c.l.b16 %v1650
    %v2908 = vunpack.c.h.b16 %v1650
    %v2909 = vunpack.c.l.b16 %v1651
    %v2910 = vunpack.c.h.b16 %v1651
    %v2911 = vunpack.c.l.b16 %v1652
    %v2912 = vunpack.c.h.b16 %v1652
    %v2913 = vunpack.c.l.b16 %v1653
    %v2914 = vunpack.c.h.b16 %v1653
    %v2915 = vunpack.c.l.b16 %v1654
    %v2916 = vunpack.c.h.b16 %v1654
    %v2917 = vunpack.c.l.b16 %v1655
    %v2918 = vunpack.c.h.b16 %v1655
    %v2919 = vunpack.c.l.b16 %v1656
    %v2920 = vunpack.c.h.b16 %v1656
    %v2921 = vunpack.c.l.b16 %v1657
    %v2922 = vunpack.c.h.b16 %v1657
    %v2923 = vunpack.c.l.b16 %v1658
    %v2924 = vunpack.c.h.b16 %v1658
    %v2925 = vunpack.c.l.b16 %v1659
    %v2926 = vunpack.c.h.b16 %v1659
    %v2927 = vunpack.c.l.b16 %v1660
    %v2928 = vunpack.c.h.b16 %v1660
    %v2929 = vunpack.c.l.b16 %v1661
    %v2930 = vunpack.c.h.b16 %v1661
    %v2931 = vunpack.c.l.b16 %v1662
    %v2932 = vunpack.c.h.b16 %v1662
    %v2933 = vunpack.c.l.b16 %v1663
    %v2934 = vunpack.c.h.b16 %v1663
    %v2935 = vunpack.c.l.b16 %v1664
    %v2936 = vunpack.c.h.b16 %v1664
    %v2937 = vunpack.c.l.b16 %v1665
    %v2938 = vunpack.c.h.b16 %v1665
    %v2939 = vunpack.c.l.b16 %v1666
    %v2940 = vunpack.c.h.b16 %v1666
    %v2941 = vunpack.c.l.b16 %v1667
    %v2942 = vunpack.c.h.b16 %v1667
    %v2943 = vunpack.c.l.b16 %v1668
    %v2944 = vunpack.c.h.b16 %v1668
    %v2945 = vunpack.c.l.b16 %v1669
    %v2946 = vunpack.c.h.b16 %v1669
    %v2947 = vunpack.c.l.b16 %v1670
    %v2948 = vunpack.c.h.b16 %v1670
    %v2949 = vunpack.c.l.b16 %v1671
    %v2950 = vunpack.c.h.b16 %v1671
    %v2951 = vunpack.c.l.b16 %v1672
    %v2952 = vunpack.c.h.b16 %v1672
    %v2953 = vunpack.c.l.b16 %v1673
    %v2954 = vunpack.c.h.b16 %v1673
    %v2955 = vunpack.c.l.b16 %v1674
    %v2956 = vunpack.c.h.b16 %v1674
    %v2957 = vunpack.c.l.b16 %v1675
    %v2958 = vunpack.c.h.b16 %v1675
    %v2959 = vunpack.c.l.b16 %v1676
    %v2960 = vunpack.c.h.b16 %v1676
    %v2961 = vunpack.c.l.b16 %v1677
    %v2962 = vunpack.c.h.b16 %v1677
    %v2963 = vunpack.c.l.b16 %v1678
    %v2964 = vunpack.c.h.b16 %v1678
    %v2965 = vunpack.c.l.b16 %v1679
    %v2966 = vunpack.c.h.b16 %v1679
    %v2967 = vunpack.c.l.b16 %v1680
    %v2968 = vunpack.c.h.b16 %v1680
    %v2969 = vunpack.c.l.b16 %v1681
    %v2970 = vunpack.c.h.b16 %v1681
    %v2971 = vunpack.c.l.b16 %v1682
    %v2972 = vunpack.c.h.b16 %v1682
    %v2973 = vunpack.c.l.b16 %v1683
    %v2974 = vunpack.c.h.b16 %v1683
    %v2975 = vunpack.c.l.b16 %v1684
    %v2976 = vunpack.c.h.b16 %v1684
    %v2977 = vunpack.c.l.b16 %v1685
    %v2978 = vunpack.c.h.b16 %v1685
    %v2979 = vunpack.c.l.b16 %v1686
    %v2980 = vunpack.c.h.b16 %v1686
    %v2981 = vunpack.c.l.b16 %v1687
    %v2982 = vunpack.c.h.b16 %v1687
    %v2983 = vunpack.c.l.b16 %v1688
    %v2984 = vunpack.c.h.b16 %v1688
    %v2985 = vunpack.c.l.b16 %v1689
    %v2986 = vunpack.c.h.b16 %v1689
    %v2987 = vunpack.c.l.b16 %v1690
    %v2988 = vunpack.c.h.b16 %v1690
    %v2989 = vunpack.c.l.b16 %v1691
    %v2990 = vunpack.c.h.b16 %v1691
    %v2991 = vunpack.c.l.b16 %v1692
    %v2992 = vunpack.c.h.b16 %v1692
    %v2993 = vunpack.c.l.b16 %v1693
    %v2994 = vunpack.c.h.b16 %v1693
    %v2995 = vunpack.c.l.b16 %v1694
    %v2996 = vunpack.c.h.b16 %v1694
    %v2997 = vunpack.c.l.b16 %v1695
    %v2998 = vunpack.c.h.b16 %v1695
    %v2999 = vunpack.c.l.b16 %v1696
    %v3000 = vunpack.c.h.b16 %v1696
    %v3001 = vunpack.c.l.b16 %v1697
    %v3002 = vunpack.c.h.b16 %v1697
    %v3003 = vunpack.c.l.b16 %v1698
    %v3004 = vunpack.c.h.b16 %v1698
    %v3005 = vunpack.c.l.b16 %v1699
    %v3006 = vunpack.c.h.b16 %v1699
    %v3007 = vunpack.c.l.b16 %v1700
    %v3008 = vunpack.c.h.b16 %v1700
    %v3009 = vunpack.c.l.b16 %v1701
    %v3010 = vunpack.c.h.b16 %v1701
    %v3011 = vunpack.c.l.b16 %v1702
    %v3012 = vunpack.c.h.b16 %v1702
    %v3013 = vunpack.c.l.b16 %v1703
    %v3014 = vunpack.c.h.b16 %v1703
    %v3015 = vunpack.c.l.b16 %v1704
    %v3016 = vunpack.c.h.b16 %v1704
    %v3017 = vunpack.c.l.b16 %v1705
    %v3018 = vunpack.c.h.b16 %v1705
    %v3019 = vunpack.c.l.b16 %v1706
    %v3020 = vunpack.c.h.b16 %v1706
    %v3021 = vunpack.c.l.b16 %v1707
    %v3022 = vunpack.c.h.b16 %v1707
    %v3023 = vunpack.c.l.b16 %v1708
    %v3024 = vunpack.c.h.b16 %v1708
    %v3025 = vunpack.c.l.b16 %v1709
    %v3026 = vunpack.c.h.b16 %v1709
    %v3027 = vunpack.c.l.b16 %v1710
    %v3028 = vunpack.c.h.b16 %v1710
    %v3029 = vunpack.c.l.b16 %v1711
    %v3030 = vunpack.c.h.b16 %v1711
    %v3031 = vunpack.c.l.b16 %v1712
    %v3032 = vunpack.c.h.b16 %v1712
    %v3033 = vunpack.c.l.b16 %v1713
    %v3034 = vunpack.c.h.b16 %v1713
    %v3035 = vunpack.c.l.b16 %v1714
    %v3036 = vunpack.c.h.b16 %v1714
    %v3037 = vunpack.c.l.b16 %v1715
    %v3038 = vunpack.c.h.b16 %v1715
    %v3039 = vunpack.c.l.b16 %v1716
    %v3040 = vunpack.c.h.b16 %v1716
    %v3041 = vunpack.c.l.b16 %v1717
    %v3042 = vunpack.c.h.b16 %v1717
    %v3043 = vunpack.c.l.b16 %v1718
    %v3044 = vunpack.c.h.b16 %v1718
    %v3045 = vunpack.c.l.b16 %v1719
    %v3046 = vunpack.c.h.b16 %v1719
    %v3047 = vunpack.c.l.b16 %v1720
    %v3048 = vunpack.c.h.b16 %v1720
    %v3049 = vunpack.c.l.b16 %v1721
    %v3050 = vunpack.c.h.b16 %v1721
    %v3051 = vunpack.c.l.b16 %v1722
    %v3052 = vunpack.c.h.b16 %v1722
    %v3053 = vunpack.c.l.b16 %v1723
    %v3054 = vunpack.c.h.b16 %v1723
    %v3055 = vunpack.c.l.b16 %v1724
    %v3056 = vunpack.c.h.b16 %v1724
    %v3057 = vunpack.c.l.b16 %v1725
    %v3058 = vunpack.c.h.b16 %v1725
    %v3059 = vunpack.c.l.b16 %v1726
    %v3060 = vunpack.c.h.b16 %v1726
    %v3061 = vunpack.c.l.b16 %v1727
    %v3062 = vunpack.c.h.b16 %v1727
    %v3063 = vunpack.c.l.b16 %v1728
    %v3064 = vunpack.c.h.b16 %v1728
    %v3065 = vunpack.c.l.b16 %v1729
    %v3066 = vunpack.c.h.b16 %v1729
    %v3067 = vunpack.c.l.b16 %v1730
    %v3068 = vunpack.c.h.b16 %v1730
    %v3069 = vunpack.c.l.b16 %v1731
    %v3070 = vunpack.c.h.b16 %v1731
    %v3071 = vunpack.c.l.b16 %v1732
    %v3072 = vunpack.c.h.b16 %v1732
    %v3073 = vunpack.c.l.b16 %v1733
    %v3074 = vunpack.c.h.b16 %v1733
    %v3075 = vunpack.c.l.b16 %v1734
    %v3076 = vunpack.c.h.b16 %v1734
    %v3077 = vunpack.c.l.b16 %v1735
    %v3078 = vunpack.c.h.b16 %v1735
    %v3079 = vunpack.c.l.b16 %v1736
    %v3080 = vunpack.c.h.b16 %v1736
    %v3081 = vunpack.c.l.b16 %v1737
    %v3082 = vunpack.c.h.b16 %v1737
    %v3083 = vunpack.c.l.b16 %v1738
    %v3084 = vunpack.c.h.b16 %v1738
    %v3085 = vunpack.c.l.b16 %v1739
    %v3086 = vunpack.c.h.b16 %v1739
    %v3087 = vunpack.c.l.b16 %v1740
    %v3088 = vunpack.c.h.b16 %v1740
    %v3089 = vunpack.c.l.b16 %v1741
    %v3090 = vunpack.c.h.b16 %v1741
    %v3091 = vunpack.c.l.b16 %v1742
    %v3092 = vunpack.c.h.b16 %v1742
    %v3093 = vunpack.c.l.b16 %v1743
    %v3094 = vunpack.c.h.b16 %v1743
    %v3095 = vunpack.c.l.b16 %v1744
    %v3096 = vunpack.c.h.b16 %v1744
    %v3097 = vunpack.c.l.b16 %v1745
    %v3098 = vunpack.c.h.b16 %v1745
    %v3099 = vunpack.c.l.b16 %v1746
    %v3100 = vunpack.c.h.b16 %v1746
    %v3101 = vunpack.c.l.b16 %v1747
    %v3102 = vunpack.c.h.b16 %v1747
    %v3103 = vunpack.c.l.b16 %v1748
    %v3104 = vunpack.c.h.b16 %v1748
    %v3105 = vunpack.c.l.b16 %v1749
    %v3106 = vunpack.c.h.b16 %v1749
    %v3107 = vunpack.c.l.b16 %v1750
    %v3108 = vunpack.c.h.b16 %v1750
    %v3109 = vunpack.c.l.b16 %v1751
    %v3110 = vunpack.c.h.b16 %v1751
    %v3111 = vunpack.c.l.b16 %v1752
    %v3112 = vunpack.c.h.b16 %v1752
    %v3113 = vunpack.c.l.b16 %v1753
    %v3114 = vunpack.c.h.b16 %v1753
    %v3115 = vunpack.c.l.b16 %v1754
    %v3116 = vunpack.c.h.b16 %v1754
    %v3117 = vunpack.c.l.b16 %v1755
    %v3118 = vunpack.c.h.b16 %v1755
    %v3119 = vunpack.c.l.b16 %v1756
    %v3120 = vunpack.c.h.b16 %v1756
    %v3121 = vunpack.c.l.b16 %v1757
    %v3122 = vunpack.c.h.b16 %v1757
    %v3123 = vunpack.c.l.b16 %v1758
    %v3124 = vunpack.c.h.b16 %v1758
    %v3125 = vunpack.c.l.b16 %v1759
    %v3126 = vunpack.c.h.b16 %v1759
    %v3127 = vunpack.c.l.b16 %v1760
    %v3128 = vunpack.c.h.b16 %v1760
    %v3129 = vunpack.c.l.b16 %v1761
    %v3130 = vunpack.c.h.b16 %v1761
    %v3131 = vunpack.c.l.b16 %v1762
    %v3132 = vunpack.c.h.b16 %v1762
    %v3133 = vunpack.c.l.b16 %v1763
    %v3134 = vunpack.c.h.b16 %v1763
    %v3135 = vunpack.c.l.b16 %v1764
    %v3136 = vunpack.c.h.b16 %v1764
    %v3137 = vunpack.c.l.b16 %v1765
    %v3138 = vunpack.c.h.b16 %v1765
    %v3139 = vunpack.c.l.b16 %v1766
    %v3140 = vunpack.c.h.b16 %v1766
    %v3141 = vunpack.c.l.b16 %v1767
    %v3142 = vunpack.c.h.b16 %v1767
    %v3143 = vunpack.c.l.b16 %v1768
    %v3144 = vunpack.c.h.b16 %v1768
    %v3145 = vunpack.c.l.b16 %v1769
    %v3146 = vunpack.c.h.b16 %v1769
    %v3147 = vunpack.c.l.b16 %v1770
    %v3148 = vunpack.c.h.b16 %v1770
    %v3149 = vunpack.c.l.b16 %v1771
    %v3150 = vunpack.c.h.b16 %v1771
    %v3151 = vunpack.c.l.b16 %v1772
    %v3152 = vunpack.c.h.b16 %v1772
    %v3153 = vunpack.c.l.b16 %v1773
    %v3154 = vunpack.c.h.b16 %v1773
    %v3155 = vunpack.c.l.b16 %v1774
    %v3156 = vunpack.c.h.b16 %v1774
    %v3157 = vunpack.c.l.b16 %v1775
    %v3158 = vunpack.c.h.b16 %v1775
    %v3159 = vunpack.c.l.b16 %v1776
    %v3160 = vunpack.c.h.b16 %v1776
    %v3161 = vunpack.c.l.b16 %v1777
    %v3162 = vunpack.c.h.b16 %v1777
    %v3163 = vunpack.c.l.b16 %v1778
    %v3164 = vunpack.c.h.b16 %v1778
    %v3165 = vunpack.c.l.b16 %v1779
    %v3166 = vunpack.c.h.b16 %v1779
    %v3167 = vunpack.c.l.b16 %v1780
    %v3168 = vunpack.c.h.b16 %v1780
    %v3169 = vunpack.c.l.b16 %v1781
    %v3170 = vunpack.c.h.b16 %v1781
    %v3171 = vunpack.c.l.b16 %v1782
    %v3172 = vunpack.c.h.b16 %v1782
    %v3173 = vunpack.c.l.b16 %v1783
    %v3174 = vunpack.c.h.b16 %v1783
    %v3175 = vunpack.c.l.b16 %v1784
    %v3176 = vunpack.c.h.b16 %v1784
    %v3177 = vunpack.c.l.b16 %v1785
    %v3178 = vunpack.c.h.b16 %v1785
    %v3179 = vunpack.c.l.b16 %v1786
    %v3180 = vunpack.c.h.b16 %v1786
    %v3181 = vunpack.c.l.b16 %v1787
    %v3182 = vunpack.c.h.b16 %v1787
    %v3183 = vunpack.c.l.b16 %v1788
    %v3184 = vunpack.c.h.b16 %v1788
    %v3185 = vunpack.c.l.b16 %v1789
    %v3186 = vunpack.c.h.b16 %v1789
    %v3187 = vunpack.c.l.b16 %v1790
    %v3188 = vunpack.c.h.b16 %v1790
    %v3189 = vunpack.c.l.b16 %v1791
    %v3190 = vunpack.c.h.b16 %v1791
    %v3191 = vunpack.c.l.b16 %v1792
    %v3192 = vunpack.c.h.b16 %v1792
    %v3193 = vunpack.c.l.b16 %v1793
    %v3194 = vunpack.c.h.b16 %v1793
    %v3195 = vunpack.c.l.b16 %v1794
    %v3196 = vunpack.c.h.b16 %v1794
    %v3197 = vunpack.c.l.b16 %v1795
    %v3198 = vunpack.c.h.b16 %v1795
    %v3199 = vunpack.c.l.b16 %v1796
    %v3200 = vunpack.c.h.b16 %v1796
    %v3201 = vunpack.c.l.b16 %v1797
    %v3202 = vunpack.c.h.b16 %v1797
    %v3203 = vunpack.c.l.b16 %v1798
    %v3204 = vunpack.c.h.b16 %v1798
    %v3205 = vunpack.c.l.b16 %v1799
    %v3206 = vunpack.c.h.b16 %v1799
    %v3207 = vunpack.c.l.b16 %v1800
    %v3208 = vunpack.c.h.b16 %v1800
    %v3209 = vunpack.c.l.b16 %v1801
    %v3210 = vunpack.c.h.b16 %v1801
    %v3211 = vunpack.c.l.b16 %v1802
    %v3212 = vunpack.c.h.b16 %v1802
    %v3213 = vunpack.c.l.b16 %v1803
    %v3214 = vunpack.c.h.b16 %v1803
    %v3215 = vunpack.c.l.b16 %v1804
    %v3216 = vunpack.c.h.b16 %v1804
    %v3217 = vunpack.c.l.b16 %v1805
    %v3218 = vunpack.c.h.b16 %v1805
    %v3219 = vunpack.c.l.b16 %v1806
    %v3220 = vunpack.c.h.b16 %v1806
    %v3221 = vunpack.c.l.b16 %v1807
    %v3222 = vunpack.c.h.b16 %v1807
    %v3223 = vunpack.c.l.b16 %v1808
    %v3224 = vunpack.c.h.b16 %v1808
    %v3225 = vunpack.c.l.b16 %v1809
    %v3226 = vunpack.c.h.b16 %v1809
    %v3227 = vunpack.c.l.b16 %v1810
    %v3228 = vunpack.c.h.b16 %v1810
    %v3229 = vunpack.c.l.b16 %v1811
    %v3230 = vunpack.c.h.b16 %v1811
    %v3231 = vunpack.c.l.b16 %v1812
    %v3232 = vunpack.c.h.b16 %v1812
    %v3233 = vunpack.c.l.b16 %v1813
    %v3234 = vunpack.c.h.b16 %v1813
    %v3235 = vunpack.c.l.b16 %v1814
    %v3236 = vunpack.c.h.b16 %v1814
    %v3237 = vunpack.c.l.b16 %v1815
    %v3238 = vunpack.c.h.b16 %v1815
    %v3239 = vunpack.c.l.b16 %v1816
    %v3240 = vunpack.c.h.b16 %v1816
    %v3241 = vunpack.c.l.b16 %v1817
    %v3242 = vunpack.c.h.b16 %v1817
    %v3243 = vunpack.c.l.b16 %v1818
    %v3244 = vunpack.c.h.b16 %v1818
    %v3245 = vunpack.c.l.b16 %v1819
    %v3246 = vunpack.c.h.b16 %v1819
    %v3247 = vunpack.c.l.b16 %v1820
    %v3248 = vunpack.c.h.b16 %v1820
    %v3249 = vunpack.c.l.b16 %v1821
    %v3250 = vunpack.c.h.b16 %v1821
    %v3251 = vunpack.c.l.b16 %v1822
    %v3252 = vunpack.c.h.b16 %v1822
    %v3253 = vunpack.c.l.b16 %v1823
    %v3254 = vunpack.c.h.b16 %v1823
    %v3255 = vunpack.c.l.b16 %v1824
    %v3256 = vunpack.c.h.b16 %v1824
    %v3257 = vunpack.c.l.b16 %v1825
    %v3258 = vunpack.c.h.b16 %v1825
    %v3259 = vunpack.c.l.b16 %v1826
    %v3260 = vunpack.c.h.b16 %v1826
    %v3261 = vunpack.c.l.b16 %v1827
    %v3262 = vunpack.c.h.b16 %v1827
    %v3263 = vunpack.c.l.b16 %v1828
    %v3264 = vunpack.c.h.b16 %v1828
    %v3265 = vunpack.c.l.b16 %v1829
    %v3266 = vunpack.c.h.b16 %v1829
    %v3267 = vunpack.c.l.b16 %v1830
    %v3268 = vunpack.c.h.b16 %v1830
    %v3269 = vunpack.c.l.b16 %v1831
    %v3270 = vunpack.c.h.b16 %v1831
    %v3271 = vunpack.c.l.b16 %v1832
    %v3272 = vunpack.c.h.b16 %v1832
    %v3273 = vunpack.c.l.b16 %v1833
    %v3274 = vunpack.c.h.b16 %v1833
    %v3275 = vunpack.c.l.b16 %v1834
    %v3276 = vunpack.c.h.b16 %v1834
    %v3277 = vunpack.c.l.b16 %v1835
    %v3278 = vunpack.c.h.b16 %v1835
    %v3279 = vunpack.c.l.b16 %v1836
    %v3280 = vunpack.c.h.b16 %v1836
    %v3281 = vunpack.c.l.b16 %v1837
    %v3282 = vunpack.c.h.b16 %v1837
    %v3283 = vunpack.c.l.b16 %v1838
    %v3284 = vunpack.c.h.b16 %v1838
    %v3285 = vunpack.c.l.b16 %v1839
    %v3286 = vunpack.c.h.b16 %v1839
    %v3287 = vunpack.c.l.b16 %v1840
    %v3288 = vunpack.c.h.b16 %v1840
    %v3289 = vunpack.c.l.b16 %v1841
    %v3290 = vunpack.c.h.b16 %v1841
    %v3291 = vunpack.c.l.b16 %v1842
    %v3292 = vunpack.c.h.b16 %v1842
    %v3293 = vunpack.c.l.b16 %v1843
    %v3294 = vunpack.c.h.b16 %v1843
    %v3295 = vunpack.c.l.b16 %v1844
    %v3296 = vunpack.c.h.b16 %v1844
    %v3297 = vunpack.c.l.b16 %v1845
    %v3298 = vunpack.c.h.b16 %v1845
    %v3299 = vunpack.c.l.b16 %v1846
    %v3300 = vunpack.c.h.b16 %v1846
    %v3301 = vunpack.c.l.b16 %v1847
    %v3302 = vunpack.c.h.b16 %v1847
    %v3303 = vunpack.c.l.b16 %v1848
    %v3304 = vunpack.c.h.b16 %v1848
    %v3305 = vunpack.c.l.b16 %v1849
    %v3306 = vunpack.c.h.b16 %v1849
    %v3307 = vunpack.c.l.b16 %v1850
    %v3308 = vunpack.c.h.b16 %v1850
    %v3309 = vunpack.c.l.b16 %v1851
    %v3310 = vunpack.c.h.b16 %v1851
    %v3311 = vunpack.c.l.b16 %v1852
    %v3312 = vunpack.c.h.b16 %v1852
    %v3313 = vunpack.c.l.b16 %v1853
    %v3314 = vunpack.c.h.b16 %v1853
    %v3315 = vunpack.c.l.b16 %v1854
    %v3316 = vunpack.c.h.b16 %v1854
    %v3317 = vunpack.c.l.b16 %v1855
    %v3318 = vunpack.c.h.b16 %v1855
    %v3319 = vunpack.c.l.b16 %v1856
    %v3320 = vunpack.c.h.b16 %v1856
    %v3321 = vunpack.c.l.b16 %v1857
    %v3322 = vunpack.c.h.b16 %v1857
    %v3323 = vunpack.c.l.b16 %v1858
    %v3324 = vunpack.c.h.b16 %v1858
    %v3325 = vunpack.c.l.b16 %v1859
    %v3326 = vunpack.c.h.b16 %v1859
    %v3327 = vunpack.c.l.b16 %v1860
    %v3328 = vunpack.c.h.b16 %v1860
    %v3329 = vunpack.c.l.b16 %v1861
    %v3330 = vunpack.c.h.b16 %v1861
    %v3331 = vunpack.c.l.b16 %v1862
    %v3332 = vunpack.c.h.b16 %v1862
    %v3333 = vunpack.c.l.b16 %v1863
    %v3334 = vunpack.c.h.b16 %v1863
    %v3335 = vunpack.c.l.b16 %v1864
    %v3336 = vunpack.c.h.b16 %v1864
    %v3337 = vunpack.c.l.b16 %v1865
    %v3338 = vunpack.c.h.b16 %v1865
    %v3339 = vunpack.c.l.b16 %v1866
    %v3340 = vunpack.c.h.b16 %v1866
    %v3341 = vunpack.c.l.b16 %v1867
    %v3342 = vunpack.c.h.b16 %v1867
    %v3343 = vunpack.c.l.b16 %v1868
    %v3344 = vunpack.c.h.b16 %v1868
    %v3345 = vunpack.c.l.b16 %v1869
    %v3346 = vunpack.c.h.b16 %v1869
    %v3347 = vunpack.c.l.b16 %v1870
    %v3348 = vunpack.c.h.b16 %v1870
    %v3349 = vunpack.c.l.b16 %v1871
    %v3350 = vunpack.c.h.b16 %v1871
    %v3351 = vunpack.c.l.b16 %v1872
    %v3352 = vunpack.c.h.b16 %v1872
    %v3353 = vunpack.c.l.b16 %v1873
    %v3354 = vunpack.c.h.b16 %v1873
    %v3355 = vunpack.c.l.b16 %v1874
    %v3356 = vunpack.c.h.b16 %v1874
    %v3357 = vunpack.c.l.b16 %v1875
    %v3358 = vunpack.c.h.b16 %v1875
    %v3359 = vunpack.c.l.b16 %v1876
    %v3360 = vunpack.c.h.b16 %v1876
    %v3361 = vunpack.c.l.b16 %v1877
    %v3362 = vunpack.c.h.b16 %v1877
    %v3363 = vunpack.c.l.b16 %v1878
    %v3364 = vunpack.c.h.b16 %v1878
    %v3365 = vunpack.c.l.b16 %v1879
    %v3366 = vunpack.c.h.b16 %v1879
    %v3367 = vunpack.c.l.b16 %v1880
    %v3368 = vunpack.c.h.b16 %v1880
    %v3369 = vunpack.c.l.b16 %v1881
    %v3370 = vunpack.c.h.b16 %v1881
    %v3371 = vunpack.c.l.b16 %v1882
    %v3372 = vunpack.c.h.b16 %v1882
    %v3373 = vunpack.c.l.b16 %v1883
    %v3374 = vunpack.c.h.b16 %v1883
    %v3375 = vunpack.c.l.b16 %v1884
    %v3376 = vunpack.c.h.b16 %v1884
    %v3377 = vunpack.c.l.b16 %v1885
    %v3378 = vunpack.c.h.b16 %v1885
    %v3379 = vunpack.c.l.b16 %v1886
    %v3380 = vunpack.c.h.b16 %v1886
    %v3381 = vunpack.c.l.b16 %v1887
    %v3382 = vunpack.c.h.b16 %v1887
    %v3383 = vunpack.c.l.b16 %v1888
    %v3384 = vunpack.c.h.b16 %v1888
    %v3385 = vunpack.c.l.b16 %v1889
    %v3386 = vunpack.c.h.b16 %v1889
    %v3387 = vunpack.c.l.b16 %v1890
    %v3388 = vunpack.c.h.b16 %v1890
    %v3389 = vunpack.c.l.b16 %v1891
    %v3390 = vunpack.c.h.b16 %v1891
    %v3391 = vunpack.c.l.b16 %v1892
    %v3392 = vunpack.c.h.b16 %v1892
    %v3393 = vunpack.c.l.b16 %v1893
    %v3394 = vunpack.c.h.b16 %v1893
    %v3395 = vunpack.c.l.b16 %v1894
    %v3396 = vunpack.c.h.b16 %v1894
    %v3397 = vunpack.c.l.b16 %v1895
    %v3398 = vunpack.c.h.b16 %v1895
    %v3399 = vunpack.c.l.b16 %v1896
    %v3400 = vunpack.c.h.b16 %v1896
    %v3401 = vunpack.c.l.b16 %v1897
    %v3402 = vunpack.c.h.b16 %v1897
    %v3403 = vunpack.c.l.b16 %v1898
    %v3404 = vunpack.c.h.b16 %v1898
    %v3405 = vunpack.c.l.b16 %v1899
    %v3406 = vunpack.c.h.b16 %v1899
    %v3407 = vunpack.c.l.b16 %v1900
    %v3408 = vunpack.c.h.b16 %v1900
    %v3409 = vunpack.c.l.b16 %v1901
    %v3410 = vunpack.c.h.b16 %v1901
    %v3411 = vunpack.c.l.b16 %v1902
    %v3412 = vunpack.c.h.b16 %v1902
    %v3413 = vunpack.c.l.b16 %v1903
    %v3414 = vunpack.c.h.b16 %v1903
    %v3415 = vunpack.c.l.b16 %v1904
    %v3416 = vunpack.c.h.b16 %v1904
    %v3417 = vunpack.c.l.b16 %v1905
    %v3418 = vunpack.c.h.b16 %v1905
    %v3419 = vunpack.c.l.b16 %v1906
    %v3420 = vunpack.c.h.b16 %v1906
    %v3421 = vunpack.c.l.b16 %v1907
    %v3422 = vunpack.c.h.b16 %v1907
    %v3423 = vunpack.c.l.b16 %v1908
    %v3424 = vunpack.c.h.b16 %v1908
    %v3425 = vunpack.c.l.b16 %v1909
    %v3426 = vunpack.c.h.b16 %v1909
    %v3427 = vunpack.c.l.b16 %v1910
    %v3428 = vunpack.c.h.b16 %v1910
    %v3429 = vunpack.c.l.b16 %v1911
    %v3430 = vunpack.c.h.b16 %v1911
    %v3431 = vunpack.c.l.b16 %v1912
    %v3432 = vunpack.c.h.b16 %v1912
    %v3433 = vunpack.c.l.b16 %v1913
    %v3434 = vunpack.c.h.b16 %v1913
    %v3435 = vunpack.c.l.b16 %v1914
    %v3436 = vunpack.c.h.b16 %v1914
    %v3437 = vunpack.c.l.b16 %v1915
    %v3438 = vunpack.c.h.b16 %v1915
    %v3439 = vunpack.c.l.b16 %v1916
    %v3440 = vunpack.c.h.b16 %v1916
    %v3441 = vunpack.c.l.b16 %v1917
    %v3442 = vunpack.c.h.b16 %v1917
    %v3443 = vunpack.c.l.b16 %v1918
    %v3444 = vunpack.c.h.b16 %v1918
    %v3445 = vunpack.c.l.b16 %v1919
    %v3446 = vunpack.c.h.b16 %v1919
    %v3447 = vunpack.c.l.b16 %v1920
    %v3448 = vunpack.c.h.b16 %v1920
    %v3449 = vunpack.c.l.b16 %v1921
    %v3450 = vunpack.c.h.b16 %v1921
    %v3451 = vunpack.c.l.b16 %v1922
    %v3452 = vunpack.c.h.b16 %v1922
    %v3453 = vunpack.c.l.b16 %v1923
    %v3454 = vunpack.c.h.b16 %v1923
    %v3455 = vunpack.c.l.b16 %v1924
    %v3456 = vunpack.c.h.b16 %v1924
    %v3457 = vunpack.c.l.b16 %v1925
    %v3458 = vunpack.c.h.b16 %v1925
    %v3459 = vunpack.c.l.b16 %v1926
    %v3460 = vunpack.c.h.b16 %v1926
    %v3461 = vunpack.c.l.b16 %v1927
    %v3462 = vunpack.c.h.b16 %v1927
    %v3463 = vunpack.c.l.b16 %v1928
    %v3464 = vunpack.c.h.b16 %v1928
    %v3465 = vunpack.c.l.b16 %v1929
    %v3466 = vunpack.c.h.b16 %v1929
    %v3467 = vunpack.c.l.b16 %v1930
    %v3468 = vunpack.c.h.b16 %v1930
    %v3469 = vunpack.c.l.b16 %v1931
    %v3470 = vunpack.c.h.b16 %v1931
    %v3471 = vunpack.c.l.b16 %v1932
    %v3472 = vunpack.c.h.b16 %v1932
    %v3473 = vunpack.c.l.b16 %v1933
    %v3474 = vunpack.c.h.b16 %v1933
    %v3475 = vunpack.c.l.b16 %v1934
    %v3476 = vunpack.c.h.b16 %v1934
    %v3477 = vunpack.c.l.b16 %v1935
    %v3478 = vunpack.c.h.b16 %v1935
    %v3479 = vunpack.c.l.b16 %v1936
    %v3480 = vunpack.c.h.b16 %v1936
    %v3481 = vunpack.c.l.b16 %v1937
    %v3482 = vunpack.c.h.b16 %v1937
    %v3483 = vunpack.c.l.b16 %v1938
    %v3484 = vunpack.c.h.b16 %v1938
    %v3485 = vunpack.c.l.b16 %v1939
    %v3486 = vunpack.c.h.b16 %v1939
    %v3487 = vunpack.c.l.b16 %v1940
    %v3488 = vunpack.c.h.b16 %v1940
    %v3489 = vunpack.c.l.b16 %v1941
    %v3490 = vunpack.c.h.b16 %v1941
    %v3491 = vunpack.c.l.b16 %v1942
    %v3492 = vunpack.c.h.b16 %v1942
    %v3493 = vunpack.c.l.b16 %v1943
    %v3494 = vunpack.c.h.b16 %v1943
    %v3495 = vunpack.c.l.b16 %v1944
    %v3496 = vunpack.c.h.b16 %v1944
    %v3497 = vunpack.c.l.b16 %v1945
    %v3498 = vunpack.c.h.b16 %v1945
    %v3499 = vunpack.c.l.b16 %v1946
    %v3500 = vunpack.c.h.b16 %v1946
    %v3501 = vunpack.c.l.b16 %v1947
    %v3502 = vunpack.c.h.b16 %v1947
    %v3503 = vunpack.c.l.b16 %v1948
    %v3504 = vunpack.c.h.b16 %v1948
    %v3505 = vunpack.c.l.b16 %v1949
    %v3506 = vunpack.c.h.b16 %v1949
    %v3507 = vunpack.c.l.b16 %v1950
    %v3508 = vunpack.c.h.b16 %v1950
    %v3509 = vunpack.c.l.b16 %v1951
    %v3510 = vunpack.c.h.b16 %v1951
    %v3511 = vunpack.c.l.b16 %v1952
    %v3512 = vunpack.c.h.b16 %v1952
    %v3513 = vunpack.c.l.b16 %v1953
    %v3514 = vunpack.c.h.b16 %v1953
    %v3515 = vunpack.c.l.b16 %v1954
    %v3516 = vunpack.c.h.b16 %v1954
    %v3517 = vunpack.c.l.b16 %v1955
    %v3518 = vunpack.c.h.b16 %v1955
    %v3519 = vunpack.c.l.b16 %v1956
    %v3520 = vunpack.c.h.b16 %v1956
    %v3521 = vunpack.c.l.b16 %v1957
    %v3522 = vunpack.c.h.b16 %v1957
    %v3523 = vunpack.c.l.b16 %v1958
    %v3524 = vunpack.c.h.b16 %v1958
    %v3525 = vunpack.c.l.b16 %v1959
    %v3526 = vunpack.c.h.b16 %v1959
    %v3527 = vunpack.c.l.b16 %v1960
    %v3528 = vunpack.c.h.b16 %v1960
    %v3529 = vunpack.c.l.b16 %v1961
    %v3530 = vunpack.c.h.b16 %v1961
    %v3531 = vunpack.c.l.b16 %v1962
    %v3532 = vunpack.c.h.b16 %v1962
    %v3533 = vunpack.c.l.b16 %v1963
    %v3534 = vunpack.c.h.b16 %v1963
    %v3535 = vunpack.c.l.b16 %v1964
    %v3536 = vunpack.c.h.b16 %v1964
    %v3537 = vunpack.c.l.b16 %v1965
    %v3538 = vunpack.c.h.b16 %v1965
    %v3539 = vunpack.c.l.b16 %v1966
    %v3540 = vunpack.c.h.b16 %v1966
    %v3541 = vunpack.c.l.b16 %v1967
    %v3542 = vunpack.c.h.b16 %v1967
    %v3543 = vunpack.c.l.b16 %v1968
    %v3544 = vunpack.c.h.b16 %v1968
    %v3545 = vunpack.c.l.b16 %v1969
    %v3546 = vunpack.c.h.b16 %v1969
    %v3547 = vunpack.c.l.b16 %v1970
    %v3548 = vunpack.c.h.b16 %v1970
    %v3549 = vunpack.c.l.b16 %v1971
    %v3550 = vunpack.c.h.b16 %v1971
    %v3551 = vunpack.c.l.b16 %v1972
    %v3552 = vunpack.c.h.b16 %v1972
    %v3553 = vunpack.c.l.b16 %v1973
    %v3554 = vunpack.c.h.b16 %v1973
    %v3555 = vunpack.c.l.b16 %v1974
    %v3556 = vunpack.c.h.b16 %v1974
    %v3557 = vunpack.c.l.b16 %v1975
    %v3558 = vunpack.c.h.b16 %v1975
    %v3559 = vunpack.c.l.b16 %v1976
    %v3560 = vunpack.c.h.b16 %v1976
    %v3561 = vunpack.c.l.b16 %v1977
    %v3562 = vunpack.c.h.b16 %v1977
    %v3563 = vunpack.c.l.b16 %v1978
    %v3564 = vunpack.c.h.b16 %v1978
    %v3565 = vunpack.c.l.b16 %v1979
    %v3566 = vunpack.c.h.b16 %v1979
    %v3567 = vunpack.c.l.b16 %v1980
    %v3568 = vunpack.c.h.b16 %v1980
    %v3569 = vunpack.c.l.b16 %v1981
    %v3570 = vunpack.c.h.b16 %v1981
    %v3571 = vunpack.c.l.b16 %v1982
    %v3572 = vunpack.c.h.b16 %v1982
    %v3573 = vunpack.c.l.b16 %v1983
    %v3574 = vunpack.c.h.b16 %v1983
    %v3575 = vunpack.c.l.b16 %v1984
    %v3576 = vunpack.c.h.b16 %v1984
    %v3577 = vunpack.c.l.b16 %v1985
    %v3578 = vunpack.c.h.b16 %v1985
    %v3579 = vunpack.c.l.b16 %v1986
    %v3580 = vunpack.c.h.b16 %v1986
    %v3581 = vunpack.c.l.b16 %v1987
    %v3582 = vunpack.c.h.b16 %v1987
    %v3583 = vunpack.c.l.b16 %v1988
    %v3584 = vunpack.c.h.b16 %v1988
    %v3585 = vpack.c.b16 %v2577, %v2561
    %v3586 = vpack.c.b16 %v2578, %v2562
    %v3587 = vpack.c.b16 %v2579, %v2563
    %v3588 = vpack.c.b16 %v2580, %v2564
    %v3589 = vpack.c.b16 %v2581, %v2565
    %v3590 = vpack.c.b16 %v2582, %v2566
    %v3591 = vpack.c.b16 %v2583, %v2567
    %v3592 = vpack.c.b16 %v2584, %v2568
    %v3593 = vpack.c.b16 %v2585, %v2569
    %v3594 = vpack.c.b16 %v2586, %v2570
    %v3595 = vpack.c.b16 %v2587, %v2571
    %v3596 = vpack.c.b16 %v2588, %v2572
    %v3597 = vpack.c.b16 %v2589, %v2573
    %v3598 = vpack.c.b16 %v2590, %v2574
    %v3599 = vpack.c.b16 %v2591, %v2575
    %v3600 = vpack.c.b16 %v2592, %v2576
    %v3601 = vpack.c.b16 %v2609, %v2593
    %v3602 = vpack.c.b16 %v2610, %v2594
    %v3603 = vpack.c.b16 %v2611, %v2595
    %v3604 = vpack.c.b16 %v2612, %v2596
    %v3605 = vpack.c.b16 %v2613, %v2597
    %v3606 = vpack.c.b16 %v2614, %v2598
    %v3607 = vpack.c.b16 %v2615, %v2599
    %v3608 = vpack.c.b16 %v2616, %v2600
    %v3609 = vpack.c.b16 %v2617, %v2601
    %v3610 = vpack.c.b16 %v2618, %v2602
    %v3611 = vpack.c.b16 %v2619, %v2603
    %v3612 = vpack.c.b16 %v2620, %v2604
    %v3613 = vpack.c.b16 %v2621, %v2605
    %v3614 = vpack.c.b16 %v2622, %v2606
    %v3615 = vpack.c.b16 %v2623, %v2607
    %v3616 = vpack.c.b16 %v2624, %v2608
    %v3617 = vpack.c.b16 %v2641, %v2625
    %v3618 = vpack.c.b16 %v2642, %v2626
    %v3619 = vpack.c.b16 %v2643, %v2627
    %v3620 = vpack.c.b16 %v2644, %v2628
    %v3621 = vpack.c.b16 %v2645, %v2629
    %v3622 = vpack.c.b16 %v2646, %v2630
    %v3623 = vpack.c.b16 %v2647, %v2631
    %v3624 = vpack.c.b16 %v2648, %v2632
    %v3625 = vpack.c.b16 %v2649, %v2633
    %v3626 = vpack.c.b16 %v2650, %v2634
    %v3627 = vpack.c.b16 %v2651, %v2635
    %v3628 = vpack.c.b16 %v2652, %v2636
    %v3629 = vpack.c.b16 %v2653, %v2637
    %v3630 = vpack.c.b16 %v2654, %v2638
    %v3631 = vpack.c.b16 %v2655, %v2639
    %v3632 = vpack.c.b16 %v2656, %v2640
    %v3633 = vpack.c.b16 %v2673, %v2657
    %v3634 = vpack.c.b16 %v2674, %v2658
    %v3635 = vpack.c.b16 %v2675, %v2659
    %v3636 = vpack.c.b16 %v2676, %v2660
    %v3637 = vpack.c.b16 %v2677, %v2661
    %v3638 = vpack.c.b16 %v2678, %v2662
    %v3639 = vpack.c.b16 %v2679, %v2663
    %v3640 = vpack.c.b16 %v2680, %v2664
    %v3641 = vpack.c.b16 %v2681, %v2665
    %v3642 = vpack.c.b16 %v2682, %v2666
    %v3643 = vpack.c.b16 %v2683, %v2667
    %v3644 = vpack.c.b16 %v2684, %v2668
    %v3645 = vpack.c.b16 %v2685, %v2669
    %v3646 = vpack.c.b16 %v2686, %v2670
    %v3647 = vpack.c.b16 %v2687, %v2671
    %v3648 = vpack.c.b16 %v2688, %v2672
    %v3649 = vpack.c.b16 %v2705, %v2689
    %v3650 = vpack.c.b16 %v2706, %v2690
    %v3651 = vpack.c.b16 %v2707, %v2691
    %v3652 = vpack.c.b16 %v2708, %v2692
    %v3653 = vpack.c.b16 %v2709, %v2693
    %v3654 = vpack.c.b16 %v2710, %v2694
    %v3655 = vpack.c.b16 %v2711, %v2695
    %v3656 = vpack.c.b16 %v2712, %v2696
    %v3657 = vpack.c.b16 %v2713, %v2697
    %v3658 = vpack.c.b16 %v2714, %v2698
    %v3659 = vpack.c.b16 %v2715, %v2699
    %v3660 = vpack.c.b16 %v2716, %v2700
    %v3661 = vpack.c.b16 %v2717, %v2701
    %v3662 = vpack.c.b16 %v2718, %v2702
    %v3663 = vpack.c.b16 %v2719, %v2703
    %v3664 = vpack.c.b16 %v2720, %v2704
    %v3665 = vpack.c.b16 %v2737, %v2721
    %v3666 = vpack.c.b16 %v2738, %v2722
    %v3667 = vpack.c.b16 %v2739, %v2723
    %v3668 = vpack.c.b16 %v2740, %v2724
    %v3669 = vpack.c.b16 %v2741, %v2725
    %v3670 = vpack.c.b16 %v2742, %v2726
    %v3671 = vpack.c.b16 %v2743, %v2727
    %v3672 = vpack.c.b16 %v2744, %v2728
    %v3673 = vpack.c.b16 %v2745, %v2729
    %v3674 = vpack.c.b16 %v2746, %v2730
    %v3675 = vpack.c.b16 %v2747, %v2731
    %v3676 = vpack.c.b16 %v2748, %v2732
    %v3677 = vpack.c.b16 %v2749, %v2733
    %v3678 = vpack.c.b16 %v2750, %v2734
    %v3679 = vpack.c.b16 %v2751, %v2735
    %v3680 = vpack.c.b16 %v2752, %v2736
    %v3681 = vpack.c.b16 %v2769, %v2753
    %v3682 = vpack.c.b16 %v2770, %v2754
    %v3683 = vpack.c.b16 %v2771, %v2755
    %v3684 = vpack.c.b16 %v2772, %v2756
    %v3685 = vpack.c.b16 %v2773, %v2757
    %v3686 = vpack.c.b16 %v2774, %v2758
    %v3687 = vpack.c.b16 %v2775, %v2759
    %v3688 = vpack.c.b16 %v2776, %v2760
    %v3689 = vpack.c.b16 %v2777, %v2761
    %v3690 = vpack.c.b16 %v2778, %v2762
    %v3691 = vpack.c.b16 %v2779, %v2763
    %v3692 = vpack.c.b16 %v2780, %v2764
    %v3693 = vpack.c.b16 %v2781, %v2765
    %v3694 = vpack.c.b16 %v2782, %v2766
    %v3695 = vpack.c.b16 %v2783, %v2767
    %v3696 = vpack.c.b16 %v2784, %v2768
    %v3697 = vpack.c.b16 %v2801, %v2785
    %v3698 = vpack.c.b16 %v2802, %v2786
    %v3699 = vpack.c.b16 %v2803, %v2787
    %v3700 = vpack.c.b16 %v2804, %v2788
    %v3701 = vpack.c.b16 %v2805, %v2789
    %v3702 = vpack.c.b16 %v2806, %v2790
    %v3703 = vpack.c.b16 %v2807, %v2791
    %v3704 = vpack.c.b16 %v2808, %v2792
    %v3705 = vpack.c.b16 %v2809, %v2793
    %v3706 = vpack.c.b16 %v2810, %v2794
    %v3707 = vpack.c.b16 %v2811, %v2795
    %v3708 = vpack.c.b16 %v2812, %v2796
    %v3709 = vpack.c.b16 %v2813, %v2797
    %v3710 = vpack.c.b16 %v2814, %v2798
    %v3711 = vpack.c.b16 %v2815, %v2799
    %v3712 = vpack.c.b16 %v2816, %v2800
    %v3713 = vpack.c.b16 %v2833, %v2817
    %v3714 = vpack.c.b16 %v2834, %v2818
    %v3715 = vpack.c.b16 %v2835, %v2819
    %v3716 = vpack.c.b16 %v2836, %v2820
    %v3717 = vpack.c.b16 %v2837, %v2821
    %v3718 = vpack.c.b16 %v2838, %v2822
    %v3719 = vpack.c.b16 %v2839, %v2823
    %v3720 = vpack.c.b16 %v2840, %v2824
    %v3721 = vpack.c.b16 %v2841, %v2825
    %v3722 = vpack.c.b16 %v2842, %v2826
    %v3723 = vpack.c.b16 %v2843, %v2827
    %v3724 = vpack.c.b16 %v2844, %v2828
    %v3725 = vpack.c.b16 %v2845, %v2829
    %v3726 = vpack.c.b16 %v2846, %v2830
    %v3727 = vpack.c.b16 %v2847, %v2831
    %v3728 = vpack.c.b16 %v2848, %v2832
    %v3729 = vpack.c.b16 %v2865, %v2849
    %v3730 = vpack.c.b16 %v2866, %v2850
    %v3731 = vpack.c.b16 %v2867, %v2851
    %v3732 = vpack.c.b16 %v2868, %v2852
    %v3733 = vpack.c.b16 %v2869, %v2853
    %v3734 = vpack.c.b16 %v2870, %v2854
    %v3735 = vpack.c.b16 %v2871, %v2855
    %v3736 = vpack.c.b16 %v2872, %v2856
    %v3737 = vpack.c.b16 %v2873, %v2857
    %v3738 = vpack.c.b16 %v2874, %v2858
    %v3739 = vpack.c.b16 %v2875, %v2859
    %v3740 = vpack.c.b16 %v2876, %v2860
    %v3741 = vpack.c.b16 %v2877, %v2861
    %v3742 = vpack.c.b16 %v2878, %v2862
    %v3743 = vpack.c.b16 %v2879, %v2863
    %v3744 = vpack.c.b16 %v2880, %v2864
    %v3745 = vpack.c.b16 %v2897, %v2881
    %v3746 = vpack.c.b16 %v2898, %v2882
    %v3747 = vpack.c.b16 %v2899, %v2883
    %v3748 = vpack.c.b16 %v2900, %v2884
    %v3749 = vpack.c.b16 %v2901, %v2885
    %v3750 = vpack.c.b16 %v2902, %v2886
    %v3751 = vpack.c.b16 %v2903, %v2887
    %v3752 = vpack.c.b16 %v2904, %v2888
    %v3753 = vpack.c.b16 %v2905, %v2889
    %v3754 = vpack.c.b16 %v2906, %v2890
    %v3755 = vpack.c.b16 %v2907, %v2891
    %v3756 = vpack.c.b16 %v2908, %v2892
    %v3757 = vpack.c.b16 %v2909, %v2893
    %v3758 = vpack.c.b16 %v2910, %v2894
    %v3759 = vpack.c.b16 %v2911, %v2895
    %v3760 = vpack.c.b16 %v2912, %v2896
    %v3761 = vpack.c.b16 %v2929, %v2913
    %v3762 = vpack.c.b16 %v2930, %v2914
    %v3763 = vpack.c.b16 %v2931, %v2915
    %v3764 = vpack.c.b16 %v2932, %v2916
    %v3765 = vpack.c.b16 %v2933, %v2917
    %v3766 = vpack.c.b16 %v2934, %v2918
    %v3767 = vpack.c.b16 %v2935, %v2919
    %v3768 = vpack.c.b16 %v2936, %v2920
    %v3769 = vpack.c.b16 %v2937, %v2921
    %v3770 = vpack.c.b16 %v2938, %v2922
    %v3771 = vpack.c.b16 %v2939, %v2923
    %v3772 = vpack.c.b16 %v2940, %v2924
    %v3773 = vpack.c.b16 %v2941, %v2925
    %v3774 = vpack.c.b16 %v2942, %v2926
    %v3775 = vpack.c.b16 %v2943, %v2927
    %v3776 = vpack.c.b16 %v2944, %v2928
    %v3777 = vpack.c.b16 %v2961, %v2945
    %v3778 = vpack.c.b16 %v2962, %v2946
    %v3779 = vpack.c.b16 %v2963, %v2947
    %v3780 = vpack.c.b16 %v2964, %v2948
    %v3781 = vpack.c.b16 %v2965, %v2949
    %v3782 = vpack.c.b16 %v2966, %v2950
    %v3783 = vpack.c.b16 %v2967, %v2951
    %v3784 = vpack.c.b16 %v2968, %v2952
    %v3785 = vpack.c.b16 %v2969, %v2953
    %v3786 = vpack.c.b16 %v2970, %v2954
    %v3787 = vpack.c.b16 %v2971, %v2955
    %v3788 = vpack.c.b16 %v2972, %v2956
    %v3789 = vpack.c.b16 %v2973, %v2957
    %v3790 = vpack.c.b16 %v2974, %v2958
    %v3791 = vpack.c.b16 %v2975, %v2959
    %v3792 = vpack.c.b16 %v2976, %v2960
    %v3793 = vpack.c.b16 %v2993, %v2977
    %v3794 = vpack.c.b16 %v2994, %v2978
    %v3795 = vpack.c.b16 %v2995, %v2979
    %v3796 = vpack.c.b16 %v2996, %v2980
    %v3797 = vpack.c.b16 %v2997, %v2981
    %v3798 = vpack.c.b16 %v2998, %v2982
    %v3799 = vpack.c.b16 %v2999, %v2983
    %v3800 = vpack.c.b16 %v3000, %v2984
    %v3801 = vpack.c.b16 %v3001, %v2985
    %v3802 = vpack.c.b16 %v3002, %v2986
    %v3803 = vpack.c.b16 %v3003, %v2987
    %v3804 = vpack.c.b16 %v3004, %v2988
    %v3805 = vpack.c.b16 %v3005, %v2989
    %v3806 = vpack.c.b16 %v3006, %v2990
    %v3807 = vpack.c.b16 %v3007, %v2991
    %v3808 = vpack.c.b16 %v3008, %v2992
    %v3809 = vpack.c.b16 %v3025, %v3009
    %v3810 = vpack.c.b16 %v3026, %v3010
    %v3811 = vpack.c.b16 %v3027, %v3011
    %v3812 = vpack.c.b16 %v3028, %v3012
    %v3813 = vpack.c.b16 %v3029, %v3013
    %v3814 = vpack.c.b16 %v3030, %v3014
    %v3815 = vpack.c.b16 %v3031, %v3015
    %v3816 = vpack.c.b16 %v3032, %v3016
    %v3817 = vpack.c.b16 %v3033, %v3017
    %v3818 = vpack.c.b16 %v3034, %v3018
    %v3819 = vpack.c.b16 %v3035, %v3019
    %v3820 = vpack.c.b16 %v3036, %v3020
    %v3821 = vpack.c.b16 %v3037, %v3021
    %v3822 = vpack.c.b16 %v3038, %v3022
    %v3823 = vpack.c.b16 %v3039, %v3023
    %v3824 = vpack.c.b16 %v3040, %v3024
    %v3825 = vpack.c.b16 %v3057, %v3041
    %v3826 = vpack.c.b16 %v3058, %v3042
    %v3827 = vpack.c.b16 %v3059, %v3043
    %v3828 = vpack.c.b16 %v3060, %v3044
    %v3829 = vpack.c.b16 %v3061, %v3045
    %v3830 = vpack.c.b16 %v3062, %v3046
    %v3831 = vpack.c.b16 %v3063, %v3047
    %v3832 = vpack.c.b16 %v3064, %v3048
    %v3833 = vpack.c.b16 %v3065, %v3049
    %v3834 = vpack.c.b16 %v3066, %v3050
    %v3835 = vpack.c.b16 %v3067, %v3051
    %v3836 = vpack.c.b16 %v3068, %v3052
    %v3837 = vpack.c.b16 %v3069, %v3053
    %v3838 = vpack.c.b16 %v3070, %v3054
    %v3839 = vpack.c.b16 %v3071, %v3055
    %v3840 = vpack.c.b16 %v3072, %v3056
    %v3841 = vpack.c.b16 %v3089, %v3073
    %v3842 = vpack.c.b16 %v3090, %v3074
    %v3843 = vpack.c.b16 %v3091, %v3075
    %v3844 = vpack.c.b16 %v3092, %v3076
    %v3845 = vpack.c.b16 %v3093, %v3077
    %v3846 = vpack.c.b16 %v3094, %v3078
    %v3847 = vpack.c.b16 %v3095, %v3079
    %v3848 = vpack.c.b16 %v3096, %v3080
    %v3849 = vpack.c.b16 %v3097, %v3081
    %v3850 = vpack.c.b16 %v3098, %v3082
    %v3851 = vpack.c.b16 %v3099, %v3083
    %v3852 = vpack.c.b16 %v3100, %v3084
    %v3853 = vpack.c.b16 %v3101, %v3085
    %v3854 = vpack.c.b16 %v3102, %v3086
    %v3855 = vpack.c.b16 %v3103, %v3087
    %v3856 = vpack.c.b16 %v3104, %v3088
    %v3857 = vpack.c.b16 %v3121, %v3105
    %v3858 = vpack.c.b16 %v3122, %v3106
    %v3859 = vpack.c.b16 %v3123, %v3107
    %v3860 = vpack.c.b16 %v3124, %v3108
    %v3861 = vpack.c.b16 %v3125, %v3109
    %v3862 = vpack.c.b16 %v3126, %v3110
    %v3863 = vpack.c.b16 %v3127, %v3111
    %v3864 = vpack.c.b16 %v3128, %v3112
    %v3865 = vpack.c.b16 %v3129, %v3113
    %v3866 = vpack.c.b16 %v3130, %v3114
    %v3867 = vpack.c.b16 %v3131, %v3115
    %v3868 = vpack.c.b16 %v3132, %v3116
    %v3869 = vpack.c.b16 %v3133, %v3117
    %v3870 = vpack.c.b16 %v3134, %v3118
    %v3871 = vpack.c.b16 %v3135, %v3119
    %v3872 = vpack.c.b16 %v3136, %v3120
    %v3873 = vpack.c.b16 %v3153, %v3137
    %v3874 = vpack.c.b16 %v3154, %v3138
    %v3875 = vpack.c.b16 %v3155, %v3139
    %v3876 = vpack.c.b16 %v3156, %v3140
    %v3877 = vpack.c.b16 %v3157, %v3141
    %v3878 = vpack.c.b16 %v3158, %v3142
    %v3879 = vpack.c.b16 %v3159, %v3143
    %v3880 = vpack.c.b16 %v3160, %v3144
    %v3881 = vpack.c.b16 %v3161, %v3145
    %v3882 = vpack.c.b16 %v3162, %v3146
    %v3883 = vpack.c.b16 %v3163, %v3147
    %v3884 = vpack.c.b16 %v3164, %v3148
    %v3885 = vpack.c.b16 %v3165, %v3149
    %v3886 = vpack.c.b16 %v3166, %v3150
    %v3887 = vpack.c.b16 %v3167, %v3151
    %v3888 = vpack.c.b16 %v3168, %v3152
    %v3889 = vpack.c.b16 %v3185, %v3169
    %v3890 = vpack.c.b16 %v3186, %v3170
    %v3891 = vpack.c.b16 %v3187, %v3171
    %v3892 = vpack.c.b16 %v3188, %v3172
    %v3893 = vpack.c.b16 %v3189, %v3173
    %v3894 = vpack.c.b16 %v3190, %v3174
    %v3895 = vpack.c.b16 %v3191, %v3175
    %v3896 = vpack.c.b16 %v3192, %v3176
    %v3897 = vpack.c.b16 %v3193, %v3177
    %v3898 = vpack.c.b16 %v3194, %v3178
    %v3899 = vpack.c.b16 %v3195, %v3179
    %v3900 = vpack.c.b16 %v3196, %v3180
    %v3901 = vpack.c.b16 %v3197, %v3181
    %v3902 = vpack.c.b16 %v3198, %v3182
    %v3903 = vpack.c.b16 %v3199, %v3183
    %v3904 = vpack.c.b16 %v3200, %v3184
    %v3905 = vpack.c.b16 %v3217, %v3201
    %v3906 = vpack.c.b16 %v3218, %v3202
    %v3907 = vpack.c.b16 %v3219, %v3203
    %v3908 = vpack.c.b16 %v3220, %v3204
    %v3909 = vpack.c.b16 %v3221, %v3205
    %v3910 = vpack.c.b16 %v3222, %v3206
    %v3911 = vpack.c.b16 %v3223, %v3207
    %v3912 = vpack.c.b16 %v3224, %v3208
    %v3913 = vpack.c.b16 %v3225, %v3209
    %v3914 = vpack.c.b16 %v3226, %v3210
    %v3915 = vpack.c.b16 %v3227, %v3211
    %v3916 = vpack.c.b16 %v3228, %v3212
    %v3917 = vpack.c.b16 %v3229, %v3213
    %v3918 = vpack.c.b16 %v3230, %v3214
    %v3919 = vpack.c.b16 %v3231, %v3215
    %v3920 = vpack.c.b16 %v3232, %v3216
    %v3921 = vpack.c.b16 %v3249, %v3233
    %v3922 = vpack.c.b16 %v3250, %v3234
    %v3923 = vpack.c.b16 %v3251, %v3235
    %v3924 = vpack.c.b16 %v3252, %v3236
    %v3925 = vpack.c.b16 %v3253, %v3237
    %v3926 = vpack.c.b16 %v3254, %v3238
    %v3927 = vpack.c.b16 %v3255, %v3239
    %v3928 = vpack.c.b16 %v3256, %v3240
    %v3929 = vpack.c.b16 %v3257, %v3241
    %v3930 = vpack.c.b16 %v3258, %v3242
    %v3931 = vpack.c.b16 %v3259, %v3243
    %v3932 = vpack.c.b16 %v3260, %v3244
    %v3933 = vpack.c.b16 %v3261, %v3245
    %v3934 = vpack.c.b16 %v3262, %v3246
    %v3935 = vpack.c.b16 %v3263, %v3247
    %v3936 = vpack.c.b16 %v3264, %v3248
    %v3937 = vpack.c.b16 %v3281, %v3265
    %v3938 = vpack.c.b16 %v3282, %v3266
    %v3939 = vpack.c.b16 %v3283, %v3267
    %v3940 = vpack.c.b16 %v3284, %v3268
    %v3941 = vpack.c.b16 %v3285, %v3269
    %v3942 = vpack.c.b16 %v3286, %v3270
    %v3943 = vpack.c.b16 %v3287, %v3271
    %v3944 = vpack.c.b16 %v3288, %v3272
    %v3945 = vpack.c.b16 %v3289, %v3273
    %v3946 = vpack.c.b16 %v3290, %v3274
    %v3947 = vpack.c.b16 %v3291, %v3275
    %v3948 = vpack.c.b16 %v3292, %v3276
    %v3949 = vpack.c.b16 %v3293, %v3277
    %v3950 = vpack.c.b16 %v3294, %v3278
    %v3951 = vpack.c.b16 %v3295, %v3279
    %v3952 = vpack.c.b16 %v3296, %v3280
    %v3953 = vpack.c.b16 %v3313, %v3297
    %v3954 = vpack.c.b16 %v3314, %v3298
    %v3955 = vpack.c.b16 %v3315, %v3299
    %v3956 = vpack.c.b16 %v3316, %v3300
    %v3957 = vpack.c.b16 %v3317, %v3301
    %v3958 = vpack.c.b16 %v3318, %v3302
    %v3959 = vpack.c.b16 %v3319, %v3303
    %v3960 = vpack.c.b16 %v3320, %v3304
    %v3961 = vpack.c.b16 %v3321, %v3305
    %v3962 = vpack.c.b16 %v3322, %v3306
    %v3963 = vpack.c.b16 %v3323, %v3307
    %v3964 = vpack.c.b16 %v3324, %v3308
    %v3965 = vpack.c.b16 %v3325, %v3309
    %v3966 = vpack.c.b16 %v3326, %v3310
    %v3967 = vpack.c.b16 %v3327, %v3311
    %v3968 = vpack.c.b16 %v3328, %v3312
    %v3969 = vpack.c.b16 %v3345, %v3329
    %v3970 = vpack.c.b16 %v3346, %v3330
    %v3971 = vpack.c.b16 %v3347, %v3331
    %v3972 = vpack.c.b16 %v3348, %v3332
    %v3973 = vpack.c.b16 %v3349, %v3333
    %v3974 = vpack.c.b16 %v3350, %v3334
    %v3975 = vpack.c.b16 %v3351, %v3335
    %v3976 = vpack.c.b16 %v3352, %v3336
    %v3977 = vpack.c.b16 %v3353, %v3337
    %v3978 = vpack.c.b16 %v3354, %v3338
    %v3979 = vpack.c.b16 %v3355, %v3339
    %v3980 = vpack.c.b16 %v3356, %v3340
    %v3981 = vpack.c.b16 %v3357, %v3341
    %v3982 = vpack.c.b16 %v3358, %v3342
    %v3983 = vpack.c.b16 %v3359, %v3343
    %v3984 = vpack.c.b16 %v3360, %v3344
    %v3985 = vpack.c.b16 %v3377, %v3361
    %v3986 = vpack.c.b16 %v3378, %v3362
    %v3987 = vpack.c.b16 %v3379, %v3363
    %v3988 = vpack.c.b16 %v3380, %v3364
    %v3989 = vpack.c.b16 %v3381, %v3365
    %v3990 = vpack.c.b16 %v3382, %v3366
    %v3991 = vpack.c.b16 %v3383, %v3367
    %v3992 = vpack.c.b16 %v3384, %v3368
    %v3993 = vpack.c.b16 %v3385, %v3369
    %v3994 = vpack.c.b16 %v3386, %v3370
    %v3995 = vpack.c.b16 %v3387, %v3371
    %v3996 = vpack.c.b16 %v3388, %v3372
    %v3997 = vpack.c.b16 %v3389, %v3373
    %v3998 = vpack.c.b16 %v3390, %v3374
    %v3999 = vpack.c.b16 %v3391, %v3375
    %v4000 = vpack.c.b16 %v3392, %v3376
    %v4001 = vpack.c.b16 %v3409, %v3393
    %v4002 = vpack.c.b16 %v3410, %v3394
    %v4003 = vpack.c.b16 %v3411, %v3395
    %v4004 = vpack.c.b16 %v3412, %v3396
    %v4005 = vpack.c.b16 %v3413, %v3397
    %v4006 = vpack.c.b16 %v3414, %v3398
    %v4007 = vpack.c.b16 %v3415, %v3399
    %v4008 = vpack.c.b16 %v3416, %v3400
    %v4009 = vpack.c.b16 %v3417, %v3401
    %v4010 = vpack.c.b16 %v3418, %v3402
    %v4011 = vpack.c.b16 %v3419, %v3403
    %v4012 = vpack.c.b16 %v3420, %v3404
    %v4013 = vpack.c.b16 %v3421, %v3405
    %v4014 = vpack.c.b16 %v3422, %v3406
    %v4015 = vpack.c.b16 %v3423, %v3407
    %v4016 = vpack.c.b16 %v3424, %v3408
    %v4017 = vpack.c.b16 %v3441, %v3425
    %v4018 = vpack.c.b16 %v3442, %v3426
    %v4019 = vpack.c.b16 %v3443, %v3427
    %v4020 = vpack.c.b16 %v3444, %v3428
    %v4021 = vpack.c.b16 %v3445, %v3429
    %v4022 = vpack.c.b16 %v3446, %v3430
    %v4023 = vpack.c.b16 %v3447, %v3431
    %v4024 = vpack.c.b16 %v3448, %v3432
    %v4025 = vpack.c.b16 %v3449, %v3433
    %v4026 = vpack.c.b16 %v3450, %v3434
    %v4027 = vpack.c.b16 %v3451, %v3435
    %v4028 = vpack.c.b16 %v3452, %v3436
    %v4029 = vpack.c.b16 %v3453, %v3437
    %v4030 = vpack.c.b16 %v3454, %v3438
    %v4031 = vpack.c.b16 %v3455, %v3439
    %v4032 = vpack.c.b16 %v3456, %v3440
    %v4033 = vpack.c.b16 %v3473, %v3457
    %v4034 = vpack.c.b16 %v3474, %v3458
    %v4035 = vpack.c.b16 %v3475, %v3459
    %v4036 = vpack.c.b16 %v3476, %v3460
    %v4037 = vpack.c.b16 %v3477, %v3461
    %v4038 = vpack.c.b16 %v3478, %v3462
    %v4039 = vpack.c.b16 %v3479, %v3463
    %v4040 = vpack.c.b16 %v3480, %v3464
    %v4041 = vpack.c.b16 %v3481, %v3465
    %v4042 = vpack.c.b16 %v3482, %v3466
    %v4043 = vpack.c.b16 %v3483, %v3467
    %v4044 = vpack.c.b16 %v3484, %v3468
    %v4045 = vpack.c.b16 %v3485, %v3469
    %v4046 = vpack.c.b16 %v3486, %v3470
    %v4047 = vpack.c.b16 %v3487, %v3471
    %v4048 = vpack.c.b16 %v3488, %v3472
    %v4049 = vpack.c.b16 %v3505, %v3489
    %v4050 = vpack.c.b16 %v3506, %v3490
    %v4051 = vpack.c.b16 %v3507, %v3491
    %v4052 = vpack.c.b16 %v3508, %v3492
    %v4053 = vpack.c.b16 %v3509, %v3493
    %v4054 = vpack.c.b16 %v3510, %v3494
    %v4055 = vpack.c.b16 %v3511, %v3495
    %v4056 = vpack.c.b16 %v3512, %v3496
    %v4057 = vpack.c.b16 %v3513, %v3497
    %v4058 = vpack.c.b16 %v3514, %v3498
    %v4059 = vpack.c.b16 %v3515, %v3499
    %v4060 = vpack.c.b16 %v3516, %v3500
    %v4061 = vpack.c.b16 %v3517, %v3501
    %v4062 = vpack.c.b16 %v3518, %v3502
    %v4063 = vpack.c.b16 %v3519, %v3503
    %v4064 = vpack.c.b16 %v3520, %v3504
    %v4065 = vpack.c.b16 %v3537, %v3521
    %v4066 = vpack.c.b16 %v3538, %v3522
    %v4067 = vpack.c.b16 %v3539, %v3523
    %v4068 = vpack.c.b16 %v3540, %v3524
    %v4069 = vpack.c.b16 %v3541, %v3525
    %v4070 = vpack.c.b16 %v3542, %v3526
    %v4071 = vpack.c.b16 %v3543, %v3527
    %v4072 = vpack.c.b16 %v3544, %v3528
    %v4073 = vpack.c.b16 %v3545, %v3529
    %v4074 = vpack.c.b16 %v3546, %v3530
    %v4075 = vpack.c.b16 %v3547, %v3531
    %v4076 = vpack.c.b16 %v3548, %v3532
    %v4077 = vpack.c.b16 %v3549, %v3533
    %v4078 = vpack.c.b16 %v3550, %v3534
    %v4079 = vpack.c.b16 %v3551, %v3535
    %v4080 = vpack.c.b16 %v3552, %v3536
    %v4081 = vpack.c.b16 %v3569, %v3553
    %v4082 = vpack.c.b16 %v3570, %v3554
    %v4083 = vpack.c.b16 %v3571, %v3555
    %v4084 = vpack.c.b16 %v3572, %v3556
    %v4085 = vpack.c.b16 %v3573, %v3557
    %v4086 = vpack.c.b16 %v3574, %v3558
    %v4087 = vpack.c.b16 %v3575, %v3559
    %v4088 = vpack.c.b16 %v3576, %v3560
    %v4089 = vpack.c.b16 %v3577, %v3561
    %v4090 = vpack.c.b16 %v3578, %v3562
    %v4091 = vpack.c.b16 %v3579, %v3563
    %v4092 = vpack.c.b16 %v3580, %v3564
    %v4093 = vpack.c.b16 %v3581, %v3565
    %v4094 = vpack.c.b16 %v3582, %v3566
    %v4095 = vpack.c.b16 %v3583, %v3567
    %v4096 = vpack.c.b16 %v3584, %v3568
    %4609 = vmatpush.bf16.msra.mxu0 %v3697
    %4610 = vmatpush.bf16.msra.mxu0 %v3681
    %4611 = vmatpush.bf16.msra.mxu0 %v3665
    %4612 = vmatpush.bf16.msra.mxu0 %v3649
    %4613 = vmatpush.bf16.msra.mxu0 %v3633
    %4614 = vmatpush.bf16.msra.mxu0 %v3617
    %4615 = vmatpush.bf16.msra.mxu0 %v3601
    %4616 = vmatpush.bf16.msra.mxu0 %v3585
    %4617 = vmatmul.bf16.gmra.mxu0 %v2045
    %v4618 = vpop.f32.mrf.mxu0
    %v4619 = vadd.f32 0.0, %v4618
    %v4620 = vpop.f32.mrf.mxu0
    %v4621 = vadd.f32 0.0, %v4620
    %4622 = vdwg.mxu0
    %4623 = vmatpush.bf16.msra.mxu0 %v3825
    %4624 = vmatpush.bf16.msra.mxu0 %v3809
    %4625 = vmatpush.bf16.msra.mxu0 %v3793
    %4626 = vmatpush.bf16.msra.mxu0 %v3777
    %4627 = vmatpush.bf16.msra.mxu0 %v3761
    %4628 = vmatpush.bf16.msra.mxu0 %v3745
    %4629 = vmatpush.bf16.msra.mxu0 %v3729
    %4630 = vmatpush.bf16.msra.mxu0 %v3713
    %4631 = vmatmul.bf16.gmra.mxu0 %v2046
    %v4632 = vpop.f32.mrf.mxu0
    %v4633 = vadd.f32 %v4619, %v4632
    %v4634 = vpop.f32.mrf.mxu0
    %v4635 = vadd.f32 %v4621, %v4634
    %4636 = vdwg.mxu0
    %4637 = vmatpush.bf16.msra.mxu0 %v3953
    %4638 = vmatpush.bf16.msra.mxu0 %v3937
    %4639 = vmatpush.bf16.msra.mxu0 %v3921
    %4640 = vmatpush.bf16.msra.mxu0 %v3905
    %4641 = vmatpush.bf16.msra.mxu0 %v3889
    %4642 = vmatpush.bf16.msra.mxu0 %v3873
    %4643 = vmatpush.bf16.msra.mxu0 %v3857
    %4644 = vmatpush.bf16.msra.mxu0 %v3841
    %4645 = vmatmul.bf16.gmra.mxu0 %v2047
    %v4646 = vpop.f32.mrf.mxu0
    %v4647 = vadd.f32 %v4633, %v4646
    %v4648 = vpop.f32.mrf.mxu0
    %v4649 = vadd.f32 %v4635, %v4648
    %4650 = vdwg.mxu0
    %4651 = vmatpush.bf16.msra.mxu0 %v4081
    %4652 = vmatpush.bf16.msra.mxu0 %v4065
    %4653 = vmatpush.bf16.msra.mxu0 %v4049
    %4654 = vmatpush.bf16.msra.mxu0 %v4033
    %4655 = vmatpush.bf16.msra.mxu0 %v4017
    %4656 = vmatpush.bf16.msra.mxu0 %v4001
    %4657 = vmatpush.bf16.msra.mxu0 %v3985
    %4658 = vmatpush.bf16.msra.mxu0 %v3969
    %4659 = vmatmul.bf16.gmra.mxu0 %v2048
    %v4660 = vpop.f32.mrf.mxu0
    %v4661 = vadd.f32 %v4647, %v4660
    %v4662 = vpop.f32.mrf.mxu0
    %v4663 = vadd.f32 %v4649, %v4662
    %4664 = vdwg.mxu0
    %4665 = vmatpush.bf16.msra.mxu0 %v3698
    %4666 = vmatpush.bf16.msra.mxu0 %v3682
    %4667 = vmatpush.bf16.msra.mxu0 %v3666
    %4668 = vmatpush.bf16.msra.mxu0 %v3650
    %4669 = vmatpush.bf16.msra.mxu0 %v3634
    %4670 = vmatpush.bf16.msra.mxu0 %v3618
    %4671 = vmatpush.bf16.msra.mxu0 %v3602
    %4672 = vmatpush.bf16.msra.mxu0 %v3586
    %4673 = vmatmul.bf16.gmra.mxu0 %v2045
    %v4674 = vpop.f32.mrf.mxu0
    %v4675 = vadd.f32 0.0, %v4674
    %v4676 = vpop.f32.mrf.mxu0
    %v4677 = vadd.f32 0.0, %v4676
    %4678 = vdwg.mxu0
    %4679 = vmatpush.bf16.msra.mxu0 %v3826
    %4680 = vmatpush.bf16.msra.mxu0 %v3810
    %4681 = vmatpush.bf16.msra.mxu0 %v3794
    %4682 = vmatpush.bf16.msra.mxu0 %v3778
    %4683 = vmatpush.bf16.msra.mxu0 %v3762
    %4684 = vmatpush.bf16.msra.mxu0 %v3746
    %4685 = vmatpush.bf16.msra.mxu0 %v3730
    %4686 = vmatpush.bf16.msra.mxu0 %v3714
    %4687 = vmatmul.bf16.gmra.mxu0 %v2046
    %v4688 = vpop.f32.mrf.mxu0
    %v4689 = vadd.f32 %v4675, %v4688
    %v4690 = vpop.f32.mrf.mxu0
    %v4691 = vadd.f32 %v4677, %v4690
    %4692 = vdwg.mxu0
    %4693 = vmatpush.bf16.msra.mxu0 %v3954
    %4694 = vmatpush.bf16.msra.mxu0 %v3938
    %4695 = vmatpush.bf16.msra.mxu0 %v3922
    %4696 = vmatpush.bf16.msra.mxu0 %v3906
    %4697 = vmatpush.bf16.msra.mxu0 %v3890
    %4698 = vmatpush.bf16.msra.mxu0 %v3874
    %4699 = vmatpush.bf16.msra.mxu0 %v3858
    %4700 = vmatpush.bf16.msra.mxu0 %v3842
    %4701 = vmatmul.bf16.gmra.mxu0 %v2047
    %v4702 = vpop.f32.mrf.mxu0
    %v4703 = vadd.f32 %v4689, %v4702
    %v4704 = vpop.f32.mrf.mxu0
    %v4705 = vadd.f32 %v4691, %v4704
    %4706 = vdwg.mxu0
    %4707 = vmatpush.bf16.msra.mxu0 %v4082
    %4708 = vmatpush.bf16.msra.mxu0 %v4066
    %4709 = vmatpush.bf16.msra.mxu0 %v4050
    %4710 = vmatpush.bf16.msra.mxu0 %v4034
    %4711 = vmatpush.bf16.msra.mxu0 %v4018
    %4712 = vmatpush.bf16.msra.mxu0 %v4002
    %4713 = vmatpush.bf16.msra.mxu0 %v3986
    %4714 = vmatpush.bf16.msra.mxu0 %v3970
    %4715 = vmatmul.bf16.gmra.mxu0 %v2048
    %v4716 = vpop.f32.mrf.mxu0
    %v4717 = vadd.f32 %v4703, %v4716
    %v4718 = vpop.f32.mrf.mxu0
    %v4719 = vadd.f32 %v4705, %v4718
    %4720 = vdwg.mxu0
    %4721 = vmatpush.bf16.msra.mxu0 %v3699
    %4722 = vmatpush.bf16.msra.mxu0 %v3683
    %4723 = vmatpush.bf16.msra.mxu0 %v3667
    %4724 = vmatpush.bf16.msra.mxu0 %v3651
    %4725 = vmatpush.bf16.msra.mxu0 %v3635
    %4726 = vmatpush.bf16.msra.mxu0 %v3619
    %4727 = vmatpush.bf16.msra.mxu0 %v3603
    %4728 = vmatpush.bf16.msra.mxu0 %v3587
    %4729 = vmatmul.bf16.gmra.mxu0 %v2045
    %v4730 = vpop.f32.mrf.mxu0
    %v4731 = vadd.f32 0.0, %v4730
    %v4732 = vpop.f32.mrf.mxu0
    %v4733 = vadd.f32 0.0, %v4732
    %4734 = vdwg.mxu0
    %4735 = vmatpush.bf16.msra.mxu0 %v3827
    %4736 = vmatpush.bf16.msra.mxu0 %v3811
    %4737 = vmatpush.bf16.msra.mxu0 %v3795
    %4738 = vmatpush.bf16.msra.mxu0 %v3779
    %4739 = vmatpush.bf16.msra.mxu0 %v3763
    %4740 = vmatpush.bf16.msra.mxu0 %v3747
    %4741 = vmatpush.bf16.msra.mxu0 %v3731
    %4742 = vmatpush.bf16.msra.mxu0 %v3715
    %4743 = vmatmul.bf16.gmra.mxu0 %v2046
    %v4744 = vpop.f32.mrf.mxu0
    %v4745 = vadd.f32 %v4731, %v4744
    %v4746 = vpop.f32.mrf.mxu0
    %v4747 = vadd.f32 %v4733, %v4746
    %4748 = vdwg.mxu0
    %4749 = vmatpush.bf16.msra.mxu0 %v3955
    %4750 = vmatpush.bf16.msra.mxu0 %v3939
    %4751 = vmatpush.bf16.msra.mxu0 %v3923
    %4752 = vmatpush.bf16.msra.mxu0 %v3907
    %4753 = vmatpush.bf16.msra.mxu0 %v3891
    %4754 = vmatpush.bf16.msra.mxu0 %v3875
    %4755 = vmatpush.bf16.msra.mxu0 %v3859
    %4756 = vmatpush.bf16.msra.mxu0 %v3843
    %4757 = vmatmul.bf16.gmra.mxu0 %v2047
    %v4758 = vpop.f32.mrf.mxu0
    %v4759 = vadd.f32 %v4745, %v4758
    %v4760 = vpop.f32.mrf.mxu0
    %v4761 = vadd.f32 %v4747, %v4760
    %4762 = vdwg.mxu0
    %4763 = vmatpush.bf16.msra.mxu0 %v4083
    %4764 = vmatpush.bf16.msra.mxu0 %v4067
    %4765 = vmatpush.bf16.msra.mxu0 %v4051
    %4766 = vmatpush.bf16.msra.mxu0 %v4035
    %4767 = vmatpush.bf16.msra.mxu0 %v4019
    %4768 = vmatpush.bf16.msra.mxu0 %v4003
    %4769 = vmatpush.bf16.msra.mxu0 %v3987
    %4770 = vmatpush.bf16.msra.mxu0 %v3971
    %4771 = vmatmul.bf16.gmra.mxu0 %v2048
    %v4772 = vpop.f32.mrf.mxu0
    %v4773 = vadd.f32 %v4759, %v4772
    %v4774 = vpop.f32.mrf.mxu0
    %v4775 = vadd.f32 %v4761, %v4774
    %4776 = vdwg.mxu0
    %4777 = vmatpush.bf16.msra.mxu0 %v3700
    %4778 = vmatpush.bf16.msra.mxu0 %v3684
    %4779 = vmatpush.bf16.msra.mxu0 %v3668
    %4780 = vmatpush.bf16.msra.mxu0 %v3652
    %4781 = vmatpush.bf16.msra.mxu0 %v3636
    %4782 = vmatpush.bf16.msra.mxu0 %v3620
    %4783 = vmatpush.bf16.msra.mxu0 %v3604
    %4784 = vmatpush.bf16.msra.mxu0 %v3588
    %4785 = vmatmul.bf16.gmra.mxu0 %v2045
    %v4786 = vpop.f32.mrf.mxu0
    %v4787 = vadd.f32 0.0, %v4786
    %v4788 = vpop.f32.mrf.mxu0
    %v4789 = vadd.f32 0.0, %v4788
    %4790 = vdwg.mxu0
    %4791 = vmatpush.bf16.msra.mxu0 %v3828
    %4792 = vmatpush.bf16.msra.mxu0 %v3812
    %4793 = vmatpush.bf16.msra.mxu0 %v3796
    %4794 = vmatpush.bf16.msra.mxu0 %v3780
    %4795 = vmatpush.bf16.msra.mxu0 %v3764
    %4796 = vmatpush.bf16.msra.mxu0 %v3748
    %4797 = vmatpush.bf16.msra.mxu0 %v3732
    %4798 = vmatpush.bf16.msra.mxu0 %v3716
    %4799 = vmatmul.bf16.gmra.mxu0 %v2046
    %v4800 = vpop.f32.mrf.mxu0
    %v4801 = vadd.f32 %v4787, %v4800
    %v4802 = vpop.f32.mrf.mxu0
    %v4803 = vadd.f32 %v4789, %v4802
    %4804 = vdwg.mxu0
    %4805 = vmatpush.bf16.msra.mxu0 %v3956
    %4806 = vmatpush.bf16.msra.mxu0 %v3940
    %4807 = vmatpush.bf16.msra.mxu0 %v3924
    %4808 = vmatpush.bf16.msra.mxu0 %v3908
    %4809 = vmatpush.bf16.msra.mxu0 %v3892
    %4810 = vmatpush.bf16.msra.mxu0 %v3876
    %4811 = vmatpush.bf16.msra.mxu0 %v3860
    %4812 = vmatpush.bf16.msra.mxu0 %v3844
    %4813 = vmatmul.bf16.gmra.mxu0 %v2047
    %v4814 = vpop.f32.mrf.mxu0
    %v4815 = vadd.f32 %v4801, %v4814
    %v4816 = vpop.f32.mrf.mxu0
    %v4817 = vadd.f32 %v4803, %v4816
    %4818 = vdwg.mxu0
    %4819 = vmatpush.bf16.msra.mxu0 %v4084
    %4820 = vmatpush.bf16.msra.mxu0 %v4068
    %4821 = vmatpush.bf16.msra.mxu0 %v4052
    %4822 = vmatpush.bf16.msra.mxu0 %v4036
    %4823 = vmatpush.bf16.msra.mxu0 %v4020
    %4824 = vmatpush.bf16.msra.mxu0 %v4004
    %4825 = vmatpush.bf16.msra.mxu0 %v3988
    %4826 = vmatpush.bf16.msra.mxu0 %v3972
    %4827 = vmatmul.bf16.gmra.mxu0 %v2048
    %v4828 = vpop.f32.mrf.mxu0
    %v4829 = vadd.f32 %v4815, %v4828
    %v4830 = vpop.f32.mrf.mxu0
    %v4831 = vadd.f32 %v4817, %v4830
    %4832 = vdwg.mxu0
    %4833 = vmatpush.bf16.msra.mxu0 %v3701
    %4834 = vmatpush.bf16.msra.mxu0 %v3685
    %4835 = vmatpush.bf16.msra.mxu0 %v3669
    %4836 = vmatpush.bf16.msra.mxu0 %v3653
    %4837 = vmatpush.bf16.msra.mxu0 %v3637
    %4838 = vmatpush.bf16.msra.mxu0 %v3621
    %4839 = vmatpush.bf16.msra.mxu0 %v3605
    %4840 = vmatpush.bf16.msra.mxu0 %v3589
    %4841 = vmatmul.bf16.gmra.mxu0 %v2045
    %v4842 = vpop.f32.mrf.mxu0
    %v4843 = vadd.f32 0.0, %v4842
    %v4844 = vpop.f32.mrf.mxu0
    %v4845 = vadd.f32 0.0, %v4844
    %4846 = vdwg.mxu0
    %4847 = vmatpush.bf16.msra.mxu0 %v3829
    %4848 = vmatpush.bf16.msra.mxu0 %v3813
    %4849 = vmatpush.bf16.msra.mxu0 %v3797
    %4850 = vmatpush.bf16.msra.mxu0 %v3781
    %4851 = vmatpush.bf16.msra.mxu0 %v3765
    %4852 = vmatpush.bf16.msra.mxu0 %v3749
    %4853 = vmatpush.bf16.msra.mxu0 %v3733
    %4854 = vmatpush.bf16.msra.mxu0 %v3717
    %4855 = vmatmul.bf16.gmra.mxu0 %v2046
    %v4856 = vpop.f32.mrf.mxu0
    %v4857 = vadd.f32 %v4843, %v4856
    %v4858 = vpop.f32.mrf.mxu0
    %v4859 = vadd.f32 %v4845, %v4858
    %4860 = vdwg.mxu0
    %4861 = vmatpush.bf16.msra.mxu0 %v3957
    %4862 = vmatpush.bf16.msra.mxu0 %v3941
    %4863 = vmatpush.bf16.msra.mxu0 %v3925
    %4864 = vmatpush.bf16.msra.mxu0 %v3909
    %4865 = vmatpush.bf16.msra.mxu0 %v3893
    %4866 = vmatpush.bf16.msra.mxu0 %v3877
    %4867 = vmatpush.bf16.msra.mxu0 %v3861
    %4868 = vmatpush.bf16.msra.mxu0 %v3845
    %4869 = vmatmul.bf16.gmra.mxu0 %v2047
    %v4870 = vpop.f32.mrf.mxu0
    %v4871 = vadd.f32 %v4857, %v4870
    %v4872 = vpop.f32.mrf.mxu0
    %v4873 = vadd.f32 %v4859, %v4872
    %4874 = vdwg.mxu0
    %4875 = vmatpush.bf16.msra.mxu0 %v4085
    %4876 = vmatpush.bf16.msra.mxu0 %v4069
    %4877 = vmatpush.bf16.msra.mxu0 %v4053
    %4878 = vmatpush.bf16.msra.mxu0 %v4037
    %4879 = vmatpush.bf16.msra.mxu0 %v4021
    %4880 = vmatpush.bf16.msra.mxu0 %v4005
    %4881 = vmatpush.bf16.msra.mxu0 %v3989
    %4882 = vmatpush.bf16.msra.mxu0 %v3973
    %4883 = vmatmul.bf16.gmra.mxu0 %v2048
    %v4884 = vpop.f32.mrf.mxu0
    %v4885 = vadd.f32 %v4871, %v4884
    %v4886 = vpop.f32.mrf.mxu0
    %v4887 = vadd.f32 %v4873, %v4886
    %4888 = vdwg.mxu0
    %4889 = vmatpush.bf16.msra.mxu0 %v3702
    %4890 = vmatpush.bf16.msra.mxu0 %v3686
    %4891 = vmatpush.bf16.msra.mxu0 %v3670
    %4892 = vmatpush.bf16.msra.mxu0 %v3654
    %4893 = vmatpush.bf16.msra.mxu0 %v3638
    %4894 = vmatpush.bf16.msra.mxu0 %v3622
    %4895 = vmatpush.bf16.msra.mxu0 %v3606
    %4896 = vmatpush.bf16.msra.mxu0 %v3590
    %4897 = vmatmul.bf16.gmra.mxu0 %v2045
    %v4898 = vpop.f32.mrf.mxu0
    %v4899 = vadd.f32 0.0, %v4898
    %v4900 = vpop.f32.mrf.mxu0
    %v4901 = vadd.f32 0.0, %v4900
    %4902 = vdwg.mxu0
    %4903 = vmatpush.bf16.msra.mxu0 %v3830
    %4904 = vmatpush.bf16.msra.mxu0 %v3814
    %4905 = vmatpush.bf16.msra.mxu0 %v3798
    %4906 = vmatpush.bf16.msra.mxu0 %v3782
    %4907 = vmatpush.bf16.msra.mxu0 %v3766
    %4908 = vmatpush.bf16.msra.mxu0 %v3750
    %4909 = vmatpush.bf16.msra.mxu0 %v3734
    %4910 = vmatpush.bf16.msra.mxu0 %v3718
    %4911 = vmatmul.bf16.gmra.mxu0 %v2046
    %v4912 = vpop.f32.mrf.mxu0
    %v4913 = vadd.f32 %v4899, %v4912
    %v4914 = vpop.f32.mrf.mxu0
    %v4915 = vadd.f32 %v4901, %v4914
    %4916 = vdwg.mxu0
    %4917 = vmatpush.bf16.msra.mxu0 %v3958
    %4918 = vmatpush.bf16.msra.mxu0 %v3942
    %4919 = vmatpush.bf16.msra.mxu0 %v3926
    %4920 = vmatpush.bf16.msra.mxu0 %v3910
    %4921 = vmatpush.bf16.msra.mxu0 %v3894
    %4922 = vmatpush.bf16.msra.mxu0 %v3878
    %4923 = vmatpush.bf16.msra.mxu0 %v3862
    %4924 = vmatpush.bf16.msra.mxu0 %v3846
    %4925 = vmatmul.bf16.gmra.mxu0 %v2047
    %v4926 = vpop.f32.mrf.mxu0
    %v4927 = vadd.f32 %v4913, %v4926
    %v4928 = vpop.f32.mrf.mxu0
    %v4929 = vadd.f32 %v4915, %v4928
    %4930 = vdwg.mxu0
    %4931 = vmatpush.bf16.msra.mxu0 %v4086
    %4932 = vmatpush.bf16.msra.mxu0 %v4070
    %4933 = vmatpush.bf16.msra.mxu0 %v4054
    %4934 = vmatpush.bf16.msra.mxu0 %v4038
    %4935 = vmatpush.bf16.msra.mxu0 %v4022
    %4936 = vmatpush.bf16.msra.mxu0 %v4006
    %4937 = vmatpush.bf16.msra.mxu0 %v3990
    %4938 = vmatpush.bf16.msra.mxu0 %v3974
    %4939 = vmatmul.bf16.gmra.mxu0 %v2048
    %v4940 = vpop.f32.mrf.mxu0
    %v4941 = vadd.f32 %v4927, %v4940
    %v4942 = vpop.f32.mrf.mxu0
    %v4943 = vadd.f32 %v4929, %v4942
    %4944 = vdwg.mxu0
    %4945 = vmatpush.bf16.msra.mxu0 %v3703
    %4946 = vmatpush.bf16.msra.mxu0 %v3687
    %4947 = vmatpush.bf16.msra.mxu0 %v3671
    %4948 = vmatpush.bf16.msra.mxu0 %v3655
    %4949 = vmatpush.bf16.msra.mxu0 %v3639
    %4950 = vmatpush.bf16.msra.mxu0 %v3623
    %4951 = vmatpush.bf16.msra.mxu0 %v3607
    %4952 = vmatpush.bf16.msra.mxu0 %v3591
    %4953 = vmatmul.bf16.gmra.mxu0 %v2045
    %v4954 = vpop.f32.mrf.mxu0
    %v4955 = vadd.f32 0.0, %v4954
    %v4956 = vpop.f32.mrf.mxu0
    %v4957 = vadd.f32 0.0, %v4956
    %4958 = vdwg.mxu0
    %4959 = vmatpush.bf16.msra.mxu0 %v3831
    %4960 = vmatpush.bf16.msra.mxu0 %v3815
    %4961 = vmatpush.bf16.msra.mxu0 %v3799
    %4962 = vmatpush.bf16.msra.mxu0 %v3783
    %4963 = vmatpush.bf16.msra.mxu0 %v3767
    %4964 = vmatpush.bf16.msra.mxu0 %v3751
    %4965 = vmatpush.bf16.msra.mxu0 %v3735
    %4966 = vmatpush.bf16.msra.mxu0 %v3719
    %4967 = vmatmul.bf16.gmra.mxu0 %v2046
    %v4968 = vpop.f32.mrf.mxu0
    %v4969 = vadd.f32 %v4955, %v4968
    %v4970 = vpop.f32.mrf.mxu0
    %v4971 = vadd.f32 %v4957, %v4970
    %4972 = vdwg.mxu0
    %4973 = vmatpush.bf16.msra.mxu0 %v3959
    %4974 = vmatpush.bf16.msra.mxu0 %v3943
    %4975 = vmatpush.bf16.msra.mxu0 %v3927
    %4976 = vmatpush.bf16.msra.mxu0 %v3911
    %4977 = vmatpush.bf16.msra.mxu0 %v3895
    %4978 = vmatpush.bf16.msra.mxu0 %v3879
    %4979 = vmatpush.bf16.msra.mxu0 %v3863
    %4980 = vmatpush.bf16.msra.mxu0 %v3847
    %4981 = vmatmul.bf16.gmra.mxu0 %v2047
    %v4982 = vpop.f32.mrf.mxu0
    %v4983 = vadd.f32 %v4969, %v4982
    %v4984 = vpop.f32.mrf.mxu0
    %v4985 = vadd.f32 %v4971, %v4984
    %4986 = vdwg.mxu0
    %4987 = vmatpush.bf16.msra.mxu0 %v4087
    %4988 = vmatpush.bf16.msra.mxu0 %v4071
    %4989 = vmatpush.bf16.msra.mxu0 %v4055
    %4990 = vmatpush.bf16.msra.mxu0 %v4039
    %4991 = vmatpush.bf16.msra.mxu0 %v4023
    %4992 = vmatpush.bf16.msra.mxu0 %v4007
    %4993 = vmatpush.bf16.msra.mxu0 %v3991
    %4994 = vmatpush.bf16.msra.mxu0 %v3975
    %4995 = vmatmul.bf16.gmra.mxu0 %v2048
    %v4996 = vpop.f32.mrf.mxu0
    %v4997 = vadd.f32 %v4983, %v4996
    %v4998 = vpop.f32.mrf.mxu0
    %v4999 = vadd.f32 %v4985, %v4998
    %5000 = vdwg.mxu0
    %5001 = vmatpush.bf16.msra.mxu0 %v3704
    %5002 = vmatpush.bf16.msra.mxu0 %v3688
    %5003 = vmatpush.bf16.msra.mxu0 %v3672
    %5004 = vmatpush.bf16.msra.mxu0 %v3656
    %5005 = vmatpush.bf16.msra.mxu0 %v3640
    %5006 = vmatpush.bf16.msra.mxu0 %v3624
    %5007 = vmatpush.bf16.msra.mxu0 %v3608
    %5008 = vmatpush.bf16.msra.mxu0 %v3592
    %5009 = vmatmul.bf16.gmra.mxu0 %v2045
    %v5010 = vpop.f32.mrf.mxu0
    %v5011 = vadd.f32 0.0, %v5010
    %v5012 = vpop.f32.mrf.mxu0
    %v5013 = vadd.f32 0.0, %v5012
    %5014 = vdwg.mxu0
    %5015 = vmatpush.bf16.msra.mxu0 %v3832
    %5016 = vmatpush.bf16.msra.mxu0 %v3816
    %5017 = vmatpush.bf16.msra.mxu0 %v3800
    %5018 = vmatpush.bf16.msra.mxu0 %v3784
    %5019 = vmatpush.bf16.msra.mxu0 %v3768
    %5020 = vmatpush.bf16.msra.mxu0 %v3752
    %5021 = vmatpush.bf16.msra.mxu0 %v3736
    %5022 = vmatpush.bf16.msra.mxu0 %v3720
    %5023 = vmatmul.bf16.gmra.mxu0 %v2046
    %v5024 = vpop.f32.mrf.mxu0
    %v5025 = vadd.f32 %v5011, %v5024
    %v5026 = vpop.f32.mrf.mxu0
    %v5027 = vadd.f32 %v5013, %v5026
    %5028 = vdwg.mxu0
    %5029 = vmatpush.bf16.msra.mxu0 %v3960
    %5030 = vmatpush.bf16.msra.mxu0 %v3944
    %5031 = vmatpush.bf16.msra.mxu0 %v3928
    %5032 = vmatpush.bf16.msra.mxu0 %v3912
    %5033 = vmatpush.bf16.msra.mxu0 %v3896
    %5034 = vmatpush.bf16.msra.mxu0 %v3880
    %5035 = vmatpush.bf16.msra.mxu0 %v3864
    %5036 = vmatpush.bf16.msra.mxu0 %v3848
    %5037 = vmatmul.bf16.gmra.mxu0 %v2047
    %v5038 = vpop.f32.mrf.mxu0
    %v5039 = vadd.f32 %v5025, %v5038
    %v5040 = vpop.f32.mrf.mxu0
    %v5041 = vadd.f32 %v5027, %v5040
    %5042 = vdwg.mxu0
    %5043 = vmatpush.bf16.msra.mxu0 %v4088
    %5044 = vmatpush.bf16.msra.mxu0 %v4072
    %5045 = vmatpush.bf16.msra.mxu0 %v4056
    %5046 = vmatpush.bf16.msra.mxu0 %v4040
    %5047 = vmatpush.bf16.msra.mxu0 %v4024
    %5048 = vmatpush.bf16.msra.mxu0 %v4008
    %5049 = vmatpush.bf16.msra.mxu0 %v3992
    %5050 = vmatpush.bf16.msra.mxu0 %v3976
    %5051 = vmatmul.bf16.gmra.mxu0 %v2048
    %v5052 = vpop.f32.mrf.mxu0
    %v5053 = vadd.f32 %v5039, %v5052
    %v5054 = vpop.f32.mrf.mxu0
    %v5055 = vadd.f32 %v5041, %v5054
    %5056 = vdwg.mxu0
    %5057 = vmatpush.bf16.msra.mxu0 %v3705
    %5058 = vmatpush.bf16.msra.mxu0 %v3689
    %5059 = vmatpush.bf16.msra.mxu0 %v3673
    %5060 = vmatpush.bf16.msra.mxu0 %v3657
    %5061 = vmatpush.bf16.msra.mxu0 %v3641
    %5062 = vmatpush.bf16.msra.mxu0 %v3625
    %5063 = vmatpush.bf16.msra.mxu0 %v3609
    %5064 = vmatpush.bf16.msra.mxu0 %v3593
    %5065 = vmatmul.bf16.gmra.mxu0 %v2045
    %v5066 = vpop.f32.mrf.mxu0
    %v5067 = vadd.f32 0.0, %v5066
    %v5068 = vpop.f32.mrf.mxu0
    %v5069 = vadd.f32 0.0, %v5068
    %5070 = vdwg.mxu0
    %5071 = vmatpush.bf16.msra.mxu0 %v3833
    %5072 = vmatpush.bf16.msra.mxu0 %v3817
    %5073 = vmatpush.bf16.msra.mxu0 %v3801
    %5074 = vmatpush.bf16.msra.mxu0 %v3785
    %5075 = vmatpush.bf16.msra.mxu0 %v3769
    %5076 = vmatpush.bf16.msra.mxu0 %v3753
    %5077 = vmatpush.bf16.msra.mxu0 %v3737
    %5078 = vmatpush.bf16.msra.mxu0 %v3721
    %5079 = vmatmul.bf16.gmra.mxu0 %v2046
    %v5080 = vpop.f32.mrf.mxu0
    %v5081 = vadd.f32 %v5067, %v5080
    %v5082 = vpop.f32.mrf.mxu0
    %v5083 = vadd.f32 %v5069, %v5082
    %5084 = vdwg.mxu0
    %5085 = vmatpush.bf16.msra.mxu0 %v3961
    %5086 = vmatpush.bf16.msra.mxu0 %v3945
    %5087 = vmatpush.bf16.msra.mxu0 %v3929
    %5088 = vmatpush.bf16.msra.mxu0 %v3913
    %5089 = vmatpush.bf16.msra.mxu0 %v3897
    %5090 = vmatpush.bf16.msra.mxu0 %v3881
    %5091 = vmatpush.bf16.msra.mxu0 %v3865
    %5092 = vmatpush.bf16.msra.mxu0 %v3849
    %5093 = vmatmul.bf16.gmra.mxu0 %v2047
    %v5094 = vpop.f32.mrf.mxu0
    %v5095 = vadd.f32 %v5081, %v5094
    %v5096 = vpop.f32.mrf.mxu0
    %v5097 = vadd.f32 %v5083, %v5096
    %5098 = vdwg.mxu0
    %5099 = vmatpush.bf16.msra.mxu0 %v4089
    %5100 = vmatpush.bf16.msra.mxu0 %v4073
    %5101 = vmatpush.bf16.msra.mxu0 %v4057
    %5102 = vmatpush.bf16.msra.mxu0 %v4041
    %5103 = vmatpush.bf16.msra.mxu0 %v4025
    %5104 = vmatpush.bf16.msra.mxu0 %v4009
    %5105 = vmatpush.bf16.msra.mxu0 %v3993
    %5106 = vmatpush.bf16.msra.mxu0 %v3977
    %5107 = vmatmul.bf16.gmra.mxu0 %v2048
    %v5108 = vpop.f32.mrf.mxu0
    %v5109 = vadd.f32 %v5095, %v5108
    %v5110 = vpop.f32.mrf.mxu0
    %v5111 = vadd.f32 %v5097, %v5110
    %5112 = vdwg.mxu0
    %5113 = vmatpush.bf16.msra.mxu0 %v3706
    %5114 = vmatpush.bf16.msra.mxu0 %v3690
    %5115 = vmatpush.bf16.msra.mxu0 %v3674
    %5116 = vmatpush.bf16.msra.mxu0 %v3658
    %5117 = vmatpush.bf16.msra.mxu0 %v3642
    %5118 = vmatpush.bf16.msra.mxu0 %v3626
    %5119 = vmatpush.bf16.msra.mxu0 %v3610
    %5120 = vmatpush.bf16.msra.mxu0 %v3594
    %5121 = vmatmul.bf16.gmra.mxu0 %v2045
    %v5122 = vpop.f32.mrf.mxu0
    %v5123 = vadd.f32 0.0, %v5122
    %v5124 = vpop.f32.mrf.mxu0
    %v5125 = vadd.f32 0.0, %v5124
    %5126 = vdwg.mxu0
    %5127 = vmatpush.bf16.msra.mxu0 %v3834
    %5128 = vmatpush.bf16.msra.mxu0 %v3818
    %5129 = vmatpush.bf16.msra.mxu0 %v3802
    %5130 = vmatpush.bf16.msra.mxu0 %v3786
    %5131 = vmatpush.bf16.msra.mxu0 %v3770
    %5132 = vmatpush.bf16.msra.mxu0 %v3754
    %5133 = vmatpush.bf16.msra.mxu0 %v3738
    %5134 = vmatpush.bf16.msra.mxu0 %v3722
    %5135 = vmatmul.bf16.gmra.mxu0 %v2046
    %v5136 = vpop.f32.mrf.mxu0
    %v5137 = vadd.f32 %v5123, %v5136
    %v5138 = vpop.f32.mrf.mxu0
    %v5139 = vadd.f32 %v5125, %v5138
    %5140 = vdwg.mxu0
    %5141 = vmatpush.bf16.msra.mxu0 %v3962
    %5142 = vmatpush.bf16.msra.mxu0 %v3946
    %5143 = vmatpush.bf16.msra.mxu0 %v3930
    %5144 = vmatpush.bf16.msra.mxu0 %v3914
    %5145 = vmatpush.bf16.msra.mxu0 %v3898
    %5146 = vmatpush.bf16.msra.mxu0 %v3882
    %5147 = vmatpush.bf16.msra.mxu0 %v3866
    %5148 = vmatpush.bf16.msra.mxu0 %v3850
    %5149 = vmatmul.bf16.gmra.mxu0 %v2047
    %v5150 = vpop.f32.mrf.mxu0
    %v5151 = vadd.f32 %v5137, %v5150
    %v5152 = vpop.f32.mrf.mxu0
    %v5153 = vadd.f32 %v5139, %v5152
    %5154 = vdwg.mxu0
    %5155 = vmatpush.bf16.msra.mxu0 %v4090
    %5156 = vmatpush.bf16.msra.mxu0 %v4074
    %5157 = vmatpush.bf16.msra.mxu0 %v4058
    %5158 = vmatpush.bf16.msra.mxu0 %v4042
    %5159 = vmatpush.bf16.msra.mxu0 %v4026
    %5160 = vmatpush.bf16.msra.mxu0 %v4010
    %5161 = vmatpush.bf16.msra.mxu0 %v3994
    %5162 = vmatpush.bf16.msra.mxu0 %v3978
    %5163 = vmatmul.bf16.gmra.mxu0 %v2048
    %v5164 = vpop.f32.mrf.mxu0
    %v5165 = vadd.f32 %v5151, %v5164
    %v5166 = vpop.f32.mrf.mxu0
    %v5167 = vadd.f32 %v5153, %v5166
    %5168 = vdwg.mxu0
    %5169 = vmatpush.bf16.msra.mxu0 %v3707
    %5170 = vmatpush.bf16.msra.mxu0 %v3691
    %5171 = vmatpush.bf16.msra.mxu0 %v3675
    %5172 = vmatpush.bf16.msra.mxu0 %v3659
    %5173 = vmatpush.bf16.msra.mxu0 %v3643
    %5174 = vmatpush.bf16.msra.mxu0 %v3627
    %5175 = vmatpush.bf16.msra.mxu0 %v3611
    %5176 = vmatpush.bf16.msra.mxu0 %v3595
    %5177 = vmatmul.bf16.gmra.mxu0 %v2045
    %v5178 = vpop.f32.mrf.mxu0
    %v5179 = vadd.f32 0.0, %v5178
    %v5180 = vpop.f32.mrf.mxu0
    %v5181 = vadd.f32 0.0, %v5180
    %5182 = vdwg.mxu0
    %5183 = vmatpush.bf16.msra.mxu0 %v3835
    %5184 = vmatpush.bf16.msra.mxu0 %v3819
    %5185 = vmatpush.bf16.msra.mxu0 %v3803
    %5186 = vmatpush.bf16.msra.mxu0 %v3787
    %5187 = vmatpush.bf16.msra.mxu0 %v3771
    %5188 = vmatpush.bf16.msra.mxu0 %v3755
    %5189 = vmatpush.bf16.msra.mxu0 %v3739
    %5190 = vmatpush.bf16.msra.mxu0 %v3723
    %5191 = vmatmul.bf16.gmra.mxu0 %v2046
    %v5192 = vpop.f32.mrf.mxu0
    %v5193 = vadd.f32 %v5179, %v5192
    %v5194 = vpop.f32.mrf.mxu0
    %v5195 = vadd.f32 %v5181, %v5194
    %5196 = vdwg.mxu0
    %5197 = vmatpush.bf16.msra.mxu0 %v3963
    %5198 = vmatpush.bf16.msra.mxu0 %v3947
    %5199 = vmatpush.bf16.msra.mxu0 %v3931
    %5200 = vmatpush.bf16.msra.mxu0 %v3915
    %5201 = vmatpush.bf16.msra.mxu0 %v3899
    %5202 = vmatpush.bf16.msra.mxu0 %v3883
    %5203 = vmatpush.bf16.msra.mxu0 %v3867
    %5204 = vmatpush.bf16.msra.mxu0 %v3851
    %5205 = vmatmul.bf16.gmra.mxu0 %v2047
    %v5206 = vpop.f32.mrf.mxu0
    %v5207 = vadd.f32 %v5193, %v5206
    %v5208 = vpop.f32.mrf.mxu0
    %v5209 = vadd.f32 %v5195, %v5208
    %5210 = vdwg.mxu0
    %5211 = vmatpush.bf16.msra.mxu0 %v4091
    %5212 = vmatpush.bf16.msra.mxu0 %v4075
    %5213 = vmatpush.bf16.msra.mxu0 %v4059
    %5214 = vmatpush.bf16.msra.mxu0 %v4043
    %5215 = vmatpush.bf16.msra.mxu0 %v4027
    %5216 = vmatpush.bf16.msra.mxu0 %v4011
    %5217 = vmatpush.bf16.msra.mxu0 %v3995
    %5218 = vmatpush.bf16.msra.mxu0 %v3979
    %5219 = vmatmul.bf16.gmra.mxu0 %v2048
    %v5220 = vpop.f32.mrf.mxu0
    %v5221 = vadd.f32 %v5207, %v5220
    %v5222 = vpop.f32.mrf.mxu0
    %v5223 = vadd.f32 %v5209, %v5222
    %5224 = vdwg.mxu0
    %5225 = vmatpush.bf16.msra.mxu0 %v3708
    %5226 = vmatpush.bf16.msra.mxu0 %v3692
    %5227 = vmatpush.bf16.msra.mxu0 %v3676
    %5228 = vmatpush.bf16.msra.mxu0 %v3660
    %5229 = vmatpush.bf16.msra.mxu0 %v3644
    %5230 = vmatpush.bf16.msra.mxu0 %v3628
    %5231 = vmatpush.bf16.msra.mxu0 %v3612
    %5232 = vmatpush.bf16.msra.mxu0 %v3596
    %5233 = vmatmul.bf16.gmra.mxu0 %v2045
    %v5234 = vpop.f32.mrf.mxu0
    %v5235 = vadd.f32 0.0, %v5234
    %v5236 = vpop.f32.mrf.mxu0
    %v5237 = vadd.f32 0.0, %v5236
    %5238 = vdwg.mxu0
    %5239 = vmatpush.bf16.msra.mxu0 %v3836
    %5240 = vmatpush.bf16.msra.mxu0 %v3820
    %5241 = vmatpush.bf16.msra.mxu0 %v3804
    %5242 = vmatpush.bf16.msra.mxu0 %v3788
    %5243 = vmatpush.bf16.msra.mxu0 %v3772
    %5244 = vmatpush.bf16.msra.mxu0 %v3756
    %5245 = vmatpush.bf16.msra.mxu0 %v3740
    %5246 = vmatpush.bf16.msra.mxu0 %v3724
    %5247 = vmatmul.bf16.gmra.mxu0 %v2046
    %v5248 = vpop.f32.mrf.mxu0
    %v5249 = vadd.f32 %v5235, %v5248
    %v5250 = vpop.f32.mrf.mxu0
    %v5251 = vadd.f32 %v5237, %v5250
    %5252 = vdwg.mxu0
    %5253 = vmatpush.bf16.msra.mxu0 %v3964
    %5254 = vmatpush.bf16.msra.mxu0 %v3948
    %5255 = vmatpush.bf16.msra.mxu0 %v3932
    %5256 = vmatpush.bf16.msra.mxu0 %v3916
    %5257 = vmatpush.bf16.msra.mxu0 %v3900
    %5258 = vmatpush.bf16.msra.mxu0 %v3884
    %5259 = vmatpush.bf16.msra.mxu0 %v3868
    %5260 = vmatpush.bf16.msra.mxu0 %v3852
    %5261 = vmatmul.bf16.gmra.mxu0 %v2047
    %v5262 = vpop.f32.mrf.mxu0
    %v5263 = vadd.f32 %v5249, %v5262
    %v5264 = vpop.f32.mrf.mxu0
    %v5265 = vadd.f32 %v5251, %v5264
    %5266 = vdwg.mxu0
    %5267 = vmatpush.bf16.msra.mxu0 %v4092
    %5268 = vmatpush.bf16.msra.mxu0 %v4076
    %5269 = vmatpush.bf16.msra.mxu0 %v4060
    %5270 = vmatpush.bf16.msra.mxu0 %v4044
    %5271 = vmatpush.bf16.msra.mxu0 %v4028
    %5272 = vmatpush.bf16.msra.mxu0 %v4012
    %5273 = vmatpush.bf16.msra.mxu0 %v3996
    %5274 = vmatpush.bf16.msra.mxu0 %v3980
    %5275 = vmatmul.bf16.gmra.mxu0 %v2048
    %v5276 = vpop.f32.mrf.mxu0
    %v5277 = vadd.f32 %v5263, %v5276
    %v5278 = vpop.f32.mrf.mxu0
    %v5279 = vadd.f32 %v5265, %v5278
    %5280 = vdwg.mxu0
    %5281 = vmatpush.bf16.msra.mxu0 %v3709
    %5282 = vmatpush.bf16.msra.mxu0 %v3693
    %5283 = vmatpush.bf16.msra.mxu0 %v3677
    %5284 = vmatpush.bf16.msra.mxu0 %v3661
    %5285 = vmatpush.bf16.msra.mxu0 %v3645
    %5286 = vmatpush.bf16.msra.mxu0 %v3629
    %5287 = vmatpush.bf16.msra.mxu0 %v3613
    %5288 = vmatpush.bf16.msra.mxu0 %v3597
    %5289 = vmatmul.bf16.gmra.mxu0 %v2045
    %v5290 = vpop.f32.mrf.mxu0
    %v5291 = vadd.f32 0.0, %v5290
    %v5292 = vpop.f32.mrf.mxu0
    %v5293 = vadd.f32 0.0, %v5292
    %5294 = vdwg.mxu0
    %5295 = vmatpush.bf16.msra.mxu0 %v3837
    %5296 = vmatpush.bf16.msra.mxu0 %v3821
    %5297 = vmatpush.bf16.msra.mxu0 %v3805
    %5298 = vmatpush.bf16.msra.mxu0 %v3789
    %5299 = vmatpush.bf16.msra.mxu0 %v3773
    %5300 = vmatpush.bf16.msra.mxu0 %v3757
    %5301 = vmatpush.bf16.msra.mxu0 %v3741
    %5302 = vmatpush.bf16.msra.mxu0 %v3725
    %5303 = vmatmul.bf16.gmra.mxu0 %v2046
    %v5304 = vpop.f32.mrf.mxu0
    %v5305 = vadd.f32 %v5291, %v5304
    %v5306 = vpop.f32.mrf.mxu0
    %v5307 = vadd.f32 %v5293, %v5306
    %5308 = vdwg.mxu0
    %5309 = vmatpush.bf16.msra.mxu0 %v3965
    %5310 = vmatpush.bf16.msra.mxu0 %v3949
    %5311 = vmatpush.bf16.msra.mxu0 %v3933
    %5312 = vmatpush.bf16.msra.mxu0 %v3917
    %5313 = vmatpush.bf16.msra.mxu0 %v3901
    %5314 = vmatpush.bf16.msra.mxu0 %v3885
    %5315 = vmatpush.bf16.msra.mxu0 %v3869
    %5316 = vmatpush.bf16.msra.mxu0 %v3853
    %5317 = vmatmul.bf16.gmra.mxu0 %v2047
    %v5318 = vpop.f32.mrf.mxu0
    %v5319 = vadd.f32 %v5305, %v5318
    %v5320 = vpop.f32.mrf.mxu0
    %v5321 = vadd.f32 %v5307, %v5320
    %5322 = vdwg.mxu0
    %5323 = vmatpush.bf16.msra.mxu0 %v4093
    %5324 = vmatpush.bf16.msra.mxu0 %v4077
    %5325 = vmatpush.bf16.msra.mxu0 %v4061
    %5326 = vmatpush.bf16.msra.mxu0 %v4045
    %5327 = vmatpush.bf16.msra.mxu0 %v4029
    %5328 = vmatpush.bf16.msra.mxu0 %v4013
    %5329 = vmatpush.bf16.msra.mxu0 %v3997
    %5330 = vmatpush.bf16.msra.mxu0 %v3981
    %5331 = vmatmul.bf16.gmra.mxu0 %v2048
    %v5332 = vpop.f32.mrf.mxu0
    %v5333 = vadd.f32 %v5319, %v5332
    %v5334 = vpop.f32.mrf.mxu0
    %v5335 = vadd.f32 %v5321, %v5334
    %5336 = vdwg.mxu0
    %5337 = vmatpush.bf16.msra.mxu0 %v3710
    %5338 = vmatpush.bf16.msra.mxu0 %v3694
    %5339 = vmatpush.bf16.msra.mxu0 %v3678
    %5340 = vmatpush.bf16.msra.mxu0 %v3662
    %5341 = vmatpush.bf16.msra.mxu0 %v3646
    %5342 = vmatpush.bf16.msra.mxu0 %v3630
    %5343 = vmatpush.bf16.msra.mxu0 %v3614
    %5344 = vmatpush.bf16.msra.mxu0 %v3598
    %5345 = vmatmul.bf16.gmra.mxu0 %v2045
    %v5346 = vpop.f32.mrf.mxu0
    %v5347 = vadd.f32 0.0, %v5346
    %v5348 = vpop.f32.mrf.mxu0
    %v5349 = vadd.f32 0.0, %v5348
    %5350 = vdwg.mxu0
    %5351 = vmatpush.bf16.msra.mxu0 %v3838
    %5352 = vmatpush.bf16.msra.mxu0 %v3822
    %5353 = vmatpush.bf16.msra.mxu0 %v3806
    %5354 = vmatpush.bf16.msra.mxu0 %v3790
    %5355 = vmatpush.bf16.msra.mxu0 %v3774
    %5356 = vmatpush.bf16.msra.mxu0 %v3758
    %5357 = vmatpush.bf16.msra.mxu0 %v3742
    %5358 = vmatpush.bf16.msra.mxu0 %v3726
    %5359 = vmatmul.bf16.gmra.mxu0 %v2046
    %v5360 = vpop.f32.mrf.mxu0
    %v5361 = vadd.f32 %v5347, %v5360
    %v5362 = vpop.f32.mrf.mxu0
    %v5363 = vadd.f32 %v5349, %v5362
    %5364 = vdwg.mxu0
    %5365 = vmatpush.bf16.msra.mxu0 %v3966
    %5366 = vmatpush.bf16.msra.mxu0 %v3950
    %5367 = vmatpush.bf16.msra.mxu0 %v3934
    %5368 = vmatpush.bf16.msra.mxu0 %v3918
    %5369 = vmatpush.bf16.msra.mxu0 %v3902
    %5370 = vmatpush.bf16.msra.mxu0 %v3886
    %5371 = vmatpush.bf16.msra.mxu0 %v3870
    %5372 = vmatpush.bf16.msra.mxu0 %v3854
    %5373 = vmatmul.bf16.gmra.mxu0 %v2047
    %v5374 = vpop.f32.mrf.mxu0
    %v5375 = vadd.f32 %v5361, %v5374
    %v5376 = vpop.f32.mrf.mxu0
    %v5377 = vadd.f32 %v5363, %v5376
    %5378 = vdwg.mxu0
    %5379 = vmatpush.bf16.msra.mxu0 %v4094
    %5380 = vmatpush.bf16.msra.mxu0 %v4078
    %5381 = vmatpush.bf16.msra.mxu0 %v4062
    %5382 = vmatpush.bf16.msra.mxu0 %v4046
    %5383 = vmatpush.bf16.msra.mxu0 %v4030
    %5384 = vmatpush.bf16.msra.mxu0 %v4014
    %5385 = vmatpush.bf16.msra.mxu0 %v3998
    %5386 = vmatpush.bf16.msra.mxu0 %v3982
    %5387 = vmatmul.bf16.gmra.mxu0 %v2048
    %v5388 = vpop.f32.mrf.mxu0
    %v5389 = vadd.f32 %v5375, %v5388
    %v5390 = vpop.f32.mrf.mxu0
    %v5391 = vadd.f32 %v5377, %v5390
    %5392 = vdwg.mxu0
    %5393 = vmatpush.bf16.msra.mxu0 %v3711
    %5394 = vmatpush.bf16.msra.mxu0 %v3695
    %5395 = vmatpush.bf16.msra.mxu0 %v3679
    %5396 = vmatpush.bf16.msra.mxu0 %v3663
    %5397 = vmatpush.bf16.msra.mxu0 %v3647
    %5398 = vmatpush.bf16.msra.mxu0 %v3631
    %5399 = vmatpush.bf16.msra.mxu0 %v3615
    %5400 = vmatpush.bf16.msra.mxu0 %v3599
    %5401 = vmatmul.bf16.gmra.mxu0 %v2045
    %v5402 = vpop.f32.mrf.mxu0
    %v5403 = vadd.f32 0.0, %v5402
    %v5404 = vpop.f32.mrf.mxu0
    %v5405 = vadd.f32 0.0, %v5404
    %5406 = vdwg.mxu0
    %5407 = vmatpush.bf16.msra.mxu0 %v3839
    %5408 = vmatpush.bf16.msra.mxu0 %v3823
    %5409 = vmatpush.bf16.msra.mxu0 %v3807
    %5410 = vmatpush.bf16.msra.mxu0 %v3791
    %5411 = vmatpush.bf16.msra.mxu0 %v3775
    %5412 = vmatpush.bf16.msra.mxu0 %v3759
    %5413 = vmatpush.bf16.msra.mxu0 %v3743
    %5414 = vmatpush.bf16.msra.mxu0 %v3727
    %5415 = vmatmul.bf16.gmra.mxu0 %v2046
    %v5416 = vpop.f32.mrf.mxu0
    %v5417 = vadd.f32 %v5403, %v5416
    %v5418 = vpop.f32.mrf.mxu0
    %v5419 = vadd.f32 %v5405, %v5418
    %5420 = vdwg.mxu0
    %5421 = vmatpush.bf16.msra.mxu0 %v3967
    %5422 = vmatpush.bf16.msra.mxu0 %v3951
    %5423 = vmatpush.bf16.msra.mxu0 %v3935
    %5424 = vmatpush.bf16.msra.mxu0 %v3919
    %5425 = vmatpush.bf16.msra.mxu0 %v3903
    %5426 = vmatpush.bf16.msra.mxu0 %v3887
    %5427 = vmatpush.bf16.msra.mxu0 %v3871
    %5428 = vmatpush.bf16.msra.mxu0 %v3855
    %5429 = vmatmul.bf16.gmra.mxu0 %v2047
    %v5430 = vpop.f32.mrf.mxu0
    %v5431 = vadd.f32 %v5417, %v5430
    %v5432 = vpop.f32.mrf.mxu0
    %v5433 = vadd.f32 %v5419, %v5432
    %5434 = vdwg.mxu0
    %5435 = vmatpush.bf16.msra.mxu0 %v4095
    %5436 = vmatpush.bf16.msra.mxu0 %v4079
    %5437 = vmatpush.bf16.msra.mxu0 %v4063
    %5438 = vmatpush.bf16.msra.mxu0 %v4047
    %5439 = vmatpush.bf16.msra.mxu0 %v4031
    %5440 = vmatpush.bf16.msra.mxu0 %v4015
    %5441 = vmatpush.bf16.msra.mxu0 %v3999
    %5442 = vmatpush.bf16.msra.mxu0 %v3983
    %5443 = vmatmul.bf16.gmra.mxu0 %v2048
    %v5444 = vpop.f32.mrf.mxu0
    %v5445 = vadd.f32 %v5431, %v5444
    %v5446 = vpop.f32.mrf.mxu0
    %v5447 = vadd.f32 %v5433, %v5446
    %5448 = vdwg.mxu0
    %5449 = vmatpush.bf16.msra.mxu0 %v3712
    %5450 = vmatpush.bf16.msra.mxu0 %v3696
    %5451 = vmatpush.bf16.msra.mxu0 %v3680
    %5452 = vmatpush.bf16.msra.mxu0 %v3664
    %5453 = vmatpush.bf16.msra.mxu0 %v3648
    %5454 = vmatpush.bf16.msra.mxu0 %v3632
    %5455 = vmatpush.bf16.msra.mxu0 %v3616
    %5456 = vmatpush.bf16.msra.mxu0 %v3600
    %5457 = vmatmul.bf16.gmra.mxu0 %v2045
    %v5458 = vpop.f32.mrf.mxu0
    %v5459 = vadd.f32 0.0, %v5458
    %v5460 = vpop.f32.mrf.mxu0
    %v5461 = vadd.f32 0.0, %v5460
    %5462 = vdwg.mxu0
    %5463 = vmatpush.bf16.msra.mxu0 %v3840
    %5464 = vmatpush.bf16.msra.mxu0 %v3824
    %5465 = vmatpush.bf16.msra.mxu0 %v3808
    %5466 = vmatpush.bf16.msra.mxu0 %v3792
    %5467 = vmatpush.bf16.msra.mxu0 %v3776
    %5468 = vmatpush.bf16.msra.mxu0 %v3760
    %5469 = vmatpush.bf16.msra.mxu0 %v3744
    %5470 = vmatpush.bf16.msra.mxu0 %v3728
    %5471 = vmatmul.bf16.gmra.mxu0 %v2046
    %v5472 = vpop.f32.mrf.mxu0
    %v5473 = vadd.f32 %v5459, %v5472
    %v5474 = vpop.f32.mrf.mxu0
    %v5475 = vadd.f32 %v5461, %v5474
    %5476 = vdwg.mxu0
    %5477 = vmatpush.bf16.msra.mxu0 %v3968
    %5478 = vmatpush.bf16.msra.mxu0 %v3952
    %5479 = vmatpush.bf16.msra.mxu0 %v3936
    %5480 = vmatpush.bf16.msra.mxu0 %v3920
    %5481 = vmatpush.bf16.msra.mxu0 %v3904
    %5482 = vmatpush.bf16.msra.mxu0 %v3888
    %5483 = vmatpush.bf16.msra.mxu0 %v3872
    %5484 = vmatpush.bf16.msra.mxu0 %v3856
    %5485 = vmatmul.bf16.gmra.mxu0 %v2047
    %v5486 = vpop.f32.mrf.mxu0
    %v5487 = vadd.f32 %v5473, %v5486
    %v5488 = vpop.f32.mrf.mxu0
    %v5489 = vadd.f32 %v5475, %v5488
    %5490 = vdwg.mxu0
    %5491 = vmatpush.bf16.msra.mxu0 %v4096
    %5492 = vmatpush.bf16.msra.mxu0 %v4080
    %5493 = vmatpush.bf16.msra.mxu0 %v4064
    %5494 = vmatpush.bf16.msra.mxu0 %v4048
    %5495 = vmatpush.bf16.msra.mxu0 %v4032
    %5496 = vmatpush.bf16.msra.mxu0 %v4016
    %5497 = vmatpush.bf16.msra.mxu0 %v4000
    %5498 = vmatpush.bf16.msra.mxu0 %v3984
    %5499 = vmatmul.bf16.gmra.mxu0 %v2048
    %v5500 = vpop.f32.mrf.mxu0
    %v5501 = vadd.f32 %v5487, %v5500
    %v5502 = vpop.f32.mrf.mxu0
    %v5503 = vadd.f32 %v5489, %v5502
    %5504 = vdwg.mxu0
    %v5505 = vmax.f32 %v4661, 0.0
    %v5506 = vmax.f32 %v4717, 0.0
    %v5507 = vmax.f32 %v4773, 0.0
    %v5508 = vmax.f32 %v4829, 0.0
    %v5509 = vmax.f32 %v4885, 0.0
    %v5510 = vmax.f32 %v4941, 0.0
    %v5511 = vmax.f32 %v4997, 0.0
    %v5512 = vmax.f32 %v5053, 0.0
    %v5513 = vmax.f32 %v5109, 0.0
    %v5514 = vmax.f32 %v5165, 0.0
    %v5515 = vmax.f32 %v5221, 0.0
    %v5516 = vmax.f32 %v5277, 0.0
    %v5517 = vmax.f32 %v5333, 0.0
    %v5518 = vmax.f32 %v5389, 0.0
    %v5519 = vmax.f32 %v5445, 0.0
    %v5520 = vmax.f32 %v5501, 0.0
    %v5521 = vmax.f32 %v4663, 0.0
    %v5522 = vmax.f32 %v4719, 0.0
    %v5523 = vmax.f32 %v4775, 0.0
    %v5524 = vmax.f32 %v4831, 0.0
    %v5525 = vmax.f32 %v4887, 0.0
    %v5526 = vmax.f32 %v4943, 0.0
    %v5527 = vmax.f32 %v4999, 0.0
    %v5528 = vmax.f32 %v5055, 0.0
    %v5529 = vmax.f32 %v5111, 0.0
    %v5530 = vmax.f32 %v5167, 0.0
    %v5531 = vmax.f32 %v5223, 0.0
    %v5532 = vmax.f32 %v5279, 0.0
    %v5533 = vmax.f32 %v5335, 0.0
    %v5534 = vmax.f32 %v5391, 0.0
    %v5535 = vmax.f32 %v5447, 0.0
    %v5536 = vmax.f32 %v5503, 0.0
    %v5537 = vpack.c.bf16 %v5521, %v5505
    %v5538 = vpack.c.bf16 %v5522, %v5506
    %v5539 = vpack.c.bf16 %v5523, %v5507
    %v5540 = vpack.c.bf16 %v5524, %v5508
    %v5541 = vpack.c.bf16 %v5525, %v5509
    %v5542 = vpack.c.bf16 %v5526, %v5510
    %v5543 = vpack.c.bf16 %v5527, %v5511
    %v5544 = vpack.c.bf16 %v5528, %v5512
    %v5545 = vpack.c.bf16 %v5529, %v5513
    %v5546 = vpack.c.bf16 %v5530, %v5514
    %v5547 = vpack.c.bf16 %v5531, %v5515
    %v5548 = vpack.c.bf16 %v5532, %v5516
    %v5549 = vpack.c.bf16 %v5533, %v5517
    %v5550 = vpack.c.bf16 %v5534, %v5518
    %v5551 = vpack.c.bf16 %v5535, %v5519
    %v5552 = vpack.c.bf16 %v5536, %v5520
    %v5553 = vld [vmem:[#allocation11] sm:$0xf]
    %v5554 = vld [vmem:[#allocation11 + $0x4] sm:$0xf]
    %v5555 = vld [vmem:[#allocation11 + $0x8] sm:$0xf]
    %v5556 = vld [vmem:[#allocation11 + $0xc] sm:$0xf]
    %v5557 = vld [vmem:[#allocation11 + $0x10] sm:$0xf]
    %v5558 = vld [vmem:[#allocation11 + $0x14] sm:$0xf]
    %v5559 = vld [vmem:[#allocation11 + $0x18] sm:$0xf]
    %v5560 = vld [vmem:[#allocation11 + $0x1c] sm:$0xf]
    %v5561 = vld [vmem:[#allocation11 + $0x20] sm:$0xf]
    %v5562 = vld [vmem:[#allocation11 + $0x24] sm:$0xf]
    %v5563 = vld [vmem:[#allocation11 + $0x28] sm:$0xf]
    %v5564 = vld [vmem:[#allocation11 + $0x2c] sm:$0xf]
    %v5565 = vld [vmem:[#allocation11 + $0x30] sm:$0xf]
    %v5566 = vld [vmem:[#allocation11 + $0x34] sm:$0xf]
    %v5567 = vld [vmem:[#allocation11 + $0x38] sm:$0xf]
    %v5568 = vld [vmem:[#allocation11 + $0x3c] sm:$0xf]
    %v5569 = vld [vmem:[#allocation11 + $0x40] sm:$0xf]
    %v5570 = vld [vmem:[#allocation11 + $0x44] sm:$0xf]
    %v5571 = vld [vmem:[#allocation11 + $0x48] sm:$0xf]
    %v5572 = vld [vmem:[#allocation11 + $0x4c] sm:$0xf]
    %v5573 = vld [vmem:[#allocation11 + $0x50] sm:$0xf]
    %v5574 = vld [vmem:[#allocation11 + $0x54] sm:$0xf]
    %v5575 = vld [vmem:[#allocation11 + $0x58] sm:$0xf]
    %v5576 = vld [vmem:[#allocation11 + $0x5c] sm:$0xf]
    %v5577 = vld [vmem:[#allocation11 + $0x60] sm:$0xf]
    %v5578 = vld [vmem:[#allocation11 + $0x64] sm:$0xf]
    %v5579 = vld [vmem:[#allocation11 + $0x68] sm:$0xf]
    %v5580 = vld [vmem:[#allocation11 + $0x6c] sm:$0xf]
    %v5581 = vld [vmem:[#allocation11 + $0x70] sm:$0xf]
    %v5582 = vld [vmem:[#allocation11 + $0x74] sm:$0xf]
    %v5583 = vld [vmem:[#allocation11 + $0x78] sm:$0xf]
    %v5584 = vld [vmem:[#allocation11 + $0x7c] sm:$0xf]
    %v5585 = vld [vmem:[#allocation11 + $0x80] sm:$0xf]
    %v5586 = vld [vmem:[#allocation11 + $0x84] sm:$0xf]
    %v5587 = vld [vmem:[#allocation11 + $0x88] sm:$0xf]
    %v5588 = vld [vmem:[#allocation11 + $0x8c] sm:$0xf]
    %v5589 = vld [vmem:[#allocation11 + $0x90] sm:$0xf]
    %v5590 = vld [vmem:[#allocation11 + $0x94] sm:$0xf]
    %v5591 = vld [vmem:[#allocation11 + $0x98] sm:$0xf]
    %v5592 = vld [vmem:[#allocation11 + $0x9c] sm:$0xf]
    %v5593 = vld [vmem:[#allocation11 + $0xa0] sm:$0xf]
    %v5594 = vld [vmem:[#allocation11 + $0xa4] sm:$0xf]
    %v5595 = vld [vmem:[#allocation11 + $0xa8] sm:$0xf]
    %v5596 = vld [vmem:[#allocation11 + $0xac] sm:$0xf]
    %v5597 = vld [vmem:[#allocation11 + $0xb0] sm:$0xf]
    %v5598 = vld [vmem:[#allocation11 + $0xb4] sm:$0xf]
    %v5599 = vld [vmem:[#allocation11 + $0xb8] sm:$0xf]
    %v5600 = vld [vmem:[#allocation11 + $0xbc] sm:$0xf]
    %v5601 = vld [vmem:[#allocation11 + $0xc0] sm:$0xf]
    %v5602 = vld [vmem:[#allocation11 + $0xc4] sm:$0xf]
    %v5603 = vld [vmem:[#allocation11 + $0xc8] sm:$0xf]
    %v5604 = vld [vmem:[#allocation11 + $0xcc] sm:$0xf]
    %v5605 = vld [vmem:[#allocation11 + $0xd0] sm:$0xf]
    %v5606 = vld [vmem:[#allocation11 + $0xd4] sm:$0xf]
    %v5607 = vld [vmem:[#allocation11 + $0xd8] sm:$0xf]
    %v5608 = vld [vmem:[#allocation11 + $0xdc] sm:$0xf]
    %v5609 = vld [vmem:[#allocation11 + $0xe0] sm:$0xf]
    %v5610 = vld [vmem:[#allocation11 + $0xe4] sm:$0xf]
    %v5611 = vld [vmem:[#allocation11 + $0xe8] sm:$0xf]
    %v5612 = vld [vmem:[#allocation11 + $0xec] sm:$0xf]
    %v5613 = vld [vmem:[#allocation11 + $0xf0] sm:$0xf]
    %v5614 = vld [vmem:[#allocation11 + $0xf4] sm:$0xf]
    %v5615 = vld [vmem:[#allocation11 + $0xf8] sm:$0xf]
    %v5616 = vld [vmem:[#allocation11 + $0xfc] sm:$0xf]
    %v5617 = vld [vmem:[#allocation11 + $0x100] sm:$0xf]
    %v5618 = vld [vmem:[#allocation11 + $0x104] sm:$0xf]
    %v5619 = vld [vmem:[#allocation11 + $0x108] sm:$0xf]
    %v5620 = vld [vmem:[#allocation11 + $0x10c] sm:$0xf]
    %v5621 = vld [vmem:[#allocation11 + $0x110] sm:$0xf]
    %v5622 = vld [vmem:[#allocation11 + $0x114] sm:$0xf]
    %v5623 = vld [vmem:[#allocation11 + $0x118] sm:$0xf]
    %v5624 = vld [vmem:[#allocation11 + $0x11c] sm:$0xf]
    %v5625 = vld [vmem:[#allocation11 + $0x120] sm:$0xf]
    %v5626 = vld [vmem:[#allocation11 + $0x124] sm:$0xf]
    %v5627 = vld [vmem:[#allocation11 + $0x128] sm:$0xf]
    %v5628 = vld [vmem:[#allocation11 + $0x12c] sm:$0xf]
    %v5629 = vld [vmem:[#allocation11 + $0x130] sm:$0xf]
    %v5630 = vld [vmem:[#allocation11 + $0x134] sm:$0xf]
    %v5631 = vld [vmem:[#allocation11 + $0x138] sm:$0xf]
    %v5632 = vld [vmem:[#allocation11 + $0x13c] sm:$0xf]
    %v5633 = vld [vmem:[#allocation11 + $0x140] sm:$0xf]
    %v5634 = vld [vmem:[#allocation11 + $0x144] sm:$0xf]
    %v5635 = vld [vmem:[#allocation11 + $0x148] sm:$0xf]
    %v5636 = vld [vmem:[#allocation11 + $0x14c] sm:$0xf]
    %v5637 = vld [vmem:[#allocation11 + $0x150] sm:$0xf]
    %v5638 = vld [vmem:[#allocation11 + $0x154] sm:$0xf]
    %v5639 = vld [vmem:[#allocation11 + $0x158] sm:$0xf]
    %v5640 = vld [vmem:[#allocation11 + $0x15c] sm:$0xf]
    %v5641 = vld [vmem:[#allocation11 + $0x160] sm:$0xf]
    %v5642 = vld [vmem:[#allocation11 + $0x164] sm:$0xf]
    %v5643 = vld [vmem:[#allocation11 + $0x168] sm:$0xf]
    %v5644 = vld [vmem:[#allocation11 + $0x16c] sm:$0xf]
    %v5645 = vld [vmem:[#allocation11 + $0x170] sm:$0xf]
    %v5646 = vld [vmem:[#allocation11 + $0x174] sm:$0xf]
    %v5647 = vld [vmem:[#allocation11 + $0x178] sm:$0xf]
    %v5648 = vld [vmem:[#allocation11 + $0x17c] sm:$0xf]
    %v5649 = vld [vmem:[#allocation11 + $0x180] sm:$0xf]
    %v5650 = vld [vmem:[#allocation11 + $0x184] sm:$0xf]
    %v5651 = vld [vmem:[#allocation11 + $0x188] sm:$0xf]
    %v5652 = vld [vmem:[#allocation11 + $0x18c] sm:$0xf]
    %v5653 = vld [vmem:[#allocation11 + $0x190] sm:$0xf]
    %v5654 = vld [vmem:[#allocation11 + $0x194] sm:$0xf]
    %v5655 = vld [vmem:[#allocation11 + $0x198] sm:$0xf]
    %v5656 = vld [vmem:[#allocation11 + $0x19c] sm:$0xf]
    %v5657 = vld [vmem:[#allocation11 + $0x1a0] sm:$0xf]
    %v5658 = vld [vmem:[#allocation11 + $0x1a4] sm:$0xf]
    %v5659 = vld [vmem:[#allocation11 + $0x1a8] sm:$0xf]
    %v5660 = vld [vmem:[#allocation11 + $0x1ac] sm:$0xf]
    %v5661 = vld [vmem:[#allocation11 + $0x1b0] sm:$0xf]
    %v5662 = vld [vmem:[#allocation11 + $0x1b4] sm:$0xf]
    %v5663 = vld [vmem:[#allocation11 + $0x1b8] sm:$0xf]
    %v5664 = vld [vmem:[#allocation11 + $0x1bc] sm:$0xf]
    %v5665 = vld [vmem:[#allocation11 + $0x1c0] sm:$0xf]
    %v5666 = vld [vmem:[#allocation11 + $0x1c4] sm:$0xf]
    %v5667 = vld [vmem:[#allocation11 + $0x1c8] sm:$0xf]
    %v5668 = vld [vmem:[#allocation11 + $0x1cc] sm:$0xf]
    %v5669 = vld [vmem:[#allocation11 + $0x1d0] sm:$0xf]
    %v5670 = vld [vmem:[#allocation11 + $0x1d4] sm:$0xf]
    %v5671 = vld [vmem:[#allocation11 + $0x1d8] sm:$0xf]
    %v5672 = vld [vmem:[#allocation11 + $0x1dc] sm:$0xf]
    %v5673 = vld [vmem:[#allocation11 + $0x1e0] sm:$0xf]
    %v5674 = vld [vmem:[#allocation11 + $0x1e4] sm:$0xf]
    %v5675 = vld [vmem:[#allocation11 + $0x1e8] sm:$0xf]
    %v5676 = vld [vmem:[#allocation11 + $0x1ec] sm:$0xf]
    %v5677 = vld [vmem:[#allocation11 + $0x1f0] sm:$0xf]
    %v5678 = vld [vmem:[#allocation11 + $0x1f4] sm:$0xf]
    %v5679 = vld [vmem:[#allocation11 + $0x1f8] sm:$0xf]
    %v5680 = vld [vmem:[#allocation11 + $0x1fc] sm:$0xf]
    %v5681 = vld [vmem:[#allocation11 + $0x200] sm:$0xf]
    %v5682 = vld [vmem:[#allocation11 + $0x204] sm:$0xf]
    %v5683 = vld [vmem:[#allocation11 + $0x208] sm:$0xf]
    %v5684 = vld [vmem:[#allocation11 + $0x20c] sm:$0xf]
    %v5685 = vld [vmem:[#allocation11 + $0x210] sm:$0xf]
    %v5686 = vld [vmem:[#allocation11 + $0x214] sm:$0xf]
    %v5687 = vld [vmem:[#allocation11 + $0x218] sm:$0xf]
    %v5688 = vld [vmem:[#allocation11 + $0x21c] sm:$0xf]
    %v5689 = vld [vmem:[#allocation11 + $0x220] sm:$0xf]
    %v5690 = vld [vmem:[#allocation11 + $0x224] sm:$0xf]
    %v5691 = vld [vmem:[#allocation11 + $0x228] sm:$0xf]
    %v5692 = vld [vmem:[#allocation11 + $0x22c] sm:$0xf]
    %v5693 = vld [vmem:[#allocation11 + $0x230] sm:$0xf]
    %v5694 = vld [vmem:[#allocation11 + $0x234] sm:$0xf]
    %v5695 = vld [vmem:[#allocation11 + $0x238] sm:$0xf]
    %v5696 = vld [vmem:[#allocation11 + $0x23c] sm:$0xf]
    %v5697 = vld [vmem:[#allocation11 + $0x240] sm:$0xf]
    %v5698 = vld [vmem:[#allocation11 + $0x244] sm:$0xf]
    %v5699 = vld [vmem:[#allocation11 + $0x248] sm:$0xf]
    %v5700 = vld [vmem:[#allocation11 + $0x24c] sm:$0xf]
    %v5701 = vld [vmem:[#allocation11 + $0x250] sm:$0xf]
    %v5702 = vld [vmem:[#allocation11 + $0x254] sm:$0xf]
    %v5703 = vld [vmem:[#allocation11 + $0x258] sm:$0xf]
    %v5704 = vld [vmem:[#allocation11 + $0x25c] sm:$0xf]
    %v5705 = vld [vmem:[#allocation11 + $0x260] sm:$0xf]
    %v5706 = vld [vmem:[#allocation11 + $0x264] sm:$0xf]
    %v5707 = vld [vmem:[#allocation11 + $0x268] sm:$0xf]
    %v5708 = vld [vmem:[#allocation11 + $0x26c] sm:$0xf]
    %v5709 = vld [vmem:[#allocation11 + $0x270] sm:$0xf]
    %v5710 = vld [vmem:[#allocation11 + $0x274] sm:$0xf]
    %v5711 = vld [vmem:[#allocation11 + $0x278] sm:$0xf]
    %v5712 = vld [vmem:[#allocation11 + $0x27c] sm:$0xf]
    %v5713 = vld [vmem:[#allocation11 + $0x280] sm:$0xf]
    %v5714 = vld [vmem:[#allocation11 + $0x284] sm:$0xf]
    %v5715 = vld [vmem:[#allocation11 + $0x288] sm:$0xf]
    %v5716 = vld [vmem:[#allocation11 + $0x28c] sm:$0xf]
    %v5717 = vld [vmem:[#allocation11 + $0x290] sm:$0xf]
    %v5718 = vld [vmem:[#allocation11 + $0x294] sm:$0xf]
    %v5719 = vld [vmem:[#allocation11 + $0x298] sm:$0xf]
    %v5720 = vld [vmem:[#allocation11 + $0x29c] sm:$0xf]
    %v5721 = vld [vmem:[#allocation11 + $0x2a0] sm:$0xf]
    %v5722 = vld [vmem:[#allocation11 + $0x2a4] sm:$0xf]
    %v5723 = vld [vmem:[#allocation11 + $0x2a8] sm:$0xf]
    %v5724 = vld [vmem:[#allocation11 + $0x2ac] sm:$0xf]
    %v5725 = vld [vmem:[#allocation11 + $0x2b0] sm:$0xf]
    %v5726 = vld [vmem:[#allocation11 + $0x2b4] sm:$0xf]
    %v5727 = vld [vmem:[#allocation11 + $0x2b8] sm:$0xf]
    %v5728 = vld [vmem:[#allocation11 + $0x2bc] sm:$0xf]
    %v5729 = vld [vmem:[#allocation11 + $0x2c0] sm:$0xf]
    %v5730 = vld [vmem:[#allocation11 + $0x2c4] sm:$0xf]
    %v5731 = vld [vmem:[#allocation11 + $0x2c8] sm:$0xf]
    %v5732 = vld [vmem:[#allocation11 + $0x2cc] sm:$0xf]
    %v5733 = vld [vmem:[#allocation11 + $0x2d0] sm:$0xf]
    %v5734 = vld [vmem:[#allocation11 + $0x2d4] sm:$0xf]
    %v5735 = vld [vmem:[#allocation11 + $0x2d8] sm:$0xf]
    %v5736 = vld [vmem:[#allocation11 + $0x2dc] sm:$0xf]
    %v5737 = vld [vmem:[#allocation11 + $0x2e0] sm:$0xf]
    %v5738 = vld [vmem:[#allocation11 + $0x2e4] sm:$0xf]
    %v5739 = vld [vmem:[#allocation11 + $0x2e8] sm:$0xf]
    %v5740 = vld [vmem:[#allocation11 + $0x2ec] sm:$0xf]
    %v5741 = vld [vmem:[#allocation11 + $0x2f0] sm:$0xf]
    %v5742 = vld [vmem:[#allocation11 + $0x2f4] sm:$0xf]
    %v5743 = vld [vmem:[#allocation11 + $0x2f8] sm:$0xf]
    %v5744 = vld [vmem:[#allocation11 + $0x2fc] sm:$0xf]
    %v5745 = vld [vmem:[#allocation11 + $0x300] sm:$0xf]
    %v5746 = vld [vmem:[#allocation11 + $0x304] sm:$0xf]
    %v5747 = vld [vmem:[#allocation11 + $0x308] sm:$0xf]
    %v5748 = vld [vmem:[#allocation11 + $0x30c] sm:$0xf]
    %v5749 = vld [vmem:[#allocation11 + $0x310] sm:$0xf]
    %v5750 = vld [vmem:[#allocation11 + $0x314] sm:$0xf]
    %v5751 = vld [vmem:[#allocation11 + $0x318] sm:$0xf]
    %v5752 = vld [vmem:[#allocation11 + $0x31c] sm:$0xf]
    %v5753 = vld [vmem:[#allocation11 + $0x320] sm:$0xf]
    %v5754 = vld [vmem:[#allocation11 + $0x324] sm:$0xf]
    %v5755 = vld [vmem:[#allocation11 + $0x328] sm:$0xf]
    %v5756 = vld [vmem:[#allocation11 + $0x32c] sm:$0xf]
    %v5757 = vld [vmem:[#allocation11 + $0x330] sm:$0xf]
    %v5758 = vld [vmem:[#allocation11 + $0x334] sm:$0xf]
    %v5759 = vld [vmem:[#allocation11 + $0x338] sm:$0xf]
    %v5760 = vld [vmem:[#allocation11 + $0x33c] sm:$0xf]
    %v5761 = vld [vmem:[#allocation11 + $0x340] sm:$0xf]
    %v5762 = vld [vmem:[#allocation11 + $0x344] sm:$0xf]
    %v5763 = vld [vmem:[#allocation11 + $0x348] sm:$0xf]
    %v5764 = vld [vmem:[#allocation11 + $0x34c] sm:$0xf]
    %v5765 = vld [vmem:[#allocation11 + $0x350] sm:$0xf]
    %v5766 = vld [vmem:[#allocation11 + $0x354] sm:$0xf]
    %v5767 = vld [vmem:[#allocation11 + $0x358] sm:$0xf]
    %v5768 = vld [vmem:[#allocation11 + $0x35c] sm:$0xf]
    %v5769 = vld [vmem:[#allocation11 + $0x360] sm:$0xf]
    %v5770 = vld [vmem:[#allocation11 + $0x364] sm:$0xf]
    %v5771 = vld [vmem:[#allocation11 + $0x368] sm:$0xf]
    %v5772 = vld [vmem:[#allocation11 + $0x36c] sm:$0xf]
    %v5773 = vld [vmem:[#allocation11 + $0x370] sm:$0xf]
    %v5774 = vld [vmem:[#allocation11 + $0x374] sm:$0xf]
    %v5775 = vld [vmem:[#allocation11 + $0x378] sm:$0xf]
    %v5776 = vld [vmem:[#allocation11 + $0x37c] sm:$0xf]
    %v5777 = vld [vmem:[#allocation11 + $0x380] sm:$0xf]
    %v5778 = vld [vmem:[#allocation11 + $0x384] sm:$0xf]
    %v5779 = vld [vmem:[#allocation11 + $0x388] sm:$0xf]
    %v5780 = vld [vmem:[#allocation11 + $0x38c] sm:$0xf]
    %v5781 = vld [vmem:[#allocation11 + $0x390] sm:$0xf]
    %v5782 = vld [vmem:[#allocation11 + $0x394] sm:$0xf]
    %v5783 = vld [vmem:[#allocation11 + $0x398] sm:$0xf]
    %v5784 = vld [vmem:[#allocation11 + $0x39c] sm:$0xf]
    %v5785 = vld [vmem:[#allocation11 + $0x3a0] sm:$0xf]
    %v5786 = vld [vmem:[#allocation11 + $0x3a4] sm:$0xf]
    %v5787 = vld [vmem:[#allocation11 + $0x3a8] sm:$0xf]
    %v5788 = vld [vmem:[#allocation11 + $0x3ac] sm:$0xf]
    %v5789 = vld [vmem:[#allocation11 + $0x3b0] sm:$0xf]
    %v5790 = vld [vmem:[#allocation11 + $0x3b4] sm:$0xf]
    %v5791 = vld [vmem:[#allocation11 + $0x3b8] sm:$0xf]
    %v5792 = vld [vmem:[#allocation11 + $0x3bc] sm:$0xf]
    %v5793 = vld [vmem:[#allocation11 + $0x3c0] sm:$0xf]
    %v5794 = vld [vmem:[#allocation11 + $0x3c4] sm:$0xf]
    %v5795 = vld [vmem:[#allocation11 + $0x3c8] sm:$0xf]
    %v5796 = vld [vmem:[#allocation11 + $0x3cc] sm:$0xf]
    %v5797 = vld [vmem:[#allocation11 + $0x3d0] sm:$0xf]
    %v5798 = vld [vmem:[#allocation11 + $0x3d4] sm:$0xf]
    %v5799 = vld [vmem:[#allocation11 + $0x3d8] sm:$0xf]
    %v5800 = vld [vmem:[#allocation11 + $0x3dc] sm:$0xf]
    %v5801 = vld [vmem:[#allocation11 + $0x3e0] sm:$0xf]
    %v5802 = vld [vmem:[#allocation11 + $0x3e4] sm:$0xf]
    %v5803 = vld [vmem:[#allocation11 + $0x3e8] sm:$0xf]
    %v5804 = vld [vmem:[#allocation11 + $0x3ec] sm:$0xf]
    %v5805 = vld [vmem:[#allocation11 + $0x3f0] sm:$0xf]
    %v5806 = vld [vmem:[#allocation11 + $0x3f4] sm:$0xf]
    %v5807 = vld [vmem:[#allocation11 + $0x3f8] sm:$0xf]
    %v5808 = vld [vmem:[#allocation11 + $0x3fc] sm:$0xf]
    %v6065 = vunpack.c.l.b16 %v5553
    %v6066 = vunpack.c.l.b16 %v5554
    %v6067 = vunpack.c.l.b16 %v5555
    %v6068 = vunpack.c.l.b16 %v5556
    %v6069 = vunpack.c.l.b16 %v5557
    %v6070 = vunpack.c.l.b16 %v5558
    %v6071 = vunpack.c.l.b16 %v5559
    %v6072 = vunpack.c.l.b16 %v5560
    %v6073 = vunpack.c.l.b16 %v5561
    %v6074 = vunpack.c.l.b16 %v5562
    %v6075 = vunpack.c.l.b16 %v5563
    %v6076 = vunpack.c.l.b16 %v5564
    %v6077 = vunpack.c.l.b16 %v5565
    %v6078 = vunpack.c.l.b16 %v5566
    %v6079 = vunpack.c.l.b16 %v5567
    %v6080 = vunpack.c.l.b16 %v5568
    %v6081 = vunpack.c.l.b16 %v5569
    %v6082 = vunpack.c.l.b16 %v5570
    %v6083 = vunpack.c.l.b16 %v5571
    %v6084 = vunpack.c.l.b16 %v5572
    %v6085 = vunpack.c.l.b16 %v5573
    %v6086 = vunpack.c.l.b16 %v5574
    %v6087 = vunpack.c.l.b16 %v5575
    %v6088 = vunpack.c.l.b16 %v5576
    %v6089 = vunpack.c.l.b16 %v5577
    %v6090 = vunpack.c.l.b16 %v5578
    %v6091 = vunpack.c.l.b16 %v5579
    %v6092 = vunpack.c.l.b16 %v5580
    %v6093 = vunpack.c.l.b16 %v5581
    %v6094 = vunpack.c.l.b16 %v5582
    %v6095 = vunpack.c.l.b16 %v5583
    %v6096 = vunpack.c.l.b16 %v5584
    %v6097 = vunpack.c.l.b16 %v5585
    %v6098 = vunpack.c.l.b16 %v5586
    %v6099 = vunpack.c.l.b16 %v5587
    %v6100 = vunpack.c.l.b16 %v5588
    %v6101 = vunpack.c.l.b16 %v5589
    %v6102 = vunpack.c.l.b16 %v5590
    %v6103 = vunpack.c.l.b16 %v5591
    %v6104 = vunpack.c.l.b16 %v5592
    %v6105 = vunpack.c.l.b16 %v5593
    %v6106 = vunpack.c.l.b16 %v5594
    %v6107 = vunpack.c.l.b16 %v5595
    %v6108 = vunpack.c.l.b16 %v5596
    %v6109 = vunpack.c.l.b16 %v5597
    %v6110 = vunpack.c.l.b16 %v5598
    %v6111 = vunpack.c.l.b16 %v5599
    %v6112 = vunpack.c.l.b16 %v5600
    %v6113 = vunpack.c.l.b16 %v5601
    %v6114 = vunpack.c.l.b16 %v5602
    %v6115 = vunpack.c.l.b16 %v5603
    %v6116 = vunpack.c.l.b16 %v5604
    %v6117 = vunpack.c.l.b16 %v5605
    %v6118 = vunpack.c.l.b16 %v5606
    %v6119 = vunpack.c.l.b16 %v5607
    %v6120 = vunpack.c.l.b16 %v5608
    %v6121 = vunpack.c.l.b16 %v5609
    %v6122 = vunpack.c.l.b16 %v5610
    %v6123 = vunpack.c.l.b16 %v5611
    %v6124 = vunpack.c.l.b16 %v5612
    %v6125 = vunpack.c.l.b16 %v5613
    %v6126 = vunpack.c.l.b16 %v5614
    %v6127 = vunpack.c.l.b16 %v5615
    %v6128 = vunpack.c.l.b16 %v5616
    %v6129 = vunpack.c.l.b16 %v5617
    %v6130 = vunpack.c.l.b16 %v5618
    %v6131 = vunpack.c.l.b16 %v5619
    %v6132 = vunpack.c.l.b16 %v5620
    %v6133 = vunpack.c.l.b16 %v5621
    %v6134 = vunpack.c.l.b16 %v5622
    %v6135 = vunpack.c.l.b16 %v5623
    %v6136 = vunpack.c.l.b16 %v5624
    %v6137 = vunpack.c.l.b16 %v5625
    %v6138 = vunpack.c.l.b16 %v5626
    %v6139 = vunpack.c.l.b16 %v5627
    %v6140 = vunpack.c.l.b16 %v5628
    %v6141 = vunpack.c.l.b16 %v5629
    %v6142 = vunpack.c.l.b16 %v5630
    %v6143 = vunpack.c.l.b16 %v5631
    %v6144 = vunpack.c.l.b16 %v5632
    %v6145 = vunpack.c.l.b16 %v5633
    %v6146 = vunpack.c.l.b16 %v5634
    %v6147 = vunpack.c.l.b16 %v5635
    %v6148 = vunpack.c.l.b16 %v5636
    %v6149 = vunpack.c.l.b16 %v5637
    %v6150 = vunpack.c.l.b16 %v5638
    %v6151 = vunpack.c.l.b16 %v5639
    %v6152 = vunpack.c.l.b16 %v5640
    %v6153 = vunpack.c.l.b16 %v5641
    %v6154 = vunpack.c.l.b16 %v5642
    %v6155 = vunpack.c.l.b16 %v5643
    %v6156 = vunpack.c.l.b16 %v5644
    %v6157 = vunpack.c.l.b16 %v5645
    %v6158 = vunpack.c.l.b16 %v5646
    %v6159 = vunpack.c.l.b16 %v5647
    %v6160 = vunpack.c.l.b16 %v5648
    %v6161 = vunpack.c.l.b16 %v5649
    %v6162 = vunpack.c.l.b16 %v5650
    %v6163 = vunpack.c.l.b16 %v5651
    %v6164 = vunpack.c.l.b16 %v5652
    %v6165 = vunpack.c.l.b16 %v5653
    %v6166 = vunpack.c.l.b16 %v5654
    %v6167 = vunpack.c.l.b16 %v5655
    %v6168 = vunpack.c.l.b16 %v5656
    %v6169 = vunpack.c.l.b16 %v5657
    %v6170 = vunpack.c.l.b16 %v5658
    %v6171 = vunpack.c.l.b16 %v5659
    %v6172 = vunpack.c.l.b16 %v5660
    %v6173 = vunpack.c.l.b16 %v5661
    %v6174 = vunpack.c.l.b16 %v5662
    %v6175 = vunpack.c.l.b16 %v5663
    %v6176 = vunpack.c.l.b16 %v5664
    %v6177 = vunpack.c.l.b16 %v5665
    %v6178 = vunpack.c.l.b16 %v5666
    %v6179 = vunpack.c.l.b16 %v5667
    %v6180 = vunpack.c.l.b16 %v5668
    %v6181 = vunpack.c.l.b16 %v5669
    %v6182 = vunpack.c.l.b16 %v5670
    %v6183 = vunpack.c.l.b16 %v5671
    %v6184 = vunpack.c.l.b16 %v5672
    %v6185 = vunpack.c.l.b16 %v5673
    %v6186 = vunpack.c.l.b16 %v5674
    %v6187 = vunpack.c.l.b16 %v5675
    %v6188 = vunpack.c.l.b16 %v5676
    %v6189 = vunpack.c.l.b16 %v5677
    %v6190 = vunpack.c.l.b16 %v5678
    %v6191 = vunpack.c.l.b16 %v5679
    %v6192 = vunpack.c.l.b16 %v5680
    %v6193 = vunpack.c.l.b16 %v5681
    %v6194 = vunpack.c.l.b16 %v5682
    %v6195 = vunpack.c.l.b16 %v5683
    %v6196 = vunpack.c.l.b16 %v5684
    %v6197 = vunpack.c.l.b16 %v5685
    %v6198 = vunpack.c.l.b16 %v5686
    %v6199 = vunpack.c.l.b16 %v5687
    %v6200 = vunpack.c.l.b16 %v5688
    %v6201 = vunpack.c.l.b16 %v5689
    %v6202 = vunpack.c.l.b16 %v5690
    %v6203 = vunpack.c.l.b16 %v5691
    %v6204 = vunpack.c.l.b16 %v5692
    %v6205 = vunpack.c.l.b16 %v5693
    %v6206 = vunpack.c.l.b16 %v5694
    %v6207 = vunpack.c.l.b16 %v5695
    %v6208 = vunpack.c.l.b16 %v5696
    %v6209 = vunpack.c.l.b16 %v5697
    %v6210 = vunpack.c.l.b16 %v5698
    %v6211 = vunpack.c.l.b16 %v5699
    %v6212 = vunpack.c.l.b16 %v5700
    %v6213 = vunpack.c.l.b16 %v5701
    %v6214 = vunpack.c.l.b16 %v5702
    %v6215 = vunpack.c.l.b16 %v5703
    %v6216 = vunpack.c.l.b16 %v5704
    %v6217 = vunpack.c.l.b16 %v5705
    %v6218 = vunpack.c.l.b16 %v5706
    %v6219 = vunpack.c.l.b16 %v5707
    %v6220 = vunpack.c.l.b16 %v5708
    %v6221 = vunpack.c.l.b16 %v5709
    %v6222 = vunpack.c.l.b16 %v5710
    %v6223 = vunpack.c.l.b16 %v5711
    %v6224 = vunpack.c.l.b16 %v5712
    %v6225 = vunpack.c.l.b16 %v5713
    %v6226 = vunpack.c.l.b16 %v5714
    %v6227 = vunpack.c.l.b16 %v5715
    %v6228 = vunpack.c.l.b16 %v5716
    %v6229 = vunpack.c.l.b16 %v5717
    %v6230 = vunpack.c.l.b16 %v5718
    %v6231 = vunpack.c.l.b16 %v5719
    %v6232 = vunpack.c.l.b16 %v5720
    %v6233 = vunpack.c.l.b16 %v5721
    %v6234 = vunpack.c.l.b16 %v5722
    %v6235 = vunpack.c.l.b16 %v5723
    %v6236 = vunpack.c.l.b16 %v5724
    %v6237 = vunpack.c.l.b16 %v5725
    %v6238 = vunpack.c.l.b16 %v5726
    %v6239 = vunpack.c.l.b16 %v5727
    %v6240 = vunpack.c.l.b16 %v5728
    %v6241 = vunpack.c.l.b16 %v5729
    %v6242 = vunpack.c.l.b16 %v5730
    %v6243 = vunpack.c.l.b16 %v5731
    %v6244 = vunpack.c.l.b16 %v5732
    %v6245 = vunpack.c.l.b16 %v5733
    %v6246 = vunpack.c.l.b16 %v5734
    %v6247 = vunpack.c.l.b16 %v5735
    %v6248 = vunpack.c.l.b16 %v5736
    %v6249 = vunpack.c.l.b16 %v5737
    %v6250 = vunpack.c.l.b16 %v5738
    %v6251 = vunpack.c.l.b16 %v5739
    %v6252 = vunpack.c.l.b16 %v5740
    %v6253 = vunpack.c.l.b16 %v5741
    %v6254 = vunpack.c.l.b16 %v5742
    %v6255 = vunpack.c.l.b16 %v5743
    %v6256 = vunpack.c.l.b16 %v5744
    %v6257 = vunpack.c.l.b16 %v5745
    %v6258 = vunpack.c.l.b16 %v5746
    %v6259 = vunpack.c.l.b16 %v5747
    %v6260 = vunpack.c.l.b16 %v5748
    %v6261 = vunpack.c.l.b16 %v5749
    %v6262 = vunpack.c.l.b16 %v5750
    %v6263 = vunpack.c.l.b16 %v5751
    %v6264 = vunpack.c.l.b16 %v5752
    %v6265 = vunpack.c.l.b16 %v5753
    %v6266 = vunpack.c.l.b16 %v5754
    %v6267 = vunpack.c.l.b16 %v5755
    %v6268 = vunpack.c.l.b16 %v5756
    %v6269 = vunpack.c.l.b16 %v5757
    %v6270 = vunpack.c.l.b16 %v5758
    %v6271 = vunpack.c.l.b16 %v5759
    %v6272 = vunpack.c.l.b16 %v5760
    %v6273 = vunpack.c.l.b16 %v5761
    %v6274 = vunpack.c.l.b16 %v5762
    %v6275 = vunpack.c.l.b16 %v5763
    %v6276 = vunpack.c.l.b16 %v5764
    %v6277 = vunpack.c.l.b16 %v5765
    %v6278 = vunpack.c.l.b16 %v5766
    %v6279 = vunpack.c.l.b16 %v5767
    %v6280 = vunpack.c.l.b16 %v5768
    %v6281 = vunpack.c.l.b16 %v5769
    %v6282 = vunpack.c.l.b16 %v5770
    %v6283 = vunpack.c.l.b16 %v5771
    %v6284 = vunpack.c.l.b16 %v5772
    %v6285 = vunpack.c.l.b16 %v5773
    %v6286 = vunpack.c.l.b16 %v5774
    %v6287 = vunpack.c.l.b16 %v5775
    %v6288 = vunpack.c.l.b16 %v5776
    %v6289 = vunpack.c.l.b16 %v5777
    %v6290 = vunpack.c.l.b16 %v5778
    %v6291 = vunpack.c.l.b16 %v5779
    %v6292 = vunpack.c.l.b16 %v5780
    %v6293 = vunpack.c.l.b16 %v5781
    %v6294 = vunpack.c.l.b16 %v5782
    %v6295 = vunpack.c.l.b16 %v5783
    %v6296 = vunpack.c.l.b16 %v5784
    %v6297 = vunpack.c.l.b16 %v5785
    %v6298 = vunpack.c.l.b16 %v5786
    %v6299 = vunpack.c.l.b16 %v5787
    %v6300 = vunpack.c.l.b16 %v5788
    %v6301 = vunpack.c.l.b16 %v5789
    %v6302 = vunpack.c.l.b16 %v5790
    %v6303 = vunpack.c.l.b16 %v5791
    %v6304 = vunpack.c.l.b16 %v5792
    %v6305 = vunpack.c.l.b16 %v5793
    %v6306 = vunpack.c.l.b16 %v5794
    %v6307 = vunpack.c.l.b16 %v5795
    %v6308 = vunpack.c.l.b16 %v5796
    %v6309 = vunpack.c.l.b16 %v5797
    %v6310 = vunpack.c.l.b16 %v5798
    %v6311 = vunpack.c.l.b16 %v5799
    %v6312 = vunpack.c.l.b16 %v5800
    %v6313 = vunpack.c.l.b16 %v5801
    %v6314 = vunpack.c.l.b16 %v5802
    %v6315 = vunpack.c.l.b16 %v5803
    %v6316 = vunpack.c.l.b16 %v5804
    %v6317 = vunpack.c.l.b16 %v5805
    %v6318 = vunpack.c.l.b16 %v5806
    %v6319 = vunpack.c.l.b16 %v5807
    %v6320 = vunpack.c.l.b16 %v5808
    %v6321 = vpack.c.b16 %v6066, %v6065
    %v6322 = vpack.c.b16 %v6068, %v6067
    %v6323 = vpack.c.b16 %v6070, %v6069
    %v6324 = vpack.c.b16 %v6072, %v6071
    %v6325 = vpack.c.b16 %v6074, %v6073
    %v6326 = vpack.c.b16 %v6076, %v6075
    %v6327 = vpack.c.b16 %v6078, %v6077
    %v6328 = vpack.c.b16 %v6080, %v6079
    %v6329 = vpack.c.b16 %v6082, %v6081
    %v6330 = vpack.c.b16 %v6084, %v6083
    %v6331 = vpack.c.b16 %v6086, %v6085
    %v6332 = vpack.c.b16 %v6088, %v6087
    %v6333 = vpack.c.b16 %v6090, %v6089
    %v6334 = vpack.c.b16 %v6092, %v6091
    %v6335 = vpack.c.b16 %v6094, %v6093
    %v6336 = vpack.c.b16 %v6096, %v6095
    %v6337 = vpack.c.b16 %v6098, %v6097
    %v6338 = vpack.c.b16 %v6100, %v6099
    %v6339 = vpack.c.b16 %v6102, %v6101
    %v6340 = vpack.c.b16 %v6104, %v6103
    %v6341 = vpack.c.b16 %v6106, %v6105
    %v6342 = vpack.c.b16 %v6108, %v6107
    %v6343 = vpack.c.b16 %v6110, %v6109
    %v6344 = vpack.c.b16 %v6112, %v6111
    %v6345 = vpack.c.b16 %v6114, %v6113
    %v6346 = vpack.c.b16 %v6116, %v6115
    %v6347 = vpack.c.b16 %v6118, %v6117
    %v6348 = vpack.c.b16 %v6120, %v6119
    %v6349 = vpack.c.b16 %v6122, %v6121
    %v6350 = vpack.c.b16 %v6124, %v6123
    %v6351 = vpack.c.b16 %v6126, %v6125
    %v6352 = vpack.c.b16 %v6128, %v6127
    %v6353 = vpack.c.b16 %v6130, %v6129
    %v6354 = vpack.c.b16 %v6132, %v6131
    %v6355 = vpack.c.b16 %v6134, %v6133
    %v6356 = vpack.c.b16 %v6136, %v6135
    %v6357 = vpack.c.b16 %v6138, %v6137
    %v6358 = vpack.c.b16 %v6140, %v6139
    %v6359 = vpack.c.b16 %v6142, %v6141
    %v6360 = vpack.c.b16 %v6144, %v6143
    %v6361 = vpack.c.b16 %v6146, %v6145
    %v6362 = vpack.c.b16 %v6148, %v6147
    %v6363 = vpack.c.b16 %v6150, %v6149
    %v6364 = vpack.c.b16 %v6152, %v6151
    %v6365 = vpack.c.b16 %v6154, %v6153
    %v6366 = vpack.c.b16 %v6156, %v6155
    %v6367 = vpack.c.b16 %v6158, %v6157
    %v6368 = vpack.c.b16 %v6160, %v6159
    %v6369 = vpack.c.b16 %v6162, %v6161
    %v6370 = vpack.c.b16 %v6164, %v6163
    %v6371 = vpack.c.b16 %v6166, %v6165
    %v6372 = vpack.c.b16 %v6168, %v6167
    %v6373 = vpack.c.b16 %v6170, %v6169
    %v6374 = vpack.c.b16 %v6172, %v6171
    %v6375 = vpack.c.b16 %v6174, %v6173
    %v6376 = vpack.c.b16 %v6176, %v6175
    %v6377 = vpack.c.b16 %v6178, %v6177
    %v6378 = vpack.c.b16 %v6180, %v6179
    %v6379 = vpack.c.b16 %v6182, %v6181
    %v6380 = vpack.c.b16 %v6184, %v6183
    %v6381 = vpack.c.b16 %v6186, %v6185
    %v6382 = vpack.c.b16 %v6188, %v6187
    %v6383 = vpack.c.b16 %v6190, %v6189
    %v6384 = vpack.c.b16 %v6192, %v6191
    %v6385 = vpack.c.b16 %v6194, %v6193
    %v6386 = vpack.c.b16 %v6196, %v6195
    %v6387 = vpack.c.b16 %v6198, %v6197
    %v6388 = vpack.c.b16 %v6200, %v6199
    %v6389 = vpack.c.b16 %v6202, %v6201
    %v6390 = vpack.c.b16 %v6204, %v6203
    %v6391 = vpack.c.b16 %v6206, %v6205
    %v6392 = vpack.c.b16 %v6208, %v6207
    %v6393 = vpack.c.b16 %v6210, %v6209
    %v6394 = vpack.c.b16 %v6212, %v6211
    %v6395 = vpack.c.b16 %v6214, %v6213
    %v6396 = vpack.c.b16 %v6216, %v6215
    %v6397 = vpack.c.b16 %v6218, %v6217
    %v6398 = vpack.c.b16 %v6220, %v6219
    %v6399 = vpack.c.b16 %v6222, %v6221
    %v6400 = vpack.c.b16 %v6224, %v6223
    %v6401 = vpack.c.b16 %v6226, %v6225
    %v6402 = vpack.c.b16 %v6228, %v6227
    %v6403 = vpack.c.b16 %v6230, %v6229
    %v6404 = vpack.c.b16 %v6232, %v6231
    %v6405 = vpack.c.b16 %v6234, %v6233
    %v6406 = vpack.c.b16 %v6236, %v6235
    %v6407 = vpack.c.b16 %v6238, %v6237
    %v6408 = vpack.c.b16 %v6240, %v6239
    %v6409 = vpack.c.b16 %v6242, %v6241
    %v6410 = vpack.c.b16 %v6244, %v6243
    %v6411 = vpack.c.b16 %v6246, %v6245
    %v6412 = vpack.c.b16 %v6248, %v6247
    %v6413 = vpack.c.b16 %v6250, %v6249
    %v6414 = vpack.c.b16 %v6252, %v6251
    %v6415 = vpack.c.b16 %v6254, %v6253
    %v6416 = vpack.c.b16 %v6256, %v6255
    %v6417 = vpack.c.b16 %v6258, %v6257
    %v6418 = vpack.c.b16 %v6260, %v6259
    %v6419 = vpack.c.b16 %v6262, %v6261
    %v6420 = vpack.c.b16 %v6264, %v6263
    %v6421 = vpack.c.b16 %v6266, %v6265
    %v6422 = vpack.c.b16 %v6268, %v6267
    %v6423 = vpack.c.b16 %v6270, %v6269
    %v6424 = vpack.c.b16 %v6272, %v6271
    %v6425 = vpack.c.b16 %v6274, %v6273
    %v6426 = vpack.c.b16 %v6276, %v6275
    %v6427 = vpack.c.b16 %v6278, %v6277
    %v6428 = vpack.c.b16 %v6280, %v6279
    %v6429 = vpack.c.b16 %v6282, %v6281
    %v6430 = vpack.c.b16 %v6284, %v6283
    %v6431 = vpack.c.b16 %v6286, %v6285
    %v6432 = vpack.c.b16 %v6288, %v6287
    %v6433 = vpack.c.b16 %v6290, %v6289
    %v6434 = vpack.c.b16 %v6292, %v6291
    %v6435 = vpack.c.b16 %v6294, %v6293
    %v6436 = vpack.c.b16 %v6296, %v6295
    %v6437 = vpack.c.b16 %v6298, %v6297
    %v6438 = vpack.c.b16 %v6300, %v6299
    %v6439 = vpack.c.b16 %v6302, %v6301
    %v6440 = vpack.c.b16 %v6304, %v6303
    %v6441 = vpack.c.b16 %v6306, %v6305
    %v6442 = vpack.c.b16 %v6308, %v6307
    %v6443 = vpack.c.b16 %v6310, %v6309
    %v6444 = vpack.c.b16 %v6312, %v6311
    %v6445 = vpack.c.b16 %v6314, %v6313
    %v6446 = vpack.c.b16 %v6316, %v6315
    %v6447 = vpack.c.b16 %v6318, %v6317
    %v6448 = vpack.c.b16 %v6320, %v6319
    %6577 = vmatpush.bf16.msra.mxu0 %v6328
    %6578 = vmatpush.bf16.msra.mxu0 %v6327
    %6579 = vmatpush.bf16.msra.mxu0 %v6326
    %6580 = vmatpush.bf16.msra.mxu0 %v6325
    %6581 = vmatpush.bf16.msra.mxu0 %v6324
    %6582 = vmatpush.bf16.msra.mxu0 %v6323
    %6583 = vmatpush.bf16.msra.mxu0 %v6322
    %6584 = vmatpush.bf16.msra.mxu0 %v6321
    %6585 = vmatmul.bf16.gmra.mxu0 %v5537
    %v6586 = vpop.f32.mrf.mxu0
    %v6587 = vadd.f32 0.0, %v6586
    %v6588 = vpop.f32.mrf.mxu0
    %v6589 = vadd.f32 0.0, %v6588
    %6590 = vdwg.mxu0
    %6591 = vmatpush.bf16.msra.mxu0 %v6336
    %6592 = vmatpush.bf16.msra.mxu0 %v6335
    %6593 = vmatpush.bf16.msra.mxu0 %v6334
    %6594 = vmatpush.bf16.msra.mxu0 %v6333
    %6595 = vmatpush.bf16.msra.mxu0 %v6332
    %6596 = vmatpush.bf16.msra.mxu0 %v6331
    %6597 = vmatpush.bf16.msra.mxu0 %v6330
    %6598 = vmatpush.bf16.msra.mxu0 %v6329
    %6599 = vmatmul.bf16.gmra.mxu0 %v5538
    %v6600 = vpop.f32.mrf.mxu0
    %v6601 = vadd.f32 %v6587, %v6600
    %v6602 = vpop.f32.mrf.mxu0
    %v6603 = vadd.f32 %v6589, %v6602
    %6604 = vdwg.mxu0
    %6605 = vmatpush.bf16.msra.mxu0 %v6344
    %6606 = vmatpush.bf16.msra.mxu0 %v6343
    %6607 = vmatpush.bf16.msra.mxu0 %v6342
    %6608 = vmatpush.bf16.msra.mxu0 %v6341
    %6609 = vmatpush.bf16.msra.mxu0 %v6340
    %6610 = vmatpush.bf16.msra.mxu0 %v6339
    %6611 = vmatpush.bf16.msra.mxu0 %v6338
    %6612 = vmatpush.bf16.msra.mxu0 %v6337
    %6613 = vmatmul.bf16.gmra.mxu0 %v5539
    %v6614 = vpop.f32.mrf.mxu0
    %v6615 = vadd.f32 %v6601, %v6614
    %v6616 = vpop.f32.mrf.mxu0
    %v6617 = vadd.f32 %v6603, %v6616
    %6618 = vdwg.mxu0
    %6619 = vmatpush.bf16.msra.mxu0 %v6352
    %6620 = vmatpush.bf16.msra.mxu0 %v6351
    %6621 = vmatpush.bf16.msra.mxu0 %v6350
    %6622 = vmatpush.bf16.msra.mxu0 %v6349
    %6623 = vmatpush.bf16.msra.mxu0 %v6348
    %6624 = vmatpush.bf16.msra.mxu0 %v6347
    %6625 = vmatpush.bf16.msra.mxu0 %v6346
    %6626 = vmatpush.bf16.msra.mxu0 %v6345
    %6627 = vmatmul.bf16.gmra.mxu0 %v5540
    %v6628 = vpop.f32.mrf.mxu0
    %v6629 = vadd.f32 %v6615, %v6628
    %v6630 = vpop.f32.mrf.mxu0
    %v6631 = vadd.f32 %v6617, %v6630
    %6632 = vdwg.mxu0
    %6633 = vmatpush.bf16.msra.mxu0 %v6360
    %6634 = vmatpush.bf16.msra.mxu0 %v6359
    %6635 = vmatpush.bf16.msra.mxu0 %v6358
    %6636 = vmatpush.bf16.msra.mxu0 %v6357
    %6637 = vmatpush.bf16.msra.mxu0 %v6356
    %6638 = vmatpush.bf16.msra.mxu0 %v6355
    %6639 = vmatpush.bf16.msra.mxu0 %v6354
    %6640 = vmatpush.bf16.msra.mxu0 %v6353
    %6641 = vmatmul.bf16.gmra.mxu0 %v5541
    %v6642 = vpop.f32.mrf.mxu0
    %v6643 = vadd.f32 %v6629, %v6642
    %v6644 = vpop.f32.mrf.mxu0
    %v6645 = vadd.f32 %v6631, %v6644
    %6646 = vdwg.mxu0
    %6647 = vmatpush.bf16.msra.mxu0 %v6368
    %6648 = vmatpush.bf16.msra.mxu0 %v6367
    %6649 = vmatpush.bf16.msra.mxu0 %v6366
    %6650 = vmatpush.bf16.msra.mxu0 %v6365
    %6651 = vmatpush.bf16.msra.mxu0 %v6364
    %6652 = vmatpush.bf16.msra.mxu0 %v6363
    %6653 = vmatpush.bf16.msra.mxu0 %v6362
    %6654 = vmatpush.bf16.msra.mxu0 %v6361
    %6655 = vmatmul.bf16.gmra.mxu0 %v5542
    %v6656 = vpop.f32.mrf.mxu0
    %v6657 = vadd.f32 %v6643, %v6656
    %v6658 = vpop.f32.mrf.mxu0
    %v6659 = vadd.f32 %v6645, %v6658
    %6660 = vdwg.mxu0
    %6661 = vmatpush.bf16.msra.mxu0 %v6376
    %6662 = vmatpush.bf16.msra.mxu0 %v6375
    %6663 = vmatpush.bf16.msra.mxu0 %v6374
    %6664 = vmatpush.bf16.msra.mxu0 %v6373
    %6665 = vmatpush.bf16.msra.mxu0 %v6372
    %6666 = vmatpush.bf16.msra.mxu0 %v6371
    %6667 = vmatpush.bf16.msra.mxu0 %v6370
    %6668 = vmatpush.bf16.msra.mxu0 %v6369
    %6669 = vmatmul.bf16.gmra.mxu0 %v5543
    %v6670 = vpop.f32.mrf.mxu0
    %v6671 = vadd.f32 %v6657, %v6670
    %v6672 = vpop.f32.mrf.mxu0
    %v6673 = vadd.f32 %v6659, %v6672
    %6674 = vdwg.mxu0
    %6675 = vmatpush.bf16.msra.mxu0 %v6384
    %6676 = vmatpush.bf16.msra.mxu0 %v6383
    %6677 = vmatpush.bf16.msra.mxu0 %v6382
    %6678 = vmatpush.bf16.msra.mxu0 %v6381
    %6679 = vmatpush.bf16.msra.mxu0 %v6380
    %6680 = vmatpush.bf16.msra.mxu0 %v6379
    %6681 = vmatpush.bf16.msra.mxu0 %v6378
    %6682 = vmatpush.bf16.msra.mxu0 %v6377
    %6683 = vmatmul.bf16.gmra.mxu0 %v5544
    %v6684 = vpop.f32.mrf.mxu0
    %v6685 = vadd.f32 %v6671, %v6684
    %v6686 = vpop.f32.mrf.mxu0
    %v6687 = vadd.f32 %v6673, %v6686
    %6688 = vdwg.mxu0
    %6689 = vmatpush.bf16.msra.mxu0 %v6392
    %6690 = vmatpush.bf16.msra.mxu0 %v6391
    %6691 = vmatpush.bf16.msra.mxu0 %v6390
    %6692 = vmatpush.bf16.msra.mxu0 %v6389
    %6693 = vmatpush.bf16.msra.mxu0 %v6388
    %6694 = vmatpush.bf16.msra.mxu0 %v6387
    %6695 = vmatpush.bf16.msra.mxu0 %v6386
    %6696 = vmatpush.bf16.msra.mxu0 %v6385
    %6697 = vmatmul.bf16.gmra.mxu0 %v5545
    %v6698 = vpop.f32.mrf.mxu0
    %v6699 = vadd.f32 %v6685, %v6698
    %v6700 = vpop.f32.mrf.mxu0
    %v6701 = vadd.f32 %v6687, %v6700
    %6702 = vdwg.mxu0
    %6703 = vmatpush.bf16.msra.mxu0 %v6400
    %6704 = vmatpush.bf16.msra.mxu0 %v6399
    %6705 = vmatpush.bf16.msra.mxu0 %v6398
    %6706 = vmatpush.bf16.msra.mxu0 %v6397
    %6707 = vmatpush.bf16.msra.mxu0 %v6396
    %6708 = vmatpush.bf16.msra.mxu0 %v6395
    %6709 = vmatpush.bf16.msra.mxu0 %v6394
    %6710 = vmatpush.bf16.msra.mxu0 %v6393
    %6711 = vmatmul.bf16.gmra.mxu0 %v5546
    %v6712 = vpop.f32.mrf.mxu0
    %v6713 = vadd.f32 %v6699, %v6712
    %v6714 = vpop.f32.mrf.mxu0
    %v6715 = vadd.f32 %v6701, %v6714
    %6716 = vdwg.mxu0
    %6717 = vmatpush.bf16.msra.mxu0 %v6408
    %6718 = vmatpush.bf16.msra.mxu0 %v6407
    %6719 = vmatpush.bf16.msra.mxu0 %v6406
    %6720 = vmatpush.bf16.msra.mxu0 %v6405
    %6721 = vmatpush.bf16.msra.mxu0 %v6404
    %6722 = vmatpush.bf16.msra.mxu0 %v6403
    %6723 = vmatpush.bf16.msra.mxu0 %v6402
    %6724 = vmatpush.bf16.msra.mxu0 %v6401
    %6725 = vmatmul.bf16.gmra.mxu0 %v5547
    %v6726 = vpop.f32.mrf.mxu0
    %v6727 = vadd.f32 %v6713, %v6726
    %v6728 = vpop.f32.mrf.mxu0
    %v6729 = vadd.f32 %v6715, %v6728
    %6730 = vdwg.mxu0
    %6731 = vmatpush.bf16.msra.mxu0 %v6416
    %6732 = vmatpush.bf16.msra.mxu0 %v6415
    %6733 = vmatpush.bf16.msra.mxu0 %v6414
    %6734 = vmatpush.bf16.msra.mxu0 %v6413
    %6735 = vmatpush.bf16.msra.mxu0 %v6412
    %6736 = vmatpush.bf16.msra.mxu0 %v6411
    %6737 = vmatpush.bf16.msra.mxu0 %v6410
    %6738 = vmatpush.bf16.msra.mxu0 %v6409
    %6739 = vmatmul.bf16.gmra.mxu0 %v5548
    %v6740 = vpop.f32.mrf.mxu0
    %v6741 = vadd.f32 %v6727, %v6740
    %v6742 = vpop.f32.mrf.mxu0
    %v6743 = vadd.f32 %v6729, %v6742
    %6744 = vdwg.mxu0
    %6745 = vmatpush.bf16.msra.mxu0 %v6424
    %6746 = vmatpush.bf16.msra.mxu0 %v6423
    %6747 = vmatpush.bf16.msra.mxu0 %v6422
    %6748 = vmatpush.bf16.msra.mxu0 %v6421
    %6749 = vmatpush.bf16.msra.mxu0 %v6420
    %6750 = vmatpush.bf16.msra.mxu0 %v6419
    %6751 = vmatpush.bf16.msra.mxu0 %v6418
    %6752 = vmatpush.bf16.msra.mxu0 %v6417
    %6753 = vmatmul.bf16.gmra.mxu0 %v5549
    %v6754 = vpop.f32.mrf.mxu0
    %v6755 = vadd.f32 %v6741, %v6754
    %v6756 = vpop.f32.mrf.mxu0
    %v6757 = vadd.f32 %v6743, %v6756
    %6758 = vdwg.mxu0
    %6759 = vmatpush.bf16.msra.mxu0 %v6432
    %6760 = vmatpush.bf16.msra.mxu0 %v6431
    %6761 = vmatpush.bf16.msra.mxu0 %v6430
    %6762 = vmatpush.bf16.msra.mxu0 %v6429
    %6763 = vmatpush.bf16.msra.mxu0 %v6428
    %6764 = vmatpush.bf16.msra.mxu0 %v6427
    %6765 = vmatpush.bf16.msra.mxu0 %v6426
    %6766 = vmatpush.bf16.msra.mxu0 %v6425
    %6767 = vmatmul.bf16.gmra.mxu0 %v5550
    %v6768 = vpop.f32.mrf.mxu0
    %v6769 = vadd.f32 %v6755, %v6768
    %v6770 = vpop.f32.mrf.mxu0
    %v6771 = vadd.f32 %v6757, %v6770
    %6772 = vdwg.mxu0
    %6773 = vmatpush.bf16.msra.mxu0 %v6440
    %6774 = vmatpush.bf16.msra.mxu0 %v6439
    %6775 = vmatpush.bf16.msra.mxu0 %v6438
    %6776 = vmatpush.bf16.msra.mxu0 %v6437
    %6777 = vmatpush.bf16.msra.mxu0 %v6436
    %6778 = vmatpush.bf16.msra.mxu0 %v6435
    %6779 = vmatpush.bf16.msra.mxu0 %v6434
    %6780 = vmatpush.bf16.msra.mxu0 %v6433
    %6781 = vmatmul.bf16.gmra.mxu0 %v5551
    %v6782 = vpop.f32.mrf.mxu0
    %v6783 = vadd.f32 %v6769, %v6782
    %v6784 = vpop.f32.mrf.mxu0
    %v6785 = vadd.f32 %v6771, %v6784
    %6786 = vdwg.mxu0
    %6787 = vmatpush.bf16.msra.mxu0 %v6448
    %6788 = vmatpush.bf16.msra.mxu0 %v6447
    %6789 = vmatpush.bf16.msra.mxu0 %v6446
    %6790 = vmatpush.bf16.msra.mxu0 %v6445
    %6791 = vmatpush.bf16.msra.mxu0 %v6444
    %6792 = vmatpush.bf16.msra.mxu0 %v6443
    %6793 = vmatpush.bf16.msra.mxu0 %v6442
    %6794 = vmatpush.bf16.msra.mxu0 %v6441
    %6795 = vmatmul.bf16.gmra.mxu0 %v5552
    %v6796 = vpop.f32.mrf.mxu0
    %v6797 = vadd.f32 %v6783, %v6796
    %v6798 = vpop.f32.mrf.mxu0
    %v6799 = vadd.f32 %v6785, %v6798
    %6800 = vdwg.mxu0
    %v6801 = vpack.c.bf16 %v6799, %v6797
    %6802 = vmatpush.bf16.msra.mxu0 0
    %6803 = vmatpush.bf16.msra.mxu0 0
    %6804 = vmatpush.bf16.msra.mxu0 0
    %6805 = vmatpush.bf16.msra.mxu0 0
    %6806 = vmatpush.bf16.msra.mxu0 0
    %6807 = vmatpush.bf16.msra.mxu0 0
    %6808 = vmatpush.bf16.msra.mxu0 0
    %6809 = vmatpush.bf16.msra.mxu0 %v6801
    %6810 = vmatmul.bf16.gmra.mxu0 %v168
    %v6811 = vpop.f32.mrf.mxu0
    %v6812 = vadd.f32 0.0, %v6811
    %v6813 = vpop.f32.mrf.mxu0
    %v6814 = vadd.f32 0.0, %v6813
    %6815 = vdwg.mxu0
    %v6816 = vmax.f32 %v6812, 0.0
    %v6817 = vmax.f32 %v6814, 0.0
    %6818 = vst [vmem:[#allocation13] sm:$0xff] %v6816
    %6819 = vst [vmem:[#allocation13 + $0x8] sm:$0xff] %v6817
    // Predicated region
    $region50: #{tpu_custom_call.1} parent=1 // pred_check
      _
    $region51: #{tpu_custom_call.1} parent=1 // pred_check_branch
      %6821 = sbr.rel (0) target = $region53
    $region52: #{tpu_custom_call.1} parent=1 // pred_region
      %6823 = vsyncadd [#allocation4], 0
      %s6824 = sshll.u32 [#allocation13], 4
      %s6825 = int_to_ptr.vmem [resolvable:$true] %s6824
      %s6826 = sshll.u32 %s6, 4
      %s6827 = int_to_ptr.hbm [resolvable:$true] %s6826
      %6832 = dma.vmem_to_hbm [thread:$0]  %s6825, 256, %s6827, [#allocation4], 128, 128, 8
    $region53: #{tpu_custom_call.1} parent=1 // pred_fallthru
      _
    // Predicated region
    $region54: #{tpu_custom_call.1} parent=1 // pred_check
      _
    $region55: #{tpu_custom_call.1} parent=1 // pred_check_branch
      %6834 = sbr.rel (0) target = $region57
    $region56: #{tpu_custom_call.1} parent=1 // pred_region
      %6836 = dma.done [#allocation4], 256
    $region57: #{tpu_custom_call.1} parent=1 // pred_fallthru
      _
    %6837 = vsyncpa [#allocation3], 1
    %6838 = vsyncpa [#allocation6], 1
    %6839 = vsyncpa [#allocation9], 1
    %6840 = vsyncpa [#allocation12], 1
    %6841 = vsyncpa [#allocation4], 1

</llo_original>
